<compile_context>
chip_gen: v6e
topology: v6e:2x2x1
jax: 0.10.0
libtpu: 0.0.40
codegen_flags: <defaults>
</compile_context>

<pallas_src>
import functools

import jax
import jax.numpy as jnp
import numpy as np
from jax.experimental import pallas as pl
from jax.experimental.pallas import tpu as pltpu

EPS = 1e-5


# --------------------------------------------------------------------------
# Kernel helpers
# --------------------------------------------------------------------------
def _conv3x3_im2col_stats(xin, w_ref, y_ref, stats_ref, pad_scr):
    """3x3 / stride-1 / pad-1 conv of `xin` against w_ref ((9*Cin, Cout), bf16),
    plus per-tile channel sum / tile-centered sum-of-squares of the f32 output.

    xin      : (NB, H, W, Cin) f32 value (already pre-activated if needed)
    y_ref    : (NB*H*W, Cout) bf16 output ref (raw conv output, pre-BN)
    stats_ref: (1, 2, Cout) f32 output ref ([sum, centered sumsq] of this tile)
    pad_scr  : (NB, H+2, W+2, Cin) f32 VMEM scratch (1-px halo)
    """
    NB, H, W, Cin = xin.shape
    Cout = w_ref.shape[-1]

    # ---- 1-px halo in VMEM scratch: zero ONLY the border, then interior ----
    zrow = jnp.zeros((NB, 1, W + 2, Cin), jnp.float32)
    zcol = jnp.zeros((NB, H, 1, Cin), jnp.float32)
    pad_scr[:, 0:1, :, :] = zrow
    pad_scr[:, H + 1:H + 2, :, :] = zrow
    pad_scr[:, 1:H + 1, 0:1, :] = zcol
    pad_scr[:, 1:H + 1, W + 1:W + 2, :] = zcol
    pad_scr[:, 1:H + 1, 1:W + 1, :] = xin

    # ---- im2col taps sliced straight off the scratch ref (no full padded tile
    #      as a live value); per-tap bf16 cast so the patch buffer and the MXU
    #      operands are half-width.
    taps = [pad_scr[:, kh:kh + H, kw:kw + W, :].astype(jnp.bfloat16)
            for kh in range(3) for kw in range(3)]
    patches = jnp.concatenate(taps, axis=-1).reshape(NB * H * W, 9 * Cin)
    # TODO(synk): on v5e, split into three accumulating K=3*Cin matmuls (one per
    # kh) to cut lane-concat store count (single vst slot saturates first there).
    acc = jnp.dot(patches, w_ref[...], preferred_element_type=jnp.float32)

    y_ref[...] = acc.astype(y_ref.dtype)   # bf16 intermediate, 2D slab

    # BN partials from the f32 accumulator, centered per tile (numerics).
    m = jnp.float32(NB * H * W)
    s = jnp.sum(acc, axis=0, keepdims=True)                # (1, Cout)
    d = acc - s * (1.0 / m)
    ss = jnp.sum(d * d, axis=0, keepdims=True)             # (1, Cout)
    stats_ref[...] = jnp.concatenate([s, ss], axis=0).reshape(1, 2, Cout)


def _conv1_kernel(x_ref, w_ref, y_ref, stats_ref, pad_scr):
    _conv3x3_im2col_stats(x_ref[...], w_ref, y_ref, stats_ref, pad_scr)


def _bn_relu_conv2_kernel(y1_ref, scale_ref, bias_ref, w_ref,
                          y_ref, stats_ref, pad_scr):
    NB, Hp, Wp, C = pad_scr.shape
    H, W = Hp - 2, Wp - 2
    h = jnp.maximum(
        y1_ref[...].astype(jnp.float32) * scale_ref[...] + bias_ref[...], 0.0)
    _conv3x3_im2col_stats(h.reshape(NB, H, W, C), w_ref, y_ref, stats_ref,
                          pad_scr)


def _bn_add_relu_kernel(y2_ref, res_ref, scale_ref, bias_ref, out_ref):
    # Fully lane-dense elementwise stage: all operands are (rows, W*C) slabs.
    z = (y2_ref[...].astype(jnp.float32) * scale_ref[...] + bias_ref[...]
         + res_ref[...])
    out_ref[...] = jnp.maximum(z, 0.0).astype(out_ref.dtype)


# --------------------------------------------------------------------------
# Wrapper helpers
# --------------------------------------------------------------------------
def _fold_bn(stats, m_tile, count, gamma, beta):
    """stats: (num_tiles, 2, C) per-tile [sum, centered sumsq] -> (scale, bias)
    such that bn(y) == y * scale + bias (training-mode BN, biased variance).
    Uses the parallel-variance (Chan) combination of tile-centered partials."""
    s_t = stats[:, 0, :]                       # (nt, C)
    ss_t = stats[:, 1, :]                      # (nt, C)
    mean_t = s_t / m_tile
    mean = jnp.sum(s_t, axis=0) / count
    m2 = jnp.sum(ss_t, axis=0) + m_tile * jnp.sum((mean_t - mean) ** 2, axis=0)
    var = jnp.maximum(m2 / count, 0.0)
    scale = gamma * jax.lax.rsqrt(var + EPS)
    bias = beta - mean * scale
    c = scale.shape[0]
    return (scale.reshape(1, c).astype(jnp.float32),
            bias.reshape(1, c).astype(jnp.float32))


def _pick_batch_block(n, h, w, c, target_bytes):
    """Largest divisor of n whose (NB,H,W,C) f32 tile is ~target_bytes, while
    keeping >= 2 grid steps when possible (v7x has 2 TensorCores)."""
    per_img = max(1, h * w * c * 4)
    want = max(1, target_bytes // per_img)
    if n >= 2:
        want = min(want, n // 2)
    nb = 1
    for d in range(1, n + 1):
        if n % d == 0 and d <= want:
            nb = d
    return nb


def _vmem_limit_bytes():
    # v7x: 64 MiB physical VMEM per TensorCore; v5e/v6e: 128 MiB.
    try:
        cap = pltpu.get_tpu_info().vmem_capacity_bytes
    except Exception:
        cap = 64 << 20
    return int(min(cap * 3 // 4, 100 << 20))


# --------------------------------------------------------------------------
# Forward
# --------------------------------------------------------------------------
@functools.partial(jax.jit, static_argnames=("batch_block",))
def basic_block_forward(x_nchw, w1_hwio, g1, b1, w2_hwio, g2, b2, *,
                        batch_block=None):
    """PyTorch BasicBlock forward (stride=1, identity residual).
    x_nchw: (N, C, H, W); conv weights HWIO (3, 3, Cin, Cout). Returns NCHW."""
    x = jnp.transpose(x_nchw, (0, 2, 3, 1)).astype(jnp.float32)  # NHWC, lane=C
    N, H, W, Cin = x.shape
    Cout = w1_hwio.shape[-1]
    assert Cin == Cout, "identity residual requires inplanes == planes"

    if batch_block is None:
        NB = _pick_batch_block(N, H, W, Cin, 2 << 20)
    else:
        NB = min(batch_block, N)
    assert N % NB == 0, "batch must be divisible by batch_block"
    nt = N // NB
    M_tile = NB * H * W
    count = jnp.float32(N * H * W)

    # (kh, kw, cin) flattened along K matches the im2col tap/channel ordering.
    # bf16 weights: native MXU path + half the double-buffered weight VMEM.
    w1f = w1_hwio.reshape(9 * Cin, Cout).astype(jnp.bfloat16)
    w2f = w2_hwio.reshape(9 * Cout, Cout).astype(jnp.bfloat16)

    cp = pltpu.CompilerParams(dimension_semantics=("parallel",),
                              vmem_limit_bytes=_vmem_limit_bytes())

    def slab_spec(c):
        return pl.BlockSpec((M_tile, c), lambda i: (i, 0))

    def full2d(a):
        return pl.BlockSpec(a.shape, lambda i: (0, 0))

    stats_spec = pl.BlockSpec((1, 2, Cout), lambda i: (i, 0, 0))
    # TODO(synk): the weight block index never changes across the grid; with a
    # Pallas version supporting it, pass pipeline_mode=pl.Buffered(1) to drop
    # the second weight buffer on VMEM-tight v7x.

    # ---- K1: conv1 + per-tile BN1 partial stats ----
    y1, st1 = pl.pallas_call(
        _conv1_kernel,
        grid=(nt,),
        in_specs=[pl.BlockSpec((NB, H, W, Cin), lambda i: (i, 0, 0, 0)),
                  full2d(w1f)],
        out_specs=[slab_spec(Cout), stats_spec],
        out_shape=[jax.ShapeDtypeStruct((N * H * W, Cout), jnp.bfloat16),
                   jax.ShapeDtypeStruct((nt, 2, Cout), jnp.float32)],
        scratch_shapes=[pltpu.VMEM((NB, H + 2, W + 2, Cin), jnp.float32)],
        compiler_params=cp,
    )(x, w1f)

    scale1, bias1 = _fold_bn(st1, jnp.float32(M_tile), count,
                             g1.astype(jnp.float32), b1.astype(jnp.float32))

    # ---- K2: bn1-apply + relu + conv2 + per-tile BN2 partial stats ----
    y2, st2 = pl.pallas_call(
        _bn_relu_conv2_kernel,
        grid=(nt,),
        in_specs=[slab_spec(Cout), full2d(scale1), full2d(bias1), full2d(w2f)],
        out_specs=[slab_spec(Cout), stats_spec],
        out_shape=[jax.ShapeDtypeStruct((N * H * W, Cout), jnp.bfloat16),
                   jax.ShapeDtypeStruct((nt, 2, Cout), jnp.float32)],
        scratch_shapes=[pltpu.VMEM((NB, H + 2, W + 2, Cout), jnp.float32)],
        compiler_params=cp,
    )(y1, scale1, bias1, w2f)

    scale2, bias2 = _fold_bn(st2, jnp.float32(M_tile), count,
                             g2.astype(jnp.float32), b2.astype(jnp.float32))

    # ---- K3: bn2-apply + residual add + relu (pure bandwidth, lane-dense) ----
    WC = W * Cout
    NB3 = _pick_batch_block(N, H, W, Cout, 4 << 20) if batch_block is None else NB
    nt3 = N // NB3
    RB = NB3 * H
    y2_2d = y2.reshape(N * H, WC)            # row-major bitcast, no data move
    x_2d = x.reshape(N * H, WC)              # row-major bitcast, no data move
    scale2_wc = jnp.tile(scale2.reshape(-1), (W,)).reshape(1, WC)
    bias2_wc = jnp.tile(bias2.reshape(-1), (W,)).reshape(1, WC)

    out2d = pl.pallas_call(
        _bn_add_relu_kernel,
        grid=(nt3,),
        in_specs=[pl.BlockSpec((RB, WC), lambda i: (i, 0)),
                  pl.BlockSpec((RB, WC), lambda i: (i, 0)),
                  pl.BlockSpec((1, WC), lambda i: (0, 0)),
                  pl.BlockSpec((1, WC), lambda i: (0, 0))],
        out_specs=pl.BlockSpec((RB, WC), lambda i: (i, 0)),
        out_shape=jax.ShapeDtypeStruct((N * H, WC), jnp.float32),
        compiler_params=cp,
    )(y2_2d, x_2d, scale2_wc, bias2_wc)

    out_nhwc = out2d.reshape(N, H, W, Cout)
    return jnp.transpose(out_nhwc, (0, 3, 1, 2))


# --------------------------------------------------------------------------
# Pure-JAX reference (same math as PyTorch BasicBlock, training-mode BN)
# --------------------------------------------------------------------------
def _reference_forward(x_nchw, w1_hwio, g1, b1, w2_hwio, g2, b2):
    x = jnp.transpose(x_nchw, (0, 2, 3, 1)).astype(jnp.float32)
    dn = jax.lax.conv_dimension_numbers(x.shape, w1_hwio.shape,
                                        ("NHWC", "HWIO", "NHWC"))

    def bn(y, g, b):
        m = jnp.mean(y, axis=(0, 1, 2))
        v = jnp.mean((y - m) ** 2, axis=(0, 1, 2))
        return (y - m) * jax.lax.rsqrt(v + EPS) * g + b

    y = jax.lax.conv_general_dilated(x, w1_hwio, (1, 1), "SAME",
                                     dimension_numbers=dn)
    y = jnp.maximum(bn(y, g1, b1), 0.0)
    z = jax.lax.conv_general_dilated(y, w2_hwio, (1, 1), "SAME",
                                     dimension_numbers=dn)
    z = jnp.maximum(bn(z, g2, b2) + x, 0.0)
    return jnp.transpose(z, (0, 3, 1, 2))


if __name__ == "__main__":
    # Small shapes: BasicBlock(inplanes=8, planes=8, stride=1, downsample=None)
    N, C, H, W = 2, 8, 16, 16
    key = jax.random.PRNGKey(0)
    k_x, k_w1, k_w2, k_g1, k_b1, k_g2, k_b2 = jax.random.split(key, 7)

    x = jax.random.normal(k_x, (N, C, H, W), jnp.float32)
    fan_in = 9 * C
    w1 = jax.random.normal(k_w1, (3, 3, C, C), jnp.float32) * (2.0 / fan_in) ** 0.5
    w2 = jax.random.normal(k_w2, (3, 3, C, C), jnp.float32) * (2.0 / fan_in) ** 0.5
    g1 = 1.0 + 0.1 * jax.random.normal(k_g1, (C,), jnp.float32)
    b1 = 0.1 * jax.random.normal(k_b1, (C,), jnp.float32)
    g2 = 1.0 + 0.1 * jax.random.normal(k_g2, (C,), jnp.float32)
    b2 = 0.1 * jax.random.normal(k_b2, (C,), jnp.float32)

    out = jax.block_until_ready(basic_block_forward(x, w1, g1, b1, w2, g2, b2))
    ref = jax.block_until_ready(_reference_forward(x, w1, g1, b1, w2, g2, b2))

    assert out.shape == (N, C, H, W)
    # bf16 MXU operands + bf16 inter-kernel tensors -> bf16-appropriate tolerance
    # vs. the all-f32 reference.
    np.testing.assert_allclose(np.asarray(out), np.asarray(ref),
                               rtol=3e-2, atol=3e-2)
    print("KERNEL_OK")
</pallas_src>

<mosaic_0001>
module attributes {stable_mosaic.version = 11 : i64} {
  func.func @_conv1_kernel(%arg0: i32, %arg1: memref<1x16x16x8xf32, #tpu.memory_space<vmem>>, %arg2: memref<72x8xbf16, #tpu.memory_space<vmem>>, %arg3: memref<256x8xbf16, #tpu.memory_space<vmem>>, %arg4: memref<1x2x8xf32, #tpu.memory_space<vmem>>, %arg5: memref<1x18x18x8xf32, #tpu.memory_space<vmem>>) attributes {dimension_semantics = [#tpu.dimension_semantics<parallel>], iteration_bounds = array<i64: 2>, scalar_prefetch = 0 : i64, scratch_operands = 1 : i64, tpu.core_type = #tpu.core_type<tc>, window_params = [{transform_indices = @transform_0, window_bounds = array<i64: 1, 16, 16, 8>}, {pipeline_mode = #tpu.pipeline_mode<synchronous>, transform_indices = @transform_1, window_bounds = array<i64: 72, 8>}, {transform_indices = @transform_2, window_bounds = array<i64: 256, 8>}, {transform_indices = @transform_3, window_bounds = array<i64: 1, 2, 8>}]} {
    %c0 = arith.constant 0 : index
    %c0_0 = arith.constant 0 : index
    %c0_1 = arith.constant 0 : index
    %c0_2 = arith.constant 0 : index
    %0 = vector.load %arg1[%c0, %c0_0, %c0_1, %c0_2] : memref<1x16x16x8xf32, #tpu.memory_space<vmem>>, vector<1x16x16x8xf32>
    %cst = arith.constant 0.000000e+00 : f32
    %1 = vector.broadcast %cst : f32 to vector<1x1x18x8xf32>
    %cst_3 = arith.constant 0.000000e+00 : f32
    %2 = vector.broadcast %cst_3 : f32 to vector<1x16x1x8xf32>
    %c0_4 = arith.constant 0 : index
    %c0_5 = arith.constant 0 : index
    %c0_6 = arith.constant 0 : index
    %c0_7 = arith.constant 0 : index
    %3 = vector.load %arg5[%c0_4, %c0_5, %c0_6, %c0_7] : memref<1x18x18x8xf32, #tpu.memory_space<vmem>>, vector<1x1x18x8xf32>
    tpu.vector_store %arg5[%c0_4, %c0_5, %c0_6, %c0_7], %1 {strides = array<i32>} : memref<1x18x18x8xf32, #tpu.memory_space<vmem>>, vector<1x1x18x8xf32>,
    %c0_8 = arith.constant 0 : index
    %c17 = arith.constant 17 : index
    %c0_9 = arith.constant 0 : index
    %c0_10 = arith.constant 0 : index
    %4 = vector.load %arg5[%c0_8, %c17, %c0_9, %c0_10] : memref<1x18x18x8xf32, #tpu.memory_space<vmem>>, vector<1x1x18x8xf32>
    tpu.vector_store %arg5[%c0_8, %c17, %c0_9, %c0_10], %1 {strides = array<i32>} : memref<1x18x18x8xf32, #tpu.memory_space<vmem>>, vector<1x1x18x8xf32>,
    %c0_11 = arith.constant 0 : index
    %c1 = arith.constant 1 : index
    %c0_12 = arith.constant 0 : index
    %c0_13 = arith.constant 0 : index
    %5 = vector.load %arg5[%c0_11, %c1, %c0_12, %c0_13] : memref<1x18x18x8xf32, #tpu.memory_space<vmem>>, vector<1x16x1x8xf32>
    tpu.vector_store %arg5[%c0_11, %c1, %c0_12, %c0_13], %2 {strides = array<i32>} : memref<1x18x18x8xf32, #tpu.memory_space<vmem>>, vector<1x16x1x8xf32>,
    %c0_14 = arith.constant 0 : index
    %c1_15 = arith.constant 1 : index
    %c17_16 = arith.constant 17 : index
    %c0_17 = arith.constant 0 : index
    %6 = vector.load %arg5[%c0_14, %c1_15, %c17_16, %c0_17] : memref<1x18x18x8xf32, #tpu.memory_space<vmem>>, vector<1x16x1x8xf32>
    tpu.vector_store %arg5[%c0_14, %c1_15, %c17_16, %c0_17], %2 {strides = array<i32>} : memref<1x18x18x8xf32, #tpu.memory_space<vmem>>, vector<1x16x1x8xf32>,
    %c0_18 = arith.constant 0 : index
    %c1_19 = arith.constant 1 : index
    %c1_20 = arith.constant 1 : index
    %c0_21 = arith.constant 0 : index
    %7 = vector.load %arg5[%c0_18, %c1_19, %c1_20, %c0_21] : memref<1x18x18x8xf32, #tpu.memory_space<vmem>>, vector<1x16x16x8xf32>
    tpu.vector_store %arg5[%c0_18, %c1_19, %c1_20, %c0_21], %0 {strides = array<i32>} : memref<1x18x18x8xf32, #tpu.memory_space<vmem>>, vector<1x16x16x8xf32>,
    %c0_22 = arith.constant 0 : index
    %c0_23 = arith.constant 0 : index
    %c0_24 = arith.constant 0 : index
    %c0_25 = arith.constant 0 : index
    %8 = vector.load %arg5[%c0_22, %c0_23, %c0_24, %c0_25] : memref<1x18x18x8xf32, #tpu.memory_space<vmem>>, vector<1x16x16x8xf32>
    %9 = arith.truncf %8 : vector<1x16x16x8xf32> to vector<1x16x16x8xbf16>
    %c0_26 = arith.constant 0 : index
    %c0_27 = arith.constant 0 : index
    %c1_28 = arith.constant 1 : index
    %c0_29 = arith.constant 0 : index
    %10 = vector.load %arg5[%c0_26, %c0_27, %c1_28, %c0_29] : memref<1x18x18x8xf32, #tpu.memory_space<vmem>>, vector<1x16x16x8xf32>
    %11 = arith.truncf %10 : vector<1x16x16x8xf32> to vector<1x16x16x8xbf16>
    %c0_30 = arith.constant 0 : index
    %c0_31 = arith.constant 0 : index
    %c2 = arith.constant 2 : index
    %c0_32 = arith.constant 0 : index
    %12 = vector.load %arg5[%c0_30, %c0_31, %c2, %c0_32] : memref<1x18x18x8xf32, #tpu.memory_space<vmem>>, vector<1x16x16x8xf32>
    %13 = arith.truncf %12 : vector<1x16x16x8xf32> to vector<1x16x16x8xbf16>
    %c0_33 = arith.constant 0 : index
    %c1_34 = arith.constant 1 : index
    %c0_35 = arith.constant 0 : index
    %c0_36 = arith.constant 0 : index
    %14 = vector.load %arg5[%c0_33, %c1_34, %c0_35, %c0_36] : memref<1x18x18x8xf32, #tpu.memory_space<vmem>>, vector<1x16x16x8xf32>
    %15 = arith.truncf %14 : vector<1x16x16x8xf32> to vector<1x16x16x8xbf16>
    %c0_37 = arith.constant 0 : index
    %c1_38 = arith.constant 1 : index
    %c1_39 = arith.constant 1 : index
    %c0_40 = arith.constant 0 : index
    %16 = vector.load %arg5[%c0_37, %c1_38, %c1_39, %c0_40] : memref<1x18x18x8xf32, #tpu.memory_space<vmem>>, vector<1x16x16x8xf32>
    %17 = arith.truncf %16 : vector<1x16x16x8xf32> to vector<1x16x16x8xbf16>
    %c0_41 = arith.constant 0 : index
    %c1_42 = arith.constant 1 : index
    %c2_43 = arith.constant 2 : index
    %c0_44 = arith.constant 0 : index
    %18 = vector.load %arg5[%c0_41, %c1_42, %c2_43, %c0_44] : memref<1x18x18x8xf32, #tpu.memory_space<vmem>>, vector<1x16x16x8xf32>
    %19 = arith.truncf %18 : vector<1x16x16x8xf32> to vector<1x16x16x8xbf16>
    %c0_45 = arith.constant 0 : index
    %c2_46 = arith.constant 2 : index
    %c0_47 = arith.constant 0 : index
    %c0_48 = arith.constant 0 : index
    %20 = vector.load %arg5[%c0_45, %c2_46, %c0_47, %c0_48] : memref<1x18x18x8xf32, #tpu.memory_space<vmem>>, vector<1x16x16x8xf32>
    %21 = arith.truncf %20 : vector<1x16x16x8xf32> to vector<1x16x16x8xbf16>
    %c0_49 = arith.constant 0 : index
    %c2_50 = arith.constant 2 : index
    %c1_51 = arith.constant 1 : index
    %c0_52 = arith.constant 0 : index
    %22 = vector.load %arg5[%c0_49, %c2_50, %c1_51, %c0_52] : memref<1x18x18x8xf32, #tpu.memory_space<vmem>>, vector<1x16x16x8xf32>
    %23 = arith.truncf %22 : vector<1x16x16x8xf32> to vector<1x16x16x8xbf16>
    %c0_53 = arith.constant 0 : index
    %c2_54 = arith.constant 2 : index
    %c2_55 = arith.constant 2 : index
    %c0_56 = arith.constant 0 : index
    %24 = vector.load %arg5[%c0_53, %c2_54, %c2_55, %c0_56] : memref<1x18x18x8xf32, #tpu.memory_space<vmem>>, vector<1x16x16x8xf32>
    %25 = arith.truncf %24 : vector<1x16x16x8xf32> to vector<1x16x16x8xbf16>
    %26 = tpu.concatenate %9, %11, %13, %15, %17, %19, %21, %23, %25 in 3 : vector<1x16x16x8xbf16>, vector<1x16x16x8xbf16>, vector<1x16x16x8xbf16>, vector<1x16x16x8xbf16>, vector<1x16x16x8xbf16>, vector<1x16x16x8xbf16>, vector<1x16x16x8xbf16>, vector<1x16x16x8xbf16>, vector<1x16x16x8xbf16> -> vector<1x16x16x72xbf16>
    %27 = vector.shape_cast %26 : vector<1x16x16x72xbf16> to vector<256x72xbf16>
    %c0_57 = arith.constant 0 : index
    %c0_58 = arith.constant 0 : index
    %28 = vector.load %arg2[%c0_57, %c0_58] : memref<72x8xbf16, #tpu.memory_space<vmem>>, vector<72x8xbf16>
    %cst_59 = arith.constant dense<0.000000e+00> : vector<256x8xf32>
    %29 = tpu.matmul %27, %28, %cst_59 {dimension_numbers = #tpu.dot_dimension_numbers<[1], [0], [0], [1], [0, 0, 1, 1], [], []>} : vector<256x72xbf16>, vector<72x8xbf16>, vector<256x8xf32> -> vector<256x8xf32>
    %30 = arith.truncf %29 : vector<256x8xf32> to vector<256x8xbf16>
    %c0_60 = arith.constant 0 : index
    %c0_61 = arith.constant 0 : index
    %31 = vector.load %arg3[%c0_60, %c0_61] : memref<256x8xbf16, #tpu.memory_space<vmem>>, vector<256x8xbf16>
    tpu.vector_store %arg3[%c0_60, %c0_61], %30 {strides = array<i32>} : memref<256x8xbf16, #tpu.memory_space<vmem>>, vector<256x8xbf16>,
    %cst_62 = arith.constant dense<0.000000e+00> : vector<8xf32>
    %32 = vector.multi_reduction <add>, %29, %cst_62 [0] : vector<256x8xf32> to vector<8xf32>
    %33 = vector.shape_cast %32 : vector<8xf32> to vector<1x8xf32>
    %cst_63 = arith.constant 1.000000e+00 : f32
    %cst_64 = arith.constant 2.560000e+02 : f32
    %34 = arith.divf %cst_63, %cst_64 : f32
    %35 = vector.broadcast %34 : f32 to vector<1x8xf32>
    %36 = arith.mulf %33, %35 : vector<1x8xf32>
    %37 = vector.broadcast %36 : vector<1x8xf32> to vector<256x8xf32>
    %38 = arith.subf %29, %37 : vector<256x8xf32>
    %39 = arith.mulf %38, %38 : vector<256x8xf32>
    %cst_65 = arith.constant dense<0.000000e+00> : vector<8xf32>
    %40 = vector.multi_reduction <add>, %39, %cst_65 [0] : vector<256x8xf32> to vector<8xf32>
    %41 = vector.shape_cast %40 : vector<8xf32> to vector<1x8xf32>
    %42 = tpu.concatenate %33, %41 in 0 : vector<1x8xf32>, vector<1x8xf32> -> vector<2x8xf32>
    %43 = vector.shape_cast %42 : vector<2x8xf32> to vector<1x2x8xf32>
    %c0_66 = arith.constant 0 : index
    %c0_67 = arith.constant 0 : index
    %c0_68 = arith.constant 0 : index
    %44 = vector.load %arg4[%c0_66, %c0_67, %c0_68] : memref<1x2x8xf32, #tpu.memory_space<vmem>>, vector<1x2x8xf32>
    tpu.vector_store %arg4[%c0_66, %c0_67, %c0_68], %43 {strides = array<i32>} : memref<1x2x8xf32, #tpu.memory_space<vmem>>, vector<1x2x8xf32>,
    return
  }
  func.func @transform_0(%arg0: i32) -> (i32, i32, i32, i32) {
    %c0_i32 = arith.constant 0 : i32
    %c0_i32_0 = arith.constant 0 : i32
    %c0_i32_1 = arith.constant 0 : i32
    %c0_i32_2 = arith.constant 0 : i32
    return %arg0, %c0_i32, %c0_i32_0, %c0_i32_1 : i32, i32, i32, i32
  }
  func.func @transform_1(%arg0: i32) -> (i32, i32) {
    %c0_i32 = arith.constant 0 : i32
    %c0_i32_0 = arith.constant 0 : i32
    %c0_i32_1 = arith.constant 0 : i32
    return %c0_i32, %c0_i32_0 : i32, i32
  }
  func.func @transform_2(%arg0: i32) -> (i32, i32) {
    %c0_i32 = arith.constant 0 : i32
    %c0_i32_0 = arith.constant 0 : i32
    return %arg0, %c0_i32 : i32, i32
  }
  func.func @transform_3(%arg0: i32) -> (i32, i32, i32) {
    %c0_i32 = arith.constant 0 : i32
    %c0_i32_0 = arith.constant 0 : i32
    %c0_i32_1 = arith.constant 0 : i32
    return %arg0, %c0_i32, %c0_i32_0 : i32, i32, i32
  }
}

module attributes {stable_mosaic.version = 11 : i64} {
  func.func @_bn_relu_conv2_kernel(%arg0: i32, %arg1: memref<256x8xbf16, #tpu.memory_space<vmem>>, %arg2: memref<1x8xf32, #tpu.memory_space<vmem>>, %arg3: memref<1x8xf32, #tpu.memory_space<vmem>>, %arg4: memref<72x8xbf16, #tpu.memory_space<vmem>>, %arg5: memref<256x8xbf16, #tpu.memory_space<vmem>>, %arg6: memref<1x2x8xf32, #tpu.memory_space<vmem>>, %arg7: memref<1x18x18x8xf32, #tpu.memory_space<vmem>>) attributes {dimension_semantics = [#tpu.dimension_semantics<parallel>], iteration_bounds = array<i64: 2>, scalar_prefetch = 0 : i64, scratch_operands = 1 : i64, tpu.core_type = #tpu.core_type<tc>, window_params = [{transform_indices = @transform_0, window_bounds = array<i64: 256, 8>}, {pipeline_mode = #tpu.pipeline_mode<synchronous>, transform_indices = @transform_1, window_bounds = array<i64: 1, 8>}, {pipeline_mode = #tpu.pipeline_mode<synchronous>, transform_indices = @transform_2, window_bounds = array<i64: 1, 8>}, {pipeline_mode = #tpu.pipeline_mode<synchronous>, transform_indices = @transform_3, window_bounds = array<i64: 72, 8>}, {transform_indices = @transform_4, window_bounds = array<i64: 256, 8>}, {transform_indices = @transform_5, window_bounds = array<i64: 1, 2, 8>}]} {
    %c0 = arith.constant 0 : index
    %c0_0 = arith.constant 0 : index
    %0 = vector.load %arg1[%c0, %c0_0] : memref<256x8xbf16, #tpu.memory_space<vmem>>, vector<256x8xbf16>
    %1 = arith.extf %0 : vector<256x8xbf16> to vector<256x8xf32>
    %c0_1 = arith.constant 0 : index
    %c0_2 = arith.constant 0 : index
    %2 = vector.load %arg2[%c0_1, %c0_2] : memref<1x8xf32, #tpu.memory_space<vmem>>, vector<1x8xf32>
    %3 = vector.broadcast %2 : vector<1x8xf32> to vector<256x8xf32>
    %4 = arith.mulf %1, %3 : vector<256x8xf32>
    %c0_3 = arith.constant 0 : index
    %c0_4 = arith.constant 0 : index
    %5 = vector.load %arg3[%c0_3, %c0_4] : memref<1x8xf32, #tpu.memory_space<vmem>>, vector<1x8xf32>
    %6 = vector.broadcast %5 : vector<1x8xf32> to vector<256x8xf32>
    %7 = arith.addf %4, %6 : vector<256x8xf32>
    %cst = arith.constant 0.000000e+00 : f32
    %8 = vector.broadcast %cst : f32 to vector<256x8xf32>
    %9 = arith.maximumf %7, %8 : vector<256x8xf32>
    %10 = vector.shape_cast %9 : vector<256x8xf32> to vector<1x16x16x8xf32>
    %cst_5 = arith.constant 0.000000e+00 : f32
    %11 = vector.broadcast %cst_5 : f32 to vector<1x1x18x8xf32>
    %cst_6 = arith.constant 0.000000e+00 : f32
    %12 = vector.broadcast %cst_6 : f32 to vector<1x16x1x8xf32>
    %c0_7 = arith.constant 0 : index
    %c0_8 = arith.constant 0 : index
    %c0_9 = arith.constant 0 : index
    %c0_10 = arith.constant 0 : index
    %13 = vector.load %arg7[%c0_7, %c0_8, %c0_9, %c0_10] : memref<1x18x18x8xf32, #tpu.memory_space<vmem>>, vector<1x1x18x8xf32>
    tpu.vector_store %arg7[%c0_7, %c0_8, %c0_9, %c0_10], %11 {strides = array<i32>} : memref<1x18x18x8xf32, #tpu.memory_space<vmem>>, vector<1x1x18x8xf32>,
    %c0_11 = arith.constant 0 : index
    %c17 = arith.constant 17 : index
    %c0_12 = arith.constant 0 : index
    %c0_13 = arith.constant 0 : index
    %14 = vector.load %arg7[%c0_11, %c17, %c0_12, %c0_13] : memref<1x18x18x8xf32, #tpu.memory_space<vmem>>, vector<1x1x18x8xf32>
    tpu.vector_store %arg7[%c0_11, %c17, %c0_12, %c0_13], %11 {strides = array<i32>} : memref<1x18x18x8xf32, #tpu.memory_space<vmem>>, vector<1x1x18x8xf32>,
    %c0_14 = arith.constant 0 : index
    %c1 = arith.constant 1 : index
    %c0_15 = arith.constant 0 : index
    %c0_16 = arith.constant 0 : index
    %15 = vector.load %arg7[%c0_14, %c1, %c0_15, %c0_16] : memref<1x18x18x8xf32, #tpu.memory_space<vmem>>, vector<1x16x1x8xf32>
    tpu.vector_store %arg7[%c0_14, %c1, %c0_15, %c0_16], %12 {strides = array<i32>} : memref<1x18x18x8xf32, #tpu.memory_space<vmem>>, vector<1x16x1x8xf32>,
    %c0_17 = arith.constant 0 : index
    %c1_18 = arith.constant 1 : index
    %c17_19 = arith.constant 17 : index
    %c0_20 = arith.constant 0 : index
    %16 = vector.load %arg7[%c0_17, %c1_18, %c17_19, %c0_20] : memref<1x18x18x8xf32, #tpu.memory_space<vmem>>, vector<1x16x1x8xf32>
    tpu.vector_store %arg7[%c0_17, %c1_18, %c17_19, %c0_20], %12 {strides = array<i32>} : memref<1x18x18x8xf32, #tpu.memory_space<vmem>>, vector<1x16x1x8xf32>,
    %c0_21 = arith.constant 0 : index
    %c1_22 = arith.constant 1 : index
    %c1_23 = arith.constant 1 : index
    %c0_24 = arith.constant 0 : index
    %17 = vector.load %arg7[%c0_21, %c1_22, %c1_23, %c0_24] : memref<1x18x18x8xf32, #tpu.memory_space<vmem>>, vector<1x16x16x8xf32>
    tpu.vector_store %arg7[%c0_21, %c1_22, %c1_23, %c0_24], %10 {strides = array<i32>} : memref<1x18x18x8xf32, #tpu.memory_space<vmem>>, vector<1x16x16x8xf32>,
    %c0_25 = arith.constant 0 : index
    %c0_26 = arith.constant 0 : index
    %c0_27 = arith.constant 0 : index
    %c0_28 = arith.constant 0 : index
    %18 = vector.load %arg7[%c0_25, %c0_26, %c0_27, %c0_28] : memref<1x18x18x8xf32, #tpu.memory_space<vmem>>, vector<1x16x16x8xf32>
    %19 = arith.truncf %18 : vector<1x16x16x8xf32> to vector<1x16x16x8xbf16>
    %c0_29 = arith.constant 0 : index
    %c0_30 = arith.constant 0 : index
    %c1_31 = arith.constant 1 : index
    %c0_32 = arith.constant 0 : index
    %20 = vector.load %arg7[%c0_29, %c0_30, %c1_31, %c0_32] : memref<1x18x18x8xf32, #tpu.memory_space<vmem>>, vector<1x16x16x8xf32>
    %21 = arith.truncf %20 : vector<1x16x16x8xf32> to vector<1x16x16x8xbf16>
    %c0_33 = arith.constant 0 : index
    %c0_34 = arith.constant 0 : index
    %c2 = arith.constant 2 : index
    %c0_35 = arith.constant 0 : index
    %22 = vector.load %arg7[%c0_33, %c0_34, %c2, %c0_35] : memref<1x18x18x8xf32, #tpu.memory_space<vmem>>, vector<1x16x16x8xf32>
    %23 = arith.truncf %22 : vector<1x16x16x8xf32> to vector<1x16x16x8xbf16>
    %c0_36 = arith.constant 0 : index
    %c1_37 = arith.constant 1 : index
    %c0_38 = arith.constant 0 : index
    %c0_39 = arith.constant 0 : index
    %24 = vector.load %arg7[%c0_36, %c1_37, %c0_38, %c0_39] : memref<1x18x18x8xf32, #tpu.memory_space<vmem>>, vector<1x16x16x8xf32>
    %25 = arith.truncf %24 : vector<1x16x16x8xf32> to vector<1x16x16x8xbf16>
    %c0_40 = arith.constant 0 : index
    %c1_41 = arith.constant 1 : index
    %c1_42 = arith.constant 1 : index
    %c0_43 = arith.constant 0 : index
    %26 = vector.load %arg7[%c0_40, %c1_41, %c1_42, %c0_43] : memref<1x18x18x8xf32, #tpu.memory_space<vmem>>, vector<1x16x16x8xf32>
    %27 = arith.truncf %26 : vector<1x16x16x8xf32> to vector<1x16x16x8xbf16>
    %c0_44 = arith.constant 0 : index
    %c1_45 = arith.constant 1 : index
    %c2_46 = arith.constant 2 : index
    %c0_47 = arith.constant 0 : index
    %28 = vector.load %arg7[%c0_44, %c1_45, %c2_46, %c0_47] : memref<1x18x18x8xf32, #tpu.memory_space<vmem>>, vector<1x16x16x8xf32>
    %29 = arith.truncf %28 : vector<1x16x16x8xf32> to vector<1x16x16x8xbf16>
    %c0_48 = arith.constant 0 : index
    %c2_49 = arith.constant 2 : index
    %c0_50 = arith.constant 0 : index
    %c0_51 = arith.constant 0 : index
    %30 = vector.load %arg7[%c0_48, %c2_49, %c0_50, %c0_51] : memref<1x18x18x8xf32, #tpu.memory_space<vmem>>, vector<1x16x16x8xf32>
    %31 = arith.truncf %30 : vector<1x16x16x8xf32> to vector<1x16x16x8xbf16>
    %c0_52 = arith.constant 0 : index
    %c2_53 = arith.constant 2 : index
    %c1_54 = arith.constant 1 : index
    %c0_55 = arith.constant 0 : index
    %32 = vector.load %arg7[%c0_52, %c2_53, %c1_54, %c0_55] : memref<1x18x18x8xf32, #tpu.memory_space<vmem>>, vector<1x16x16x8xf32>
    %33 = arith.truncf %32 : vector<1x16x16x8xf32> to vector<1x16x16x8xbf16>
    %c0_56 = arith.constant 0 : index
    %c2_57 = arith.constant 2 : index
    %c2_58 = arith.constant 2 : index
    %c0_59 = arith.constant 0 : index
    %34 = vector.load %arg7[%c0_56, %c2_57, %c2_58, %c0_59] : memref<1x18x18x8xf32, #tpu.memory_space<vmem>>, vector<1x16x16x8xf32>
    %35 = arith.truncf %34 : vector<1x16x16x8xf32> to vector<1x16x16x8xbf16>
    %36 = tpu.concatenate %19, %21, %23, %25, %27, %29, %31, %33, %35 in 3 : vector<1x16x16x8xbf16>, vector<1x16x16x8xbf16>, vector<1x16x16x8xbf16>, vector<1x16x16x8xbf16>, vector<1x16x16x8xbf16>, vector<1x16x16x8xbf16>, vector<1x16x16x8xbf16>, vector<1x16x16x8xbf16>, vector<1x16x16x8xbf16> -> vector<1x16x16x72xbf16>
    %37 = vector.shape_cast %36 : vector<1x16x16x72xbf16> to vector<256x72xbf16>
    %c0_60 = arith.constant 0 : index
    %c0_61 = arith.constant 0 : index
    %38 = vector.load %arg4[%c0_60, %c0_61] : memref<72x8xbf16, #tpu.memory_space<vmem>>, vector<72x8xbf16>
    %cst_62 = arith.constant dense<0.000000e+00> : vector<256x8xf32>
    %39 = tpu.matmul %37, %38, %cst_62 {dimension_numbers = #tpu.dot_dimension_numbers<[1], [0], [0], [1], [0, 0, 1, 1], [], []>} : vector<256x72xbf16>, vector<72x8xbf16>, vector<256x8xf32> -> vector<256x8xf32>
    %40 = arith.truncf %39 : vector<256x8xf32> to vector<256x8xbf16>
    %c0_63 = arith.constant 0 : index
    %c0_64 = arith.constant 0 : index
    %41 = vector.load %arg5[%c0_63, %c0_64] : memref<256x8xbf16, #tpu.memory_space<vmem>>, vector<256x8xbf16>
    tpu.vector_store %arg5[%c0_63, %c0_64], %40 {strides = array<i32>} : memref<256x8xbf16, #tpu.memory_space<vmem>>, vector<256x8xbf16>,
    %cst_65 = arith.constant dense<0.000000e+00> : vector<8xf32>
    %42 = vector.multi_reduction <add>, %39, %cst_65 [0] : vector<256x8xf32> to vector<8xf32>
    %43 = vector.shape_cast %42 : vector<8xf32> to vector<1x8xf32>
    %cst_66 = arith.constant 1.000000e+00 : f32
    %cst_67 = arith.constant 2.560000e+02 : f32
    %44 = arith.divf %cst_66, %cst_67 : f32
    %45 = vector.broadcast %44 : f32 to vector<1x8xf32>
    %46 = arith.mulf %43, %45 : vector<1x8xf32>
    %47 = vector.broadcast %46 : vector<1x8xf32> to vector<256x8xf32>
    %48 = arith.subf %39, %47 : vector<256x8xf32>
    %49 = arith.mulf %48, %48 : vector<256x8xf32>
    %cst_68 = arith.constant dense<0.000000e+00> : vector<8xf32>
    %50 = vector.multi_reduction <add>, %49, %cst_68 [0] : vector<256x8xf32> to vector<8xf32>
    %51 = vector.shape_cast %50 : vector<8xf32> to vector<1x8xf32>
    %52 = tpu.concatenate %43, %51 in 0 : vector<1x8xf32>, vector<1x8xf32> -> vector<2x8xf32>
    %53 = vector.shape_cast %52 : vector<2x8xf32> to vector<1x2x8xf32>
    %c0_69 = arith.constant 0 : index
    %c0_70 = arith.constant 0 : index
    %c0_71 = arith.constant 0 : index
    %54 = vector.load %arg6[%c0_69, %c0_70, %c0_71] : memref<1x2x8xf32, #tpu.memory_space<vmem>>, vector<1x2x8xf32>
    tpu.vector_store %arg6[%c0_69, %c0_70, %c0_71], %53 {strides = array<i32>} : memref<1x2x8xf32, #tpu.memory_space<vmem>>, vector<1x2x8xf32>,
    return
  }
  func.func @transform_0(%arg0: i32) -> (i32, i32) {
    %c0_i32 = arith.constant 0 : i32
    %c0_i32_0 = arith.constant 0 : i32
    return %arg0, %c0_i32 : i32, i32
  }
  func.func @transform_1(%arg0: i32) -> (i32, i32) {
    %c0_i32 = arith.constant 0 : i32
    %c0_i32_0 = arith.constant 0 : i32
    %c0_i32_1 = arith.constant 0 : i32
    return %c0_i32, %c0_i32_0 : i32, i32
  }
  func.func @transform_2(%arg0: i32) -> (i32, i32) {
    %c0_i32 = arith.constant 0 : i32
    %c0_i32_0 = arith.constant 0 : i32
    %c0_i32_1 = arith.constant 0 : i32
    return %c0_i32, %c0_i32_0 : i32, i32
  }
  func.func @transform_3(%arg0: i32) -> (i32, i32) {
    %c0_i32 = arith.constant 0 : i32
    %c0_i32_0 = arith.constant 0 : i32
    %c0_i32_1 = arith.constant 0 : i32
    return %c0_i32, %c0_i32_0 : i32, i32
  }
  func.func @transform_4(%arg0: i32) -> (i32, i32) {
    %c0_i32 = arith.constant 0 : i32
    %c0_i32_0 = arith.constant 0 : i32
    return %arg0, %c0_i32 : i32, i32
  }
  func.func @transform_5(%arg0: i32) -> (i32, i32, i32) {
    %c0_i32 = arith.constant 0 : i32
    %c0_i32_0 = arith.constant 0 : i32
    %c0_i32_1 = arith.constant 0 : i32
    return %arg0, %c0_i32, %c0_i32_0 : i32, i32, i32
  }
}

module attributes {stable_mosaic.version = 11 : i64} {
  func.func @_bn_add_relu_kernel(%arg0: i32, %arg1: memref<16x128xbf16, #tpu.memory_space<vmem>>, %arg2: memref<16x128xf32, #tpu.memory_space<vmem>>, %arg3: memref<1x128xf32, #tpu.memory_space<vmem>>, %arg4: memref<1x128xf32, #tpu.memory_space<vmem>>, %arg5: memref<16x128xf32, #tpu.memory_space<vmem>>) attributes {dimension_semantics = [#tpu.dimension_semantics<parallel>], iteration_bounds = array<i64: 2>, scalar_prefetch = 0 : i64, scratch_operands = 0 : i64, tpu.core_type = #tpu.core_type<tc>, window_params = [{transform_indices = @transform_0, window_bounds = array<i64: 16, 128>}, {transform_indices = @transform_1, window_bounds = array<i64: 16, 128>}, {pipeline_mode = #tpu.pipeline_mode<synchronous>, transform_indices = @transform_2, window_bounds = array<i64: 1, 128>}, {pipeline_mode = #tpu.pipeline_mode<synchronous>, transform_indices = @transform_3, window_bounds = array<i64: 1, 128>}, {transform_indices = @transform_4, window_bounds = array<i64: 16, 128>}]} {
    %c0 = arith.constant 0 : index
    %c0_0 = arith.constant 0 : index
    %0 = vector.load %arg1[%c0, %c0_0] : memref<16x128xbf16, #tpu.memory_space<vmem>>, vector<16x128xbf16>
    %1 = arith.extf %0 : vector<16x128xbf16> to vector<16x128xf32>
    %c0_1 = arith.constant 0 : index
    %c0_2 = arith.constant 0 : index
    %2 = vector.load %arg3[%c0_1, %c0_2] : memref<1x128xf32, #tpu.memory_space<vmem>>, vector<1x128xf32>
    %3 = vector.broadcast %2 : vector<1x128xf32> to vector<16x128xf32>
    %4 = arith.mulf %1, %3 : vector<16x128xf32>
    %c0_3 = arith.constant 0 : index
    %c0_4 = arith.constant 0 : index
    %5 = vector.load %arg4[%c0_3, %c0_4] : memref<1x128xf32, #tpu.memory_space<vmem>>, vector<1x128xf32>
    %6 = vector.broadcast %5 : vector<1x128xf32> to vector<16x128xf32>
    %7 = arith.addf %4, %6 : vector<16x128xf32>
    %c0_5 = arith.constant 0 : index
    %c0_6 = arith.constant 0 : index
    %8 = vector.load %arg2[%c0_5, %c0_6] : memref<16x128xf32, #tpu.memory_space<vmem>>, vector<16x128xf32>
    %9 = arith.addf %7, %8 : vector<16x128xf32>
    %cst = arith.constant 0.000000e+00 : f32
    %10 = vector.broadcast %cst : f32 to vector<16x128xf32>
    %11 = arith.maximumf %9, %10 : vector<16x128xf32>
    %c0_7 = arith.constant 0 : index
    %c0_8 = arith.constant 0 : index
    %12 = vector.load %arg5[%c0_7, %c0_8] : memref<16x128xf32, #tpu.memory_space<vmem>>, vector<16x128xf32>
    tpu.vector_store %arg5[%c0_7, %c0_8], %11 {strides = array<i32>} : memref<16x128xf32, #tpu.memory_space<vmem>>, vector<16x128xf32>,
    return
  }
  func.func @transform_0(%arg0: i32) -> (i32, i32) {
    %c0_i32 = arith.constant 0 : i32
    %c0_i32_0 = arith.constant 0 : i32
    return %arg0, %c0_i32 : i32, i32
  }
  func.func @transform_1(%arg0: i32) -> (i32, i32) {
    %c0_i32 = arith.constant 0 : i32
    %c0_i32_0 = arith.constant 0 : i32
    return %arg0, %c0_i32 : i32, i32
  }
  func.func @transform_2(%arg0: i32) -> (i32, i32) {
    %c0_i32 = arith.constant 0 : i32
    %c0_i32_0 = arith.constant 0 : i32
    %c0_i32_1 = arith.constant 0 : i32
    return %c0_i32, %c0_i32_0 : i32, i32
  }
  func.func @transform_3(%arg0: i32) -> (i32, i32) {
    %c0_i32 = arith.constant 0 : i32
    %c0_i32_0 = arith.constant 0 : i32
    %c0_i32_1 = arith.constant 0 : i32
    return %c0_i32, %c0_i32_0 : i32, i32
  }
  func.func @transform_4(%arg0: i32) -> (i32, i32) {
    %c0_i32 = arith.constant 0 : i32
    %c0_i32_0 = arith.constant 0 : i32
    return %arg0, %c0_i32 : i32, i32
  }
}

</mosaic_0001>

<llo_original>
// kernel: tile.10
$region0: #{tile.10}
  #allocation0 [shape = 's32[1]{0}', space=sflag, size = 0x4, scoped, tag = 'scoped memory for tile.10']
  %s0 = inlined_call_operand.vmem [shape: f32[8], index: 0, kind: input, shape index: {}]
  %s1 = inlined_call_operand.vmem [shape: f32[16,8], index: 1, kind: output, shape index: {}]
  // Predicated region
  $region2: #{tile.10} parent=0 // pred_check
    _
  $region3: #{tile.10} parent=0 // pred_check_branch
    %3 = sbr.rel (0) target = $region5
  $region4: #{tile.10} parent=0 // pred_region
    _
  $region5: #{tile.10} parent=0 // pred_fallthru
    _
  %v4 = vld [vmem:[%s0] ss:$0 sm:$0xff]
  %5 = vst [vmem:[%s1] sm:$0xff] %v4
  %s6 = scalar_lea.vmem %s1, 8
  %7 = vst [vmem:[%s6] sm:$0xff] %v4

// kernel: tile.11
$region0: #{tile.11}
  %s0 = inlined_call_operand.vmem [shape: f32[16,8], index: 0, kind: input, shape index: {}]
  %s1 = inlined_call_operand.vmem [shape: f32[1,128], index: 1, kind: output, shape index: {}]
  $region1: #{tile.11} parent=0
    #allocation0 [shape = 'u8[4096]{0}', space=vmem, size = 0x1000, scoped, tag = 'scoped mem for output reshape']
    %v2 = vld [vmem:[%s0] sm:$0x1]
    %vm3 = vcmask 64512
    %4 = vst.msk [vmem:[#allocation0] sm:$0x1] %vm3, %v2
    %s5 = scalar_lea.vmem %s0, 15
    %v6 = vld [vmem:[%s5] sm:$0x1]
    %7 = vrot.lane.b32.xlu0 %v6, 120
    %v8 = vpop.permute.xlu0 %7
    %vm9 = vcmask 1048512
    %10 = vst.msk [vmem:[#allocation0] sm:$0x1] %vm9, %v8
    %s11 = scalar_lea.vmem %s0, 14
    %v12 = vld [vmem:[%s11] sm:$0x1]
    %13 = vrot.lane.b32.xlu0 %v12, 112
    %v14 = vpop.permute.xlu0 %13
    %vm15 = vcmask 982912
    %16 = vst.msk [vmem:[#allocation0] sm:$0x1] %vm15, %v14
    %s17 = scalar_lea.vmem %s0, 13
    %v18 = vld [vmem:[%s17] sm:$0x1]
    %19 = vrot.lane.b32.xlu0 %v18, 104
    %v20 = vpop.permute.xlu0 %19
    %vm21 = vcmask 917312
    %22 = vst.msk [vmem:[#allocation0] sm:$0x1] %vm21, %v20
    %s23 = scalar_lea.vmem %s0, 12
    %v24 = vld [vmem:[%s23] sm:$0x1]
    %25 = vrot.lane.b32.xlu0 %v24, 96
    %v26 = vpop.permute.xlu0 %25
    %vm27 = vcmask 851712
    %28 = vst.msk [vmem:[#allocation0] sm:$0x1] %vm27, %v26
    %s29 = scalar_lea.vmem %s0, 11
    %v30 = vld [vmem:[%s29] sm:$0x1]
    %31 = vrot.lane.b32.xlu0 %v30, 88
    %v32 = vpop.permute.xlu0 %31
    %vm33 = vcmask 786112
    %34 = vst.msk [vmem:[#allocation0] sm:$0x1] %vm33, %v32
    %s35 = scalar_lea.vmem %s0, 10
    %v36 = vld [vmem:[%s35] sm:$0x1]
    %37 = vrot.lane.b32.xlu0 %v36, 80
    %v38 = vpop.permute.xlu0 %37
    %vm39 = vcmask 720512
    %40 = vst.msk [vmem:[#allocation0] sm:$0x1] %vm39, %v38
    %s41 = scalar_lea.vmem %s0, 9
    %v42 = vld [vmem:[%s41] sm:$0x1]
    %43 = vrot.lane.b32.xlu0 %v42, 72
    %v44 = vpop.permute.xlu0 %43
    %vm45 = vcmask 654912
    %46 = vst.msk [vmem:[#allocation0] sm:$0x1] %vm45, %v44
    %s47 = scalar_lea.vmem %s0, 8
    %v48 = vld [vmem:[%s47] sm:$0x1]
    %49 = vrot.lane.b32.xlu0 %v48, 64
    %v50 = vpop.permute.xlu0 %49
    %vm51 = vcmask 589312
    %52 = vst.msk [vmem:[#allocation0] sm:$0x1] %vm51, %v50
    %s53 = scalar_lea.vmem %s0, 7
    %v54 = vld [vmem:[%s53] sm:$0x1]
    %55 = vrot.lane.b32.xlu0 %v54, 56
    %v56 = vpop.permute.xlu0 %55
    %vm57 = vcmask 523712
    %58 = vst.msk [vmem:[#allocation0] sm:$0x1] %vm57, %v56
    %s59 = scalar_lea.vmem %s0, 6
    %v60 = vld [vmem:[%s59] sm:$0x1]
    %61 = vrot.lane.b32.xlu0 %v60, 48
    %v62 = vpop.permute.xlu0 %61
    %vm63 = vcmask 458112
    %64 = vst.msk [vmem:[#allocation0] sm:$0x1] %vm63, %v62
    %s65 = scalar_lea.vmem %s0, 5
    %v66 = vld [vmem:[%s65] sm:$0x1]
    %67 = vrot.lane.b32.xlu0 %v66, 40
    %v68 = vpop.permute.xlu0 %67
    %vm69 = vcmask 392512
    %70 = vst.msk [vmem:[#allocation0] sm:$0x1] %vm69, %v68
    %s71 = scalar_lea.vmem %s0, 4
    %v72 = vld [vmem:[%s71] sm:$0x1]
    %73 = vrot.lane.b32.xlu0 %v72, 32
    %v74 = vpop.permute.xlu0 %73
    %vm75 = vcmask 326912
    %76 = vst.msk [vmem:[#allocation0] sm:$0x1] %vm75, %v74
    %s77 = scalar_lea.vmem %s0, 3
    %v78 = vld [vmem:[%s77] sm:$0x1]
    %79 = vrot.lane.b32.xlu0 %v78, 24
    %v80 = vpop.permute.xlu0 %79
    %vm81 = vcmask 261312
    %82 = vst.msk [vmem:[#allocation0] sm:$0x1] %vm81, %v80
    %s83 = scalar_lea.vmem %s0, 2
    %v84 = vld [vmem:[%s83] sm:$0x1]
    %85 = vrot.lane.b32.xlu0 %v84, 16
    %v86 = vpop.permute.xlu0 %85
    %vm87 = vcmask 195712
    %88 = vst.msk [vmem:[#allocation0] sm:$0x1] %vm87, %v86
    %s89 = scalar_lea.vmem %s0, 1
    %v90 = vld [vmem:[%s89] sm:$0x1]
    %91 = vrot.lane.b32.xlu0 %v90, 8
    %v92 = vpop.permute.xlu0 %91
    %vm93 = vcmask 130112
    %94 = vst.msk [vmem:[#allocation0] sm:$0x1] %vm93, %v92
    %s96 = sshll.u32 1, 1
    %s97 = ssub.s32 %s96, 1
    %v99 = vld [vmem:[#allocation0] sm:%s97]
    %s100 = sshll.u32 1, 1
    %s101 = ssub.s32 %s100, 1
    %102 = vst [vmem:[%s1] sm:%s101] %v99

// kernel: basic_block_forward.3
$region0: #{basic_block_forward.3}
  #allocation0 [shape = 'u32[]', space=smem, size = 0x4, offset = 0x4, fixed_abs, tag = 'smem constant byte address 0x4 - core index']
  #allocation1 [shape = 'u32[144,128]{1,0:T(1,128)}', space=vmem, size = 0x12000, scoped, tag = 'internal scratch']
  #allocation2 [shape = 'f32[1,18,18,8]{3,2,1,0:T(8,128)}', space=vmem, size = 0x36000, scoped, tag = 'scratch operand']
  %s0 = inlined_call_operand.vmem [shape: f32[2,16,16,8], index: 0, kind: input, shape index: {}]
  %s1 = inlined_call_operand.vmem [shape: bf16[72,8], index: 1, kind: input, shape index: {}]
  %s2 = inlined_call_operand.vmem [shape: bf16[512,8], index: 2, kind: output, shape index: {0}]
  %s3 = inlined_call_operand.vmem [shape: f32[2,2,8], index: 3, kind: output, shape index: {1}]
  %4 = xla_tuple %s2, %s3
  %s5 = sld [smem:[#allocation0]]
  $region49: #{basic_block_forward.3} parent=0
    _
  %s7 = ssub.s32 1, %s5
  %s8 = scalar_select 0, %s7, %s5
  loop: start=0, step=1, limit=4
  $region2: #{basic_block_forward.3} parent=0 // loop_pre_header
    _
  $region3: #{basic_block_forward.3} parent=0 // loop_header
    %s10 = sphi 0, %s14
    %p11 = scmp.ge.s32.totalorder %s10, 4
    %s20 = sphi 0, %s22
    %s23 = sphi 0, %s20
    %s24 = sphi 0, %s23
    %s40 = sphi 0, %s24
    %s44 = sphi 0, %s44
    %s46 = sphi 0, %s44
    %s47 = sphi 0, %s46
    %s61 = sphi 0, %s47
    %s67 = sphi 0, %s69
    %s70 = sphi 0, %s67
    %s71 = sphi 0, %s70
    %s87 = sphi 0, %s71
    %s93 = sphi 0, %s95
    %s96 = sphi 0, %s93
    %s97 = sphi 0, %s96
    %s113 = sphi 0, %s97
  $region4: #{basic_block_forward.3} parent=0 // loop_header_branch
    %13 = sbr.rel (%p11) target = $region8
  $region5: #{basic_block_forward.3} parent=0 // loop_body
    %s15 = ssub.s32 %s10, 1
    %s16 = ssub.s32 %s10, 2
    %s17 = sadd.s32 %s10, 1
    %s18 = ssub.s32 %s10, %s17
    %p19 = scmp.eq.s32.totalorder %s18, 0
    %s21 = sadd.s32 %s20, 1
    %s22 = scalar_select %p19, %s20, %s21
    %p25 = pneg %p19
    %p26 = scmp.eq.s32.totalorder %s10, 1
    %p27 = por %p25, %p26
    %p28 = scmp.ne.s32.totalorder %s20, %s23
    %p29 = scmp.eq.s32.totalorder %s10, 0
    %p30 = por %p28, %p29
    %p31 = scmp.ne.s32.totalorder %s20, %s23
    %p32 = scmp.eq.s32.totalorder %s15, 1
    %p33 = por %p31, %p32
    %p34 = scmp.ne.s32.totalorder %s23, %s24
    %p35 = scmp.eq.s32.totalorder %s15, 0
    %p36 = por %p34, %p35
    %p37 = scmp.ne.s32.totalorder %s23, %s24
    %p38 = scmp.eq.s32.totalorder %s16, 1
    %p39 = por %p37, %p38
    %p41 = scmp.ne.s32.totalorder %s24, %s40
    %p42 = scmp.eq.s32.totalorder %s16, 0
    %p43 = por %p41, %p42
    %s45 = sadd.s32 %s44, 1
    %p48 = scmp.eq.s32.totalorder %s10, 1
    %p49 = scmp.ne.s32.totalorder %s44, %s46
    %p50 = scmp.eq.s32.totalorder %s10, 0
    %p51 = por %p49, %p50
    %p52 = scmp.ne.s32.totalorder %s44, %s46
    %p53 = scmp.eq.s32.totalorder %s15, 1
    %p54 = por %p52, %p53
    %p55 = scmp.ne.s32.totalorder %s46, %s47
    %p56 = scmp.eq.s32.totalorder %s15, 0
    %p57 = por %p55, %p56
    %p58 = scmp.ne.s32.totalorder %s46, %s47
    %p59 = scmp.eq.s32.totalorder %s16, 1
    %p60 = por %p58, %p59
    %p62 = scmp.ne.s32.totalorder %s47, %s61
    %p63 = scmp.eq.s32.totalorder %s16, 0
    %p64 = por %p62, %p63
    %s65 = ssub.s32 %s10, %s17
    %p66 = scmp.eq.s32.totalorder %s65, 0
    %s68 = sadd.s32 %s67, 1
    %s69 = scalar_select %p66, %s67, %s68
    %p72 = pneg %p66
    %p73 = scmp.eq.s32.totalorder %s10, 1
    %p74 = por %p72, %p73
    %p75 = scmp.ne.s32.totalorder %s67, %s70
    %p76 = scmp.eq.s32.totalorder %s10, 0
    %p77 = por %p75, %p76
    %p78 = scmp.ne.s32.totalorder %s67, %s70
    %p79 = scmp.eq.s32.totalorder %s15, 1
    %p80 = por %p78, %p79
    %p81 = scmp.ne.s32.totalorder %s70, %s71
    %p82 = scmp.eq.s32.totalorder %s15, 0
    %p83 = por %p81, %p82
    %p84 = scmp.ne.s32.totalorder %s70, %s71
    %p85 = scmp.eq.s32.totalorder %s16, 1
    %p86 = por %p84, %p85
    %p88 = scmp.ne.s32.totalorder %s71, %s87
    %p89 = scmp.eq.s32.totalorder %s16, 0
    %p90 = por %p88, %p89
    %s91 = ssub.s32 %s10, %s17
    %p92 = scmp.eq.s32.totalorder %s91, 0
    %s94 = sadd.s32 %s93, 1
    %s95 = scalar_select %p92, %s93, %s94
    %p98 = pneg %p92
    %p99 = scmp.eq.s32.totalorder %s10, 1
    %p100 = por %p98, %p99
    %p101 = scmp.ne.s32.totalorder %s93, %s96
    %p102 = scmp.eq.s32.totalorder %s10, 0
    %p103 = por %p101, %p102
    %p104 = scmp.ne.s32.totalorder %s93, %s96
    %p105 = scmp.eq.s32.totalorder %s15, 1
    %p106 = por %p104, %p105
    %p107 = scmp.ne.s32.totalorder %s96, %s97
    %p108 = scmp.eq.s32.totalorder %s15, 0
    %p109 = por %p107, %p108
    %p110 = scmp.ne.s32.totalorder %s96, %s97
    %p111 = scmp.eq.s32.totalorder %s16, 1
    %p112 = por %p110, %p111
    %p114 = scmp.ne.s32.totalorder %s97, %s113
    %p115 = scmp.eq.s32.totalorder %s16, 0
    %p116 = por %p114, %p115
    %p117 = scmp.le.s32.totalorder 1, %s10
    %p118 = scmp.lt.s32.totalorder %s10, 3
    %p119 = pnand %p117, %p118
    %p120 = pneg %p119
    // Predicated region
    $region9: #{basic_block_forward.3} parent=5 // pred_check
      _
    $region10: #{basic_block_forward.3} parent=5 // pred_check_branch
      %122 = sbr.rel (%p119) target = $region12
    $region11: #{basic_block_forward.3} parent=5 // pred_region
      %s123 = ssub.s32 %s10, 1
      // Predicated region
      $region13: #{basic_block_forward.3} parent=11 // pred_check
        %p124 = pneg %p57
      $region14: #{basic_block_forward.3} parent=11 // pred_check_branch
        %126 = sbr.rel (%p124) target = $region16
      $region15: #{basic_block_forward.3} parent=11 // pred_region
        _
      $region16: #{basic_block_forward.3} parent=11 // pred_fallthru
        _
    $region12: #{basic_block_forward.3} parent=5 // pred_fallthru
      _
    %p127 = scmp.lt.s32.totalorder %s10, 2
    // Predicated region
    $region17: #{basic_block_forward.3} parent=5 // pred_check
      %p128 = pneg %p127
    $region18: #{basic_block_forward.3} parent=5 // pred_check_branch
      %130 = sbr.rel (%p128) target = $region20
    $region19: #{basic_block_forward.3} parent=5 // pred_region
      // Predicated region
      $region21: #{basic_block_forward.3} parent=19 // pred_check
        %p131 = pneg %p30
      $region22: #{basic_block_forward.3} parent=19 // pred_check_branch
        %133 = sbr.rel (%p131) target = $region24
      $region23: #{basic_block_forward.3} parent=19 // pred_region
        %p134 = scmp.lt.s32.totalorder %s10, 1
        %s135 = scalar_select %p134, %s10, 1
        %s136 = smul.addr %s135, 32
        %s137 = smul.addr %s136, 8
        %s138 = scalar_lea.vmem %s0, %s137
      $region24: #{basic_block_forward.3} parent=19 // pred_fallthru
        _
    $region20: #{basic_block_forward.3} parent=5 // pred_fallthru
      _
    %p139 = scmp.le.s32.totalorder 1, %s10
    %p140 = scmp.lt.s32.totalorder %s10, 3
    %p141 = pnand %p139, %p140
    %p142 = pneg %p141
    // Predicated region
    $region25: #{basic_block_forward.3} parent=5 // pred_check
      _
    $region26: #{basic_block_forward.3} parent=5 // pred_check_branch
      %144 = sbr.rel (%p141) target = $region28
    $region27: #{basic_block_forward.3} parent=5 // pred_region
      %s145 = ssub.s32 %s10, 1
      %p146 = scmp.lt.s32.totalorder %s15, 1
      %s147 = scalar_select %p146, %s15, 1
      %s148 = smul.addr %s147, 32
      %s149 = smul.addr %s148, 8
      %s150 = scalar_lea.vmem %s0, %s149
      %p151 = pneg %p36
      %p152 = pneg %p33
      %p153 = pneg %p57
      %p154 = pneg %p54
      %p155 = pneg %p83
      %p156 = pneg %p80
      %s157 = smul.u32 32, %s15
      %p158 = scmp.lt.s32.totalorder %s157, 63
      %s159 = scalar_select %p158, %s157, 63
      %s160 = smul.addr %s159, 4
      %s161 = scalar_lea.vmem %s2, %s160
      %p162 = pneg %p109
      %p163 = pneg %p106
      %p164 = scmp.lt.s32.totalorder %s15, 1
      %s165 = scalar_select %p164, %s15, 1
      %s166 = smul.addr %s165, 2
      %s167 = scalar_lea.vmem %s3, %s166
      %p168 = scmp.lt.s32.totalorder %s15, 1
      %s169 = scalar_select %p168, %s15, 1
      %s170 = smul.addr %s169, 32
      %s171 = smul.addr %s170, 8
      %s172 = scalar_lea.vmem %s0, %s171
      %s173 = smul.u32 32, %s15
      %p174 = scmp.lt.s32.totalorder %s173, 63
      %s175 = scalar_select %p174, %s173, 63
      %s176 = smul.addr %s175, 4
      %s177 = scalar_lea.vmem %s2, %s176
      %s178 = smul.u32 32, %s15
      %p179 = scmp.lt.s32.totalorder %s15, 1
      %s180 = scalar_select %p179, %s15, 1
      %s181 = smul.addr %s180, 2
      %s182 = scalar_lea.vmem %s3, %s181
      %v184 = vld [vmem:[%s172] sm:$0xff]
      %v185 = vld [vmem:[%s172 + $0x8] sm:$0xff]
      %v186 = vld [vmem:[%s172 + $0x10] sm:$0xff]
      %v187 = vld [vmem:[%s172 + $0x18] sm:$0xff]
      %v188 = vld [vmem:[%s172 + $0x20] sm:$0xff]
      %v189 = vld [vmem:[%s172 + $0x28] sm:$0xff]
      %v190 = vld [vmem:[%s172 + $0x30] sm:$0xff]
      %v191 = vld [vmem:[%s172 + $0x38] sm:$0xff]
      %v192 = vld [vmem:[%s172 + $0x40] sm:$0xff]
      %v193 = vld [vmem:[%s172 + $0x48] sm:$0xff]
      %v194 = vld [vmem:[%s172 + $0x50] sm:$0xff]
      %v195 = vld [vmem:[%s172 + $0x58] sm:$0xff]
      %v196 = vld [vmem:[%s172 + $0x60] sm:$0xff]
      %v197 = vld [vmem:[%s172 + $0x68] sm:$0xff]
      %v198 = vld [vmem:[%s172 + $0x70] sm:$0xff]
      %v199 = vld [vmem:[%s172 + $0x78] sm:$0xff]
      %v200 = vld [vmem:[%s172 + $0x80] sm:$0xff]
      %v201 = vld [vmem:[%s172 + $0x88] sm:$0xff]
      %v202 = vld [vmem:[%s172 + $0x90] sm:$0xff]
      %v203 = vld [vmem:[%s172 + $0x98] sm:$0xff]
      %v204 = vld [vmem:[%s172 + $0xa0] sm:$0xff]
      %v205 = vld [vmem:[%s172 + $0xa8] sm:$0xff]
      %v206 = vld [vmem:[%s172 + $0xb0] sm:$0xff]
      %v207 = vld [vmem:[%s172 + $0xb8] sm:$0xff]
      %v208 = vld [vmem:[%s172 + $0xc0] sm:$0xff]
      %v209 = vld [vmem:[%s172 + $0xc8] sm:$0xff]
      %v210 = vld [vmem:[%s172 + $0xd0] sm:$0xff]
      %v211 = vld [vmem:[%s172 + $0xd8] sm:$0xff]
      %v212 = vld [vmem:[%s172 + $0xe0] sm:$0xff]
      %v213 = vld [vmem:[%s172 + $0xe8] sm:$0xff]
      %v214 = vld [vmem:[%s172 + $0xf0] sm:$0xff]
      %v215 = vld [vmem:[%s172 + $0xf8] sm:$0xff]
      %vm216 = vcmask 64512
      %217 = vst.msk [vmem:[#allocation2] sm:$0xff] %vm216, 0.0
      %218 = vst.msk [vmem:[#allocation2 + $0x8] sm:$0xff] %vm216, 0.0
      %vm219 = vcmask 58368
      %220 = vst.msk [vmem:[#allocation2 + $0x10] sm:$0x3] %vm219, 0.0
      %s221 = scalar_lea.vmem [#allocation2], 408
      %222 = vst.msk [vmem:[%s221] sm:$0xff] %vm216, 0.0
      %223 = vst.msk [vmem:[%s221 + $0x8] sm:$0xff] %vm216, 0.0
      %224 = vst.msk [vmem:[%s221 + $0x10] sm:$0x3] %vm219, 0.0
      %s225 = scalar_lea.vmem [#allocation2], 24
      %vm226 = vcmask 57344
      %227 = vst.msk [vmem:[%s225] sm:$0x1] %vm226, 0.0
      %228 = vst.msk [vmem:[%s225 + $0x18] sm:$0x1] %vm226, 0.0
      %229 = vst.msk [vmem:[%s225 + $0x30] sm:$0x1] %vm226, 0.0
      %230 = vst.msk [vmem:[%s225 + $0x48] sm:$0x1] %vm226, 0.0
      %231 = vst.msk [vmem:[%s225 + $0x60] sm:$0x1] %vm226, 0.0
      %232 = vst.msk [vmem:[%s225 + $0x78] sm:$0x1] %vm226, 0.0
      %233 = vst.msk [vmem:[%s225 + $0x90] sm:$0x1] %vm226, 0.0
      %234 = vst.msk [vmem:[%s225 + $0xa8] sm:$0x1] %vm226, 0.0
      %235 = vst.msk [vmem:[%s225 + $0xc0] sm:$0x1] %vm226, 0.0
      %236 = vst.msk [vmem:[%s225 + $0xd8] sm:$0x1] %vm226, 0.0
      %237 = vst.msk [vmem:[%s225 + $0xf0] sm:$0x1] %vm226, 0.0
      %238 = vst.msk [vmem:[%s225 + $0x108] sm:$0x1] %vm226, 0.0
      %239 = vst.msk [vmem:[%s225 + $0x120] sm:$0x1] %vm226, 0.0
      %240 = vst.msk [vmem:[%s225 + $0x138] sm:$0x1] %vm226, 0.0
      %241 = vst.msk [vmem:[%s225 + $0x150] sm:$0x1] %vm226, 0.0
      %242 = vst.msk [vmem:[%s225 + $0x168] sm:$0x1] %vm226, 0.0
      %243 = vst.msk [vmem:[%s225 + $0x11] sm:$0x1] %vm226, 0.0
      %244 = vst.msk [vmem:[%s225 + $0x29] sm:$0x1] %vm226, 0.0
      %245 = vst.msk [vmem:[%s225 + $0x41] sm:$0x1] %vm226, 0.0
      %246 = vst.msk [vmem:[%s225 + $0x59] sm:$0x1] %vm226, 0.0
      %247 = vst.msk [vmem:[%s225 + $0x71] sm:$0x1] %vm226, 0.0
      %248 = vst.msk [vmem:[%s225 + $0x89] sm:$0x1] %vm226, 0.0
      %249 = vst.msk [vmem:[%s225 + $0xa1] sm:$0x1] %vm226, 0.0
      %250 = vst.msk [vmem:[%s225 + $0xb9] sm:$0x1] %vm226, 0.0
      %251 = vst.msk [vmem:[%s225 + $0xd1] sm:$0x1] %vm226, 0.0
      %252 = vst.msk [vmem:[%s225 + $0xe9] sm:$0x1] %vm226, 0.0
      %253 = vst.msk [vmem:[%s225 + $0x101] sm:$0x1] %vm226, 0.0
      %254 = vst.msk [vmem:[%s225 + $0x119] sm:$0x1] %vm226, 0.0
      %255 = vst.msk [vmem:[%s225 + $0x131] sm:$0x1] %vm226, 0.0
      %256 = vst.msk [vmem:[%s225 + $0x149] sm:$0x1] %vm226, 0.0
      %257 = vst.msk [vmem:[%s225 + $0x161] sm:$0x1] %vm226, 0.0
      %258 = vst.msk [vmem:[%s225 + $0x179] sm:$0x1] %vm226, 0.0
      %259 = vst.msk [vmem:[%s225 + $0x1] sm:$0xff] %vm216, %v184
      %260 = vst.msk [vmem:[%s225 + $0x9] sm:$0xff] %vm216, %v185
      %261 = vst.msk [vmem:[%s225 + $0x19] sm:$0xff] %vm216, %v186
      %262 = vst.msk [vmem:[%s225 + $0x21] sm:$0xff] %vm216, %v187
      %263 = vst.msk [vmem:[%s225 + $0x31] sm:$0xff] %vm216, %v188
      %264 = vst.msk [vmem:[%s225 + $0x39] sm:$0xff] %vm216, %v189
      %265 = vst.msk [vmem:[%s225 + $0x49] sm:$0xff] %vm216, %v190
      %266 = vst.msk [vmem:[%s225 + $0x51] sm:$0xff] %vm216, %v191
      %267 = vst.msk [vmem:[%s225 + $0x61] sm:$0xff] %vm216, %v192
      %268 = vst.msk [vmem:[%s225 + $0x69] sm:$0xff] %vm216, %v193
      %269 = vst.msk [vmem:[%s225 + $0x79] sm:$0xff] %vm216, %v194
      %270 = vst.msk [vmem:[%s225 + $0x81] sm:$0xff] %vm216, %v195
      %271 = vst.msk [vmem:[%s225 + $0x91] sm:$0xff] %vm216, %v196
      %272 = vst.msk [vmem:[%s225 + $0x99] sm:$0xff] %vm216, %v197
      %273 = vst.msk [vmem:[%s225 + $0xa9] sm:$0xff] %vm216, %v198
      %274 = vst.msk [vmem:[%s225 + $0xb1] sm:$0xff] %vm216, %v199
      %275 = vst.msk [vmem:[%s225 + $0xc1] sm:$0xff] %vm216, %v200
      %276 = vst.msk [vmem:[%s225 + $0xc9] sm:$0xff] %vm216, %v201
      %277 = vst.msk [vmem:[%s225 + $0xd9] sm:$0xff] %vm216, %v202
      %278 = vst.msk [vmem:[%s225 + $0xe1] sm:$0xff] %vm216, %v203
      %279 = vst.msk [vmem:[%s225 + $0xf1] sm:$0xff] %vm216, %v204
      %280 = vst.msk [vmem:[%s225 + $0xf9] sm:$0xff] %vm216, %v205
      %281 = vst.msk [vmem:[%s225 + $0x109] sm:$0xff] %vm216, %v206
      %282 = vst.msk [vmem:[%s225 + $0x111] sm:$0xff] %vm216, %v207
      %283 = vst.msk [vmem:[%s225 + $0x121] sm:$0xff] %vm216, %v208
      %284 = vst.msk [vmem:[%s225 + $0x129] sm:$0xff] %vm216, %v209
      %285 = vst.msk [vmem:[%s225 + $0x139] sm:$0xff] %vm216, %v210
      %286 = vst.msk [vmem:[%s225 + $0x141] sm:$0xff] %vm216, %v211
      %287 = vst.msk [vmem:[%s225 + $0x151] sm:$0xff] %vm216, %v212
      %288 = vst.msk [vmem:[%s225 + $0x159] sm:$0xff] %vm216, %v213
      %289 = vst.msk [vmem:[%s225 + $0x169] sm:$0xff] %vm216, %v214
      %290 = vst.msk [vmem:[%s225 + $0x171] sm:$0xff] %vm216, %v215
      %v291 = vld [vmem:[#allocation2] sm:$0xff]
      %v292 = vld [vmem:[#allocation2 + $0x8] sm:$0xff]
      %v293 = vld [vmem:[#allocation2 + $0x18] sm:$0xff]
      %v294 = vld [vmem:[#allocation2 + $0x20] sm:$0xff]
      %v295 = vld [vmem:[#allocation2 + $0x30] sm:$0xff]
      %v296 = vld [vmem:[#allocation2 + $0x38] sm:$0xff]
      %v297 = vld [vmem:[#allocation2 + $0x48] sm:$0xff]
      %v298 = vld [vmem:[#allocation2 + $0x50] sm:$0xff]
      %v299 = vld [vmem:[#allocation2 + $0x60] sm:$0xff]
      %v300 = vld [vmem:[#allocation2 + $0x68] sm:$0xff]
      %v301 = vld [vmem:[#allocation2 + $0x78] sm:$0xff]
      %v302 = vld [vmem:[#allocation2 + $0x80] sm:$0xff]
      %v303 = vld [vmem:[#allocation2 + $0x90] sm:$0xff]
      %v304 = vld [vmem:[#allocation2 + $0x98] sm:$0xff]
      %v305 = vld [vmem:[#allocation2 + $0xa8] sm:$0xff]
      %v306 = vld [vmem:[#allocation2 + $0xb0] sm:$0xff]
      %v307 = vld [vmem:[#allocation2 + $0xc0] sm:$0xff]
      %v308 = vld [vmem:[#allocation2 + $0xc8] sm:$0xff]
      %v309 = vld [vmem:[#allocation2 + $0xd8] sm:$0xff]
      %v310 = vld [vmem:[#allocation2 + $0xe0] sm:$0xff]
      %v311 = vld [vmem:[#allocation2 + $0xf0] sm:$0xff]
      %v312 = vld [vmem:[#allocation2 + $0xf8] sm:$0xff]
      %v313 = vld [vmem:[#allocation2 + $0x108] sm:$0xff]
      %v314 = vld [vmem:[#allocation2 + $0x110] sm:$0xff]
      %v315 = vld [vmem:[#allocation2 + $0x120] sm:$0xff]
      %v316 = vld [vmem:[#allocation2 + $0x128] sm:$0xff]
      %v317 = vld [vmem:[#allocation2 + $0x138] sm:$0xff]
      %v318 = vld [vmem:[#allocation2 + $0x140] sm:$0xff]
      %v319 = vld [vmem:[#allocation2 + $0x150] sm:$0xff]
      %v320 = vld [vmem:[#allocation2 + $0x158] sm:$0xff]
      %v321 = vld [vmem:[#allocation2 + $0x168] sm:$0xff]
      %v322 = vld [vmem:[#allocation2 + $0x170] sm:$0xff]
      %v323 = vpack.c.bf16 %v292, %v291
      %v324 = vpack.c.bf16 %v294, %v293
      %v325 = vpack.c.bf16 %v296, %v295
      %v326 = vpack.c.bf16 %v298, %v297
      %v327 = vpack.c.bf16 %v300, %v299
      %v328 = vpack.c.bf16 %v302, %v301
      %v329 = vpack.c.bf16 %v304, %v303
      %v330 = vpack.c.bf16 %v306, %v305
      %v331 = vpack.c.bf16 %v308, %v307
      %v332 = vpack.c.bf16 %v310, %v309
      %v333 = vpack.c.bf16 %v312, %v311
      %v334 = vpack.c.bf16 %v314, %v313
      %v335 = vpack.c.bf16 %v316, %v315
      %v336 = vpack.c.bf16 %v318, %v317
      %v337 = vpack.c.bf16 %v320, %v319
      %v338 = vpack.c.bf16 %v322, %v321
      %v339 = vld [vmem:[#allocation2 + $0x1] sm:$0xff]
      %v340 = vld [vmem:[#allocation2 + $0x9] sm:$0xff]
      %v341 = vld [vmem:[#allocation2 + $0x19] sm:$0xff]
      %v342 = vld [vmem:[#allocation2 + $0x21] sm:$0xff]
      %v343 = vld [vmem:[#allocation2 + $0x31] sm:$0xff]
      %v344 = vld [vmem:[#allocation2 + $0x39] sm:$0xff]
      %v345 = vld [vmem:[#allocation2 + $0x49] sm:$0xff]
      %v346 = vld [vmem:[#allocation2 + $0x51] sm:$0xff]
      %v347 = vld [vmem:[#allocation2 + $0x61] sm:$0xff]
      %v348 = vld [vmem:[#allocation2 + $0x69] sm:$0xff]
      %v349 = vld [vmem:[#allocation2 + $0x79] sm:$0xff]
      %v350 = vld [vmem:[#allocation2 + $0x81] sm:$0xff]
      %v351 = vld [vmem:[#allocation2 + $0x91] sm:$0xff]
      %v352 = vld [vmem:[#allocation2 + $0x99] sm:$0xff]
      %v353 = vld [vmem:[#allocation2 + $0xa9] sm:$0xff]
      %v354 = vld [vmem:[#allocation2 + $0xb1] sm:$0xff]
      %v355 = vld [vmem:[#allocation2 + $0xc1] sm:$0xff]
      %v356 = vld [vmem:[#allocation2 + $0xc9] sm:$0xff]
      %v357 = vld [vmem:[#allocation2 + $0xd9] sm:$0xff]
      %v358 = vld [vmem:[#allocation2 + $0xe1] sm:$0xff]
      %v359 = vld [vmem:[#allocation2 + $0xf1] sm:$0xff]
      %v360 = vld [vmem:[#allocation2 + $0xf9] sm:$0xff]
      %v361 = vld [vmem:[#allocation2 + $0x109] sm:$0xff]
      %v362 = vld [vmem:[#allocation2 + $0x111] sm:$0xff]
      %v363 = vld [vmem:[#allocation2 + $0x121] sm:$0xff]
      %v364 = vld [vmem:[#allocation2 + $0x129] sm:$0xff]
      %v365 = vld [vmem:[#allocation2 + $0x139] sm:$0xff]
      %v366 = vld [vmem:[#allocation2 + $0x141] sm:$0xff]
      %v367 = vld [vmem:[#allocation2 + $0x151] sm:$0xff]
      %v368 = vld [vmem:[#allocation2 + $0x159] sm:$0xff]
      %v369 = vld [vmem:[#allocation2 + $0x169] sm:$0xff]
      %v370 = vld [vmem:[#allocation2 + $0x171] sm:$0xff]
      %v371 = vpack.c.bf16 %v340, %v339
      %v372 = vpack.c.bf16 %v342, %v341
      %v373 = vpack.c.bf16 %v344, %v343
      %v374 = vpack.c.bf16 %v346, %v345
      %v375 = vpack.c.bf16 %v348, %v347
      %v376 = vpack.c.bf16 %v350, %v349
      %v377 = vpack.c.bf16 %v352, %v351
      %v378 = vpack.c.bf16 %v354, %v353
      %v379 = vpack.c.bf16 %v356, %v355
      %v380 = vpack.c.bf16 %v358, %v357
      %v381 = vpack.c.bf16 %v360, %v359
      %v382 = vpack.c.bf16 %v362, %v361
      %v383 = vpack.c.bf16 %v364, %v363
      %v384 = vpack.c.bf16 %v366, %v365
      %v385 = vpack.c.bf16 %v368, %v367
      %v386 = vpack.c.bf16 %v370, %v369
      %v387 = vld [vmem:[#allocation2 + $0x2] sm:$0xff]
      %v388 = vld [vmem:[#allocation2 + $0xa] sm:$0xff]
      %v389 = vld [vmem:[#allocation2 + $0x1a] sm:$0xff]
      %v390 = vld [vmem:[#allocation2 + $0x22] sm:$0xff]
      %v391 = vld [vmem:[#allocation2 + $0x32] sm:$0xff]
      %v392 = vld [vmem:[#allocation2 + $0x3a] sm:$0xff]
      %v393 = vld [vmem:[#allocation2 + $0x4a] sm:$0xff]
      %v394 = vld [vmem:[#allocation2 + $0x52] sm:$0xff]
      %v395 = vld [vmem:[#allocation2 + $0x62] sm:$0xff]
      %v396 = vld [vmem:[#allocation2 + $0x6a] sm:$0xff]
      %v397 = vld [vmem:[#allocation2 + $0x7a] sm:$0xff]
      %v398 = vld [vmem:[#allocation2 + $0x82] sm:$0xff]
      %v399 = vld [vmem:[#allocation2 + $0x92] sm:$0xff]
      %v400 = vld [vmem:[#allocation2 + $0x9a] sm:$0xff]
      %v401 = vld [vmem:[#allocation2 + $0xaa] sm:$0xff]
      %v402 = vld [vmem:[#allocation2 + $0xb2] sm:$0xff]
      %v403 = vld [vmem:[#allocation2 + $0xc2] sm:$0xff]
      %v404 = vld [vmem:[#allocation2 + $0xca] sm:$0xff]
      %v405 = vld [vmem:[#allocation2 + $0xda] sm:$0xff]
      %v406 = vld [vmem:[#allocation2 + $0xe2] sm:$0xff]
      %v407 = vld [vmem:[#allocation2 + $0xf2] sm:$0xff]
      %v408 = vld [vmem:[#allocation2 + $0xfa] sm:$0xff]
      %v409 = vld [vmem:[#allocation2 + $0x10a] sm:$0xff]
      %v410 = vld [vmem:[#allocation2 + $0x112] sm:$0xff]
      %v411 = vld [vmem:[#allocation2 + $0x122] sm:$0xff]
      %v412 = vld [vmem:[#allocation2 + $0x12a] sm:$0xff]
      %v413 = vld [vmem:[#allocation2 + $0x13a] sm:$0xff]
      %v414 = vld [vmem:[#allocation2 + $0x142] sm:$0xff]
      %v415 = vld [vmem:[#allocation2 + $0x152] sm:$0xff]
      %v416 = vld [vmem:[#allocation2 + $0x15a] sm:$0xff]
      %v417 = vld [vmem:[#allocation2 + $0x16a] sm:$0xff]
      %v418 = vld [vmem:[#allocation2 + $0x172] sm:$0xff]
      %v419 = vpack.c.bf16 %v388, %v387
      %v420 = vpack.c.bf16 %v390, %v389
      %v421 = vpack.c.bf16 %v392, %v391
      %v422 = vpack.c.bf16 %v394, %v393
      %v423 = vpack.c.bf16 %v396, %v395
      %v424 = vpack.c.bf16 %v398, %v397
      %v425 = vpack.c.bf16 %v400, %v399
      %v426 = vpack.c.bf16 %v402, %v401
      %v427 = vpack.c.bf16 %v404, %v403
      %v428 = vpack.c.bf16 %v406, %v405
      %v429 = vpack.c.bf16 %v408, %v407
      %v430 = vpack.c.bf16 %v410, %v409
      %v431 = vpack.c.bf16 %v412, %v411
      %v432 = vpack.c.bf16 %v414, %v413
      %v433 = vpack.c.bf16 %v416, %v415
      %v434 = vpack.c.bf16 %v418, %v417
      %v435 = vld [vmem:[%s225] sm:$0xff]
      %v436 = vld [vmem:[%s225 + $0x8] sm:$0xff]
      %v437 = vld [vmem:[%s225 + $0x18] sm:$0xff]
      %v438 = vld [vmem:[%s225 + $0x20] sm:$0xff]
      %v439 = vld [vmem:[%s225 + $0x30] sm:$0xff]
      %v440 = vld [vmem:[%s225 + $0x38] sm:$0xff]
      %v441 = vld [vmem:[%s225 + $0x48] sm:$0xff]
      %v442 = vld [vmem:[%s225 + $0x50] sm:$0xff]
      %v443 = vld [vmem:[%s225 + $0x60] sm:$0xff]
      %v444 = vld [vmem:[%s225 + $0x68] sm:$0xff]
      %v445 = vld [vmem:[%s225 + $0x78] sm:$0xff]
      %v446 = vld [vmem:[%s225 + $0x80] sm:$0xff]
      %v447 = vld [vmem:[%s225 + $0x90] sm:$0xff]
      %v448 = vld [vmem:[%s225 + $0x98] sm:$0xff]
      %v449 = vld [vmem:[%s225 + $0xa8] sm:$0xff]
      %v450 = vld [vmem:[%s225 + $0xb0] sm:$0xff]
      %v451 = vld [vmem:[%s225 + $0xc0] sm:$0xff]
      %v452 = vld [vmem:[%s225 + $0xc8] sm:$0xff]
      %v453 = vld [vmem:[%s225 + $0xd8] sm:$0xff]
      %v454 = vld [vmem:[%s225 + $0xe0] sm:$0xff]
      %v455 = vld [vmem:[%s225 + $0xf0] sm:$0xff]
      %v456 = vld [vmem:[%s225 + $0xf8] sm:$0xff]
      %v457 = vld [vmem:[%s225 + $0x108] sm:$0xff]
      %v458 = vld [vmem:[%s225 + $0x110] sm:$0xff]
      %v459 = vld [vmem:[%s225 + $0x120] sm:$0xff]
      %v460 = vld [vmem:[%s225 + $0x128] sm:$0xff]
      %v461 = vld [vmem:[%s225 + $0x138] sm:$0xff]
      %v462 = vld [vmem:[%s225 + $0x140] sm:$0xff]
      %v463 = vld [vmem:[%s225 + $0x150] sm:$0xff]
      %v464 = vld [vmem:[%s225 + $0x158] sm:$0xff]
      %v465 = vld [vmem:[%s225 + $0x168] sm:$0xff]
      %v466 = vld [vmem:[%s225 + $0x170] sm:$0xff]
      %v467 = vpack.c.bf16 %v436, %v435
      %v468 = vpack.c.bf16 %v438, %v437
      %v469 = vpack.c.bf16 %v440, %v439
      %v470 = vpack.c.bf16 %v442, %v441
      %v471 = vpack.c.bf16 %v444, %v443
      %v472 = vpack.c.bf16 %v446, %v445
      %v473 = vpack.c.bf16 %v448, %v447
      %v474 = vpack.c.bf16 %v450, %v449
      %v475 = vpack.c.bf16 %v452, %v451
      %v476 = vpack.c.bf16 %v454, %v453
      %v477 = vpack.c.bf16 %v456, %v455
      %v478 = vpack.c.bf16 %v458, %v457
      %v479 = vpack.c.bf16 %v460, %v459
      %v480 = vpack.c.bf16 %v462, %v461
      %v481 = vpack.c.bf16 %v464, %v463
      %v482 = vpack.c.bf16 %v466, %v465
      %v483 = vld [vmem:[%s225 + $0x1] sm:$0xff]
      %v484 = vld [vmem:[%s225 + $0x9] sm:$0xff]
      %v485 = vld [vmem:[%s225 + $0x19] sm:$0xff]
      %v486 = vld [vmem:[%s225 + $0x21] sm:$0xff]
      %v487 = vld [vmem:[%s225 + $0x31] sm:$0xff]
      %v488 = vld [vmem:[%s225 + $0x39] sm:$0xff]
      %v489 = vld [vmem:[%s225 + $0x49] sm:$0xff]
      %v490 = vld [vmem:[%s225 + $0x51] sm:$0xff]
      %v491 = vld [vmem:[%s225 + $0x61] sm:$0xff]
      %v492 = vld [vmem:[%s225 + $0x69] sm:$0xff]
      %v493 = vld [vmem:[%s225 + $0x79] sm:$0xff]
      %v494 = vld [vmem:[%s225 + $0x81] sm:$0xff]
      %v495 = vld [vmem:[%s225 + $0x91] sm:$0xff]
      %v496 = vld [vmem:[%s225 + $0x99] sm:$0xff]
      %v497 = vld [vmem:[%s225 + $0xa9] sm:$0xff]
      %v498 = vld [vmem:[%s225 + $0xb1] sm:$0xff]
      %v499 = vld [vmem:[%s225 + $0xc1] sm:$0xff]
      %v500 = vld [vmem:[%s225 + $0xc9] sm:$0xff]
      %v501 = vld [vmem:[%s225 + $0xd9] sm:$0xff]
      %v502 = vld [vmem:[%s225 + $0xe1] sm:$0xff]
      %v503 = vld [vmem:[%s225 + $0xf1] sm:$0xff]
      %v504 = vld [vmem:[%s225 + $0xf9] sm:$0xff]
      %v505 = vld [vmem:[%s225 + $0x109] sm:$0xff]
      %v506 = vld [vmem:[%s225 + $0x111] sm:$0xff]
      %v507 = vld [vmem:[%s225 + $0x121] sm:$0xff]
      %v508 = vld [vmem:[%s225 + $0x129] sm:$0xff]
      %v509 = vld [vmem:[%s225 + $0x139] sm:$0xff]
      %v510 = vld [vmem:[%s225 + $0x141] sm:$0xff]
      %v511 = vld [vmem:[%s225 + $0x151] sm:$0xff]
      %v512 = vld [vmem:[%s225 + $0x159] sm:$0xff]
      %v513 = vld [vmem:[%s225 + $0x169] sm:$0xff]
      %v514 = vld [vmem:[%s225 + $0x171] sm:$0xff]
      %v515 = vpack.c.bf16 %v484, %v483
      %v516 = vpack.c.bf16 %v486, %v485
      %v517 = vpack.c.bf16 %v488, %v487
      %v518 = vpack.c.bf16 %v490, %v489
      %v519 = vpack.c.bf16 %v492, %v491
      %v520 = vpack.c.bf16 %v494, %v493
      %v521 = vpack.c.bf16 %v496, %v495
      %v522 = vpack.c.bf16 %v498, %v497
      %v523 = vpack.c.bf16 %v500, %v499
      %v524 = vpack.c.bf16 %v502, %v501
      %v525 = vpack.c.bf16 %v504, %v503
      %v526 = vpack.c.bf16 %v506, %v505
      %v527 = vpack.c.bf16 %v508, %v507
      %v528 = vpack.c.bf16 %v510, %v509
      %v529 = vpack.c.bf16 %v512, %v511
      %v530 = vpack.c.bf16 %v514, %v513
      %v531 = vld [vmem:[%s225 + $0x2] sm:$0xff]
      %v532 = vld [vmem:[%s225 + $0xa] sm:$0xff]
      %v533 = vld [vmem:[%s225 + $0x1a] sm:$0xff]
      %v534 = vld [vmem:[%s225 + $0x22] sm:$0xff]
      %v535 = vld [vmem:[%s225 + $0x32] sm:$0xff]
      %v536 = vld [vmem:[%s225 + $0x3a] sm:$0xff]
      %v537 = vld [vmem:[%s225 + $0x4a] sm:$0xff]
      %v538 = vld [vmem:[%s225 + $0x52] sm:$0xff]
      %v539 = vld [vmem:[%s225 + $0x62] sm:$0xff]
      %v540 = vld [vmem:[%s225 + $0x6a] sm:$0xff]
      %v541 = vld [vmem:[%s225 + $0x7a] sm:$0xff]
      %v542 = vld [vmem:[%s225 + $0x82] sm:$0xff]
      %v543 = vld [vmem:[%s225 + $0x92] sm:$0xff]
      %v544 = vld [vmem:[%s225 + $0x9a] sm:$0xff]
      %v545 = vld [vmem:[%s225 + $0xaa] sm:$0xff]
      %v546 = vld [vmem:[%s225 + $0xb2] sm:$0xff]
      %v547 = vld [vmem:[%s225 + $0xc2] sm:$0xff]
      %v548 = vld [vmem:[%s225 + $0xca] sm:$0xff]
      %v549 = vld [vmem:[%s225 + $0xda] sm:$0xff]
      %v550 = vld [vmem:[%s225 + $0xe2] sm:$0xff]
      %v551 = vld [vmem:[%s225 + $0xf2] sm:$0xff]
      %v552 = vld [vmem:[%s225 + $0xfa] sm:$0xff]
      %v553 = vld [vmem:[%s225 + $0x10a] sm:$0xff]
      %v554 = vld [vmem:[%s225 + $0x112] sm:$0xff]
      %v555 = vld [vmem:[%s225 + $0x122] sm:$0xff]
      %v556 = vld [vmem:[%s225 + $0x12a] sm:$0xff]
      %v557 = vld [vmem:[%s225 + $0x13a] sm:$0xff]
      %v558 = vld [vmem:[%s225 + $0x142] sm:$0xff]
      %v559 = vld [vmem:[%s225 + $0x152] sm:$0xff]
      %v560 = vld [vmem:[%s225 + $0x15a] sm:$0xff]
      %v561 = vld [vmem:[%s225 + $0x16a] sm:$0xff]
      %v562 = vld [vmem:[%s225 + $0x172] sm:$0xff]
      %v563 = vpack.c.bf16 %v532, %v531
      %v564 = vpack.c.bf16 %v534, %v533
      %v565 = vpack.c.bf16 %v536, %v535
      %v566 = vpack.c.bf16 %v538, %v537
      %v567 = vpack.c.bf16 %v540, %v539
      %v568 = vpack.c.bf16 %v542, %v541
      %v569 = vpack.c.bf16 %v544, %v543
      %v570 = vpack.c.bf16 %v546, %v545
      %v571 = vpack.c.bf16 %v548, %v547
      %v572 = vpack.c.bf16 %v550, %v549
      %v573 = vpack.c.bf16 %v552, %v551
      %v574 = vpack.c.bf16 %v554, %v553
      %v575 = vpack.c.bf16 %v556, %v555
      %v576 = vpack.c.bf16 %v558, %v557
      %v577 = vpack.c.bf16 %v560, %v559
      %v578 = vpack.c.bf16 %v562, %v561
      %s579 = scalar_lea.vmem [#allocation2], 48
      %v580 = vld [vmem:[%s579] sm:$0xff]
      %v581 = vld [vmem:[%s579 + $0x8] sm:$0xff]
      %v582 = vld [vmem:[%s579 + $0x18] sm:$0xff]
      %v583 = vld [vmem:[%s579 + $0x20] sm:$0xff]
      %v584 = vld [vmem:[%s579 + $0x30] sm:$0xff]
      %v585 = vld [vmem:[%s579 + $0x38] sm:$0xff]
      %v586 = vld [vmem:[%s579 + $0x48] sm:$0xff]
      %v587 = vld [vmem:[%s579 + $0x50] sm:$0xff]
      %v588 = vld [vmem:[%s579 + $0x60] sm:$0xff]
      %v589 = vld [vmem:[%s579 + $0x68] sm:$0xff]
      %v590 = vld [vmem:[%s579 + $0x78] sm:$0xff]
      %v591 = vld [vmem:[%s579 + $0x80] sm:$0xff]
      %v592 = vld [vmem:[%s579 + $0x90] sm:$0xff]
      %v593 = vld [vmem:[%s579 + $0x98] sm:$0xff]
      %v594 = vld [vmem:[%s579 + $0xa8] sm:$0xff]
      %v595 = vld [vmem:[%s579 + $0xb0] sm:$0xff]
      %v596 = vld [vmem:[%s579 + $0xc0] sm:$0xff]
      %v597 = vld [vmem:[%s579 + $0xc8] sm:$0xff]
      %v598 = vld [vmem:[%s579 + $0xd8] sm:$0xff]
      %v599 = vld [vmem:[%s579 + $0xe0] sm:$0xff]
      %v600 = vld [vmem:[%s579 + $0xf0] sm:$0xff]
      %v601 = vld [vmem:[%s579 + $0xf8] sm:$0xff]
      %v602 = vld [vmem:[%s579 + $0x108] sm:$0xff]
      %v603 = vld [vmem:[%s579 + $0x110] sm:$0xff]
      %v604 = vld [vmem:[%s579 + $0x120] sm:$0xff]
      %v605 = vld [vmem:[%s579 + $0x128] sm:$0xff]
      %v606 = vld [vmem:[%s579 + $0x138] sm:$0xff]
      %v607 = vld [vmem:[%s579 + $0x140] sm:$0xff]
      %v608 = vld [vmem:[%s579 + $0x150] sm:$0xff]
      %v609 = vld [vmem:[%s579 + $0x158] sm:$0xff]
      %v610 = vld [vmem:[%s579 + $0x168] sm:$0xff]
      %v611 = vld [vmem:[%s579 + $0x170] sm:$0xff]
      %v612 = vpack.c.bf16 %v581, %v580
      %v613 = vpack.c.bf16 %v583, %v582
      %v614 = vpack.c.bf16 %v585, %v584
      %v615 = vpack.c.bf16 %v587, %v586
      %v616 = vpack.c.bf16 %v589, %v588
      %v617 = vpack.c.bf16 %v591, %v590
      %v618 = vpack.c.bf16 %v593, %v592
      %v619 = vpack.c.bf16 %v595, %v594
      %v620 = vpack.c.bf16 %v597, %v596
      %v621 = vpack.c.bf16 %v599, %v598
      %v622 = vpack.c.bf16 %v601, %v600
      %v623 = vpack.c.bf16 %v603, %v602
      %v624 = vpack.c.bf16 %v605, %v604
      %v625 = vpack.c.bf16 %v607, %v606
      %v626 = vpack.c.bf16 %v609, %v608
      %v627 = vpack.c.bf16 %v611, %v610
      %v628 = vld [vmem:[%s579 + $0x1] sm:$0xff]
      %v629 = vld [vmem:[%s579 + $0x9] sm:$0xff]
      %v630 = vld [vmem:[%s579 + $0x19] sm:$0xff]
      %v631 = vld [vmem:[%s579 + $0x21] sm:$0xff]
      %v632 = vld [vmem:[%s579 + $0x31] sm:$0xff]
      %v633 = vld [vmem:[%s579 + $0x39] sm:$0xff]
      %v634 = vld [vmem:[%s579 + $0x49] sm:$0xff]
      %v635 = vld [vmem:[%s579 + $0x51] sm:$0xff]
      %v636 = vld [vmem:[%s579 + $0x61] sm:$0xff]
      %v637 = vld [vmem:[%s579 + $0x69] sm:$0xff]
      %v638 = vld [vmem:[%s579 + $0x79] sm:$0xff]
      %v639 = vld [vmem:[%s579 + $0x81] sm:$0xff]
      %v640 = vld [vmem:[%s579 + $0x91] sm:$0xff]
      %v641 = vld [vmem:[%s579 + $0x99] sm:$0xff]
      %v642 = vld [vmem:[%s579 + $0xa9] sm:$0xff]
      %v643 = vld [vmem:[%s579 + $0xb1] sm:$0xff]
      %v644 = vld [vmem:[%s579 + $0xc1] sm:$0xff]
      %v645 = vld [vmem:[%s579 + $0xc9] sm:$0xff]
      %v646 = vld [vmem:[%s579 + $0xd9] sm:$0xff]
      %v647 = vld [vmem:[%s579 + $0xe1] sm:$0xff]
      %v648 = vld [vmem:[%s579 + $0xf1] sm:$0xff]
      %v649 = vld [vmem:[%s579 + $0xf9] sm:$0xff]
      %v650 = vld [vmem:[%s579 + $0x109] sm:$0xff]
      %v651 = vld [vmem:[%s579 + $0x111] sm:$0xff]
      %v652 = vld [vmem:[%s579 + $0x121] sm:$0xff]
      %v653 = vld [vmem:[%s579 + $0x129] sm:$0xff]
      %v654 = vld [vmem:[%s579 + $0x139] sm:$0xff]
      %v655 = vld [vmem:[%s579 + $0x141] sm:$0xff]
      %v656 = vld [vmem:[%s579 + $0x151] sm:$0xff]
      %v657 = vld [vmem:[%s579 + $0x159] sm:$0xff]
      %v658 = vld [vmem:[%s579 + $0x169] sm:$0xff]
      %v659 = vld [vmem:[%s579 + $0x171] sm:$0xff]
      %v660 = vpack.c.bf16 %v629, %v628
      %v661 = vpack.c.bf16 %v631, %v630
      %v662 = vpack.c.bf16 %v633, %v632
      %v663 = vpack.c.bf16 %v635, %v634
      %v664 = vpack.c.bf16 %v637, %v636
      %v665 = vpack.c.bf16 %v639, %v638
      %v666 = vpack.c.bf16 %v641, %v640
      %v667 = vpack.c.bf16 %v643, %v642
      %v668 = vpack.c.bf16 %v645, %v644
      %v669 = vpack.c.bf16 %v647, %v646
      %v670 = vpack.c.bf16 %v649, %v648
      %v671 = vpack.c.bf16 %v651, %v650
      %v672 = vpack.c.bf16 %v653, %v652
      %v673 = vpack.c.bf16 %v655, %v654
      %v674 = vpack.c.bf16 %v657, %v656
      %v675 = vpack.c.bf16 %v659, %v658
      %v676 = vld [vmem:[%s579 + $0x2] sm:$0xff]
      %v677 = vld [vmem:[%s579 + $0xa] sm:$0xff]
      %v678 = vld [vmem:[%s579 + $0x1a] sm:$0xff]
      %v679 = vld [vmem:[%s579 + $0x22] sm:$0xff]
      %v680 = vld [vmem:[%s579 + $0x32] sm:$0xff]
      %v681 = vld [vmem:[%s579 + $0x3a] sm:$0xff]
      %v682 = vld [vmem:[%s579 + $0x4a] sm:$0xff]
      %v683 = vld [vmem:[%s579 + $0x52] sm:$0xff]
      %v684 = vld [vmem:[%s579 + $0x62] sm:$0xff]
      %v685 = vld [vmem:[%s579 + $0x6a] sm:$0xff]
      %v686 = vld [vmem:[%s579 + $0x7a] sm:$0xff]
      %v687 = vld [vmem:[%s579 + $0x82] sm:$0xff]
      %v688 = vld [vmem:[%s579 + $0x92] sm:$0xff]
      %v689 = vld [vmem:[%s579 + $0x9a] sm:$0xff]
      %v690 = vld [vmem:[%s579 + $0xaa] sm:$0xff]
      %v691 = vld [vmem:[%s579 + $0xb2] sm:$0xff]
      %v692 = vld [vmem:[%s579 + $0xc2] sm:$0xff]
      %v693 = vld [vmem:[%s579 + $0xca] sm:$0xff]
      %v694 = vld [vmem:[%s579 + $0xda] sm:$0xff]
      %v695 = vld [vmem:[%s579 + $0xe2] sm:$0xff]
      %v696 = vld [vmem:[%s579 + $0xf2] sm:$0xff]
      %v697 = vld [vmem:[%s579 + $0xfa] sm:$0xff]
      %v698 = vld [vmem:[%s579 + $0x10a] sm:$0xff]
      %v699 = vld [vmem:[%s579 + $0x112] sm:$0xff]
      %v700 = vld [vmem:[%s579 + $0x122] sm:$0xff]
      %v701 = vld [vmem:[%s579 + $0x12a] sm:$0xff]
      %v702 = vld [vmem:[%s579 + $0x13a] sm:$0xff]
      %v703 = vld [vmem:[%s579 + $0x142] sm:$0xff]
      %v704 = vld [vmem:[%s579 + $0x152] sm:$0xff]
      %v705 = vld [vmem:[%s579 + $0x15a] sm:$0xff]
      %v706 = vld [vmem:[%s579 + $0x16a] sm:$0xff]
      %v707 = vld [vmem:[%s579 + $0x172] sm:$0xff]
      %v708 = vpack.c.bf16 %v677, %v676
      %v709 = vpack.c.bf16 %v679, %v678
      %v710 = vpack.c.bf16 %v681, %v680
      %v711 = vpack.c.bf16 %v683, %v682
      %v712 = vpack.c.bf16 %v685, %v684
      %v713 = vpack.c.bf16 %v687, %v686
      %v714 = vpack.c.bf16 %v689, %v688
      %v715 = vpack.c.bf16 %v691, %v690
      %v716 = vpack.c.bf16 %v693, %v692
      %v717 = vpack.c.bf16 %v695, %v694
      %v718 = vpack.c.bf16 %v697, %v696
      %v719 = vpack.c.bf16 %v699, %v698
      %v720 = vpack.c.bf16 %v701, %v700
      %v721 = vpack.c.bf16 %v703, %v702
      %v722 = vpack.c.bf16 %v705, %v704
      %v723 = vpack.c.bf16 %v707, %v706
      %740 = vrot.lane.b32.xlu0 %v371, 8
      %v741 = vpop.permute.xlu0 %740
      %742 = vrot.lane.b32.xlu0 %v372, 8
      %v743 = vpop.permute.xlu0 %742
      %744 = vrot.lane.b32.xlu0 %v373, 8
      %v745 = vpop.permute.xlu0 %744
      %746 = vrot.lane.b32.xlu0 %v374, 8
      %v747 = vpop.permute.xlu0 %746
      %748 = vrot.lane.b32.xlu0 %v375, 8
      %v749 = vpop.permute.xlu0 %748
      %750 = vrot.lane.b32.xlu0 %v376, 8
      %v751 = vpop.permute.xlu0 %750
      %752 = vrot.lane.b32.xlu0 %v377, 8
      %v753 = vpop.permute.xlu0 %752
      %754 = vrot.lane.b32.xlu0 %v378, 8
      %v755 = vpop.permute.xlu0 %754
      %756 = vrot.lane.b32.xlu0 %v379, 8
      %v757 = vpop.permute.xlu0 %756
      %758 = vrot.lane.b32.xlu0 %v380, 8
      %v759 = vpop.permute.xlu0 %758
      %760 = vrot.lane.b32.xlu0 %v381, 8
      %v761 = vpop.permute.xlu0 %760
      %762 = vrot.lane.b32.xlu0 %v382, 8
      %v763 = vpop.permute.xlu0 %762
      %764 = vrot.lane.b32.xlu0 %v383, 8
      %v765 = vpop.permute.xlu0 %764
      %766 = vrot.lane.b32.xlu0 %v384, 8
      %v767 = vpop.permute.xlu0 %766
      %768 = vrot.lane.b32.xlu0 %v385, 8
      %v769 = vpop.permute.xlu0 %768
      %770 = vrot.lane.b32.xlu0 %v386, 8
      %v771 = vpop.permute.xlu0 %770
      %788 = vrot.lane.b32.xlu0 %v419, 16
      %v789 = vpop.permute.xlu0 %788
      %790 = vrot.lane.b32.xlu0 %v420, 16
      %v791 = vpop.permute.xlu0 %790
      %792 = vrot.lane.b32.xlu0 %v421, 16
      %v793 = vpop.permute.xlu0 %792
      %794 = vrot.lane.b32.xlu0 %v422, 16
      %v795 = vpop.permute.xlu0 %794
      %796 = vrot.lane.b32.xlu0 %v423, 16
      %v797 = vpop.permute.xlu0 %796
      %798 = vrot.lane.b32.xlu0 %v424, 16
      %v799 = vpop.permute.xlu0 %798
      %800 = vrot.lane.b32.xlu0 %v425, 16
      %v801 = vpop.permute.xlu0 %800
      %802 = vrot.lane.b32.xlu0 %v426, 16
      %v803 = vpop.permute.xlu0 %802
      %804 = vrot.lane.b32.xlu0 %v427, 16
      %v805 = vpop.permute.xlu0 %804
      %806 = vrot.lane.b32.xlu0 %v428, 16
      %v807 = vpop.permute.xlu0 %806
      %808 = vrot.lane.b32.xlu0 %v429, 16
      %v809 = vpop.permute.xlu0 %808
      %810 = vrot.lane.b32.xlu0 %v430, 16
      %v811 = vpop.permute.xlu0 %810
      %812 = vrot.lane.b32.xlu0 %v431, 16
      %v813 = vpop.permute.xlu0 %812
      %814 = vrot.lane.b32.xlu0 %v432, 16
      %v815 = vpop.permute.xlu0 %814
      %816 = vrot.lane.b32.xlu0 %v433, 16
      %v817 = vpop.permute.xlu0 %816
      %818 = vrot.lane.b32.xlu0 %v434, 16
      %v819 = vpop.permute.xlu0 %818
      %836 = vrot.lane.b32.xlu0 %v467, 24
      %v837 = vpop.permute.xlu0 %836
      %838 = vrot.lane.b32.xlu0 %v468, 24
      %v839 = vpop.permute.xlu0 %838
      %840 = vrot.lane.b32.xlu0 %v469, 24
      %v841 = vpop.permute.xlu0 %840
      %842 = vrot.lane.b32.xlu0 %v470, 24
      %v843 = vpop.permute.xlu0 %842
      %844 = vrot.lane.b32.xlu0 %v471, 24
      %v845 = vpop.permute.xlu0 %844
      %846 = vrot.lane.b32.xlu0 %v472, 24
      %v847 = vpop.permute.xlu0 %846
      %848 = vrot.lane.b32.xlu0 %v473, 24
      %v849 = vpop.permute.xlu0 %848
      %850 = vrot.lane.b32.xlu0 %v474, 24
      %v851 = vpop.permute.xlu0 %850
      %852 = vrot.lane.b32.xlu0 %v475, 24
      %v853 = vpop.permute.xlu0 %852
      %854 = vrot.lane.b32.xlu0 %v476, 24
      %v855 = vpop.permute.xlu0 %854
      %856 = vrot.lane.b32.xlu0 %v477, 24
      %v857 = vpop.permute.xlu0 %856
      %858 = vrot.lane.b32.xlu0 %v478, 24
      %v859 = vpop.permute.xlu0 %858
      %860 = vrot.lane.b32.xlu0 %v479, 24
      %v861 = vpop.permute.xlu0 %860
      %862 = vrot.lane.b32.xlu0 %v480, 24
      %v863 = vpop.permute.xlu0 %862
      %864 = vrot.lane.b32.xlu0 %v481, 24
      %v865 = vpop.permute.xlu0 %864
      %866 = vrot.lane.b32.xlu0 %v482, 24
      %v867 = vpop.permute.xlu0 %866
      %884 = vrot.lane.b32.xlu0 %v515, 32
      %v885 = vpop.permute.xlu0 %884
      %886 = vrot.lane.b32.xlu0 %v516, 32
      %v887 = vpop.permute.xlu0 %886
      %888 = vrot.lane.b32.xlu0 %v517, 32
      %v889 = vpop.permute.xlu0 %888
      %890 = vrot.lane.b32.xlu0 %v518, 32
      %v891 = vpop.permute.xlu0 %890
      %892 = vrot.lane.b32.xlu0 %v519, 32
      %v893 = vpop.permute.xlu0 %892
      %894 = vrot.lane.b32.xlu0 %v520, 32
      %v895 = vpop.permute.xlu0 %894
      %896 = vrot.lane.b32.xlu0 %v521, 32
      %v897 = vpop.permute.xlu0 %896
      %898 = vrot.lane.b32.xlu0 %v522, 32
      %v899 = vpop.permute.xlu0 %898
      %900 = vrot.lane.b32.xlu0 %v523, 32
      %v901 = vpop.permute.xlu0 %900
      %902 = vrot.lane.b32.xlu0 %v524, 32
      %v903 = vpop.permute.xlu0 %902
      %904 = vrot.lane.b32.xlu0 %v525, 32
      %v905 = vpop.permute.xlu0 %904
      %906 = vrot.lane.b32.xlu0 %v526, 32
      %v907 = vpop.permute.xlu0 %906
      %908 = vrot.lane.b32.xlu0 %v527, 32
      %v909 = vpop.permute.xlu0 %908
      %910 = vrot.lane.b32.xlu0 %v528, 32
      %v911 = vpop.permute.xlu0 %910
      %912 = vrot.lane.b32.xlu0 %v529, 32
      %v913 = vpop.permute.xlu0 %912
      %914 = vrot.lane.b32.xlu0 %v530, 32
      %v915 = vpop.permute.xlu0 %914
      %932 = vrot.lane.b32.xlu0 %v563, 40
      %v933 = vpop.permute.xlu0 %932
      %934 = vrot.lane.b32.xlu0 %v564, 40
      %v935 = vpop.permute.xlu0 %934
      %936 = vrot.lane.b32.xlu0 %v565, 40
      %v937 = vpop.permute.xlu0 %936
      %938 = vrot.lane.b32.xlu0 %v566, 40
      %v939 = vpop.permute.xlu0 %938
      %940 = vrot.lane.b32.xlu0 %v567, 40
      %v941 = vpop.permute.xlu0 %940
      %942 = vrot.lane.b32.xlu0 %v568, 40
      %v943 = vpop.permute.xlu0 %942
      %944 = vrot.lane.b32.xlu0 %v569, 40
      %v945 = vpop.permute.xlu0 %944
      %946 = vrot.lane.b32.xlu0 %v570, 40
      %v947 = vpop.permute.xlu0 %946
      %948 = vrot.lane.b32.xlu0 %v571, 40
      %v949 = vpop.permute.xlu0 %948
      %950 = vrot.lane.b32.xlu0 %v572, 40
      %v951 = vpop.permute.xlu0 %950
      %952 = vrot.lane.b32.xlu0 %v573, 40
      %v953 = vpop.permute.xlu0 %952
      %954 = vrot.lane.b32.xlu0 %v574, 40
      %v955 = vpop.permute.xlu0 %954
      %956 = vrot.lane.b32.xlu0 %v575, 40
      %v957 = vpop.permute.xlu0 %956
      %958 = vrot.lane.b32.xlu0 %v576, 40
      %v959 = vpop.permute.xlu0 %958
      %960 = vrot.lane.b32.xlu0 %v577, 40
      %v961 = vpop.permute.xlu0 %960
      %962 = vrot.lane.b32.xlu0 %v578, 40
      %v963 = vpop.permute.xlu0 %962
      %980 = vrot.lane.b32.xlu0 %v612, 48
      %v981 = vpop.permute.xlu0 %980
      %982 = vrot.lane.b32.xlu0 %v613, 48
      %v983 = vpop.permute.xlu0 %982
      %984 = vrot.lane.b32.xlu0 %v614, 48
      %v985 = vpop.permute.xlu0 %984
      %986 = vrot.lane.b32.xlu0 %v615, 48
      %v987 = vpop.permute.xlu0 %986
      %988 = vrot.lane.b32.xlu0 %v616, 48
      %v989 = vpop.permute.xlu0 %988
      %990 = vrot.lane.b32.xlu0 %v617, 48
      %v991 = vpop.permute.xlu0 %990
      %992 = vrot.lane.b32.xlu0 %v618, 48
      %v993 = vpop.permute.xlu0 %992
      %994 = vrot.lane.b32.xlu0 %v619, 48
      %v995 = vpop.permute.xlu0 %994
      %996 = vrot.lane.b32.xlu0 %v620, 48
      %v997 = vpop.permute.xlu0 %996
      %998 = vrot.lane.b32.xlu0 %v621, 48
      %v999 = vpop.permute.xlu0 %998
      %1000 = vrot.lane.b32.xlu0 %v622, 48
      %v1001 = vpop.permute.xlu0 %1000
      %1002 = vrot.lane.b32.xlu0 %v623, 48
      %v1003 = vpop.permute.xlu0 %1002
      %1004 = vrot.lane.b32.xlu0 %v624, 48
      %v1005 = vpop.permute.xlu0 %1004
      %1006 = vrot.lane.b32.xlu0 %v625, 48
      %v1007 = vpop.permute.xlu0 %1006
      %1008 = vrot.lane.b32.xlu0 %v626, 48
      %v1009 = vpop.permute.xlu0 %1008
      %1010 = vrot.lane.b32.xlu0 %v627, 48
      %v1011 = vpop.permute.xlu0 %1010
      %1028 = vrot.lane.b32.xlu0 %v660, 56
      %v1029 = vpop.permute.xlu0 %1028
      %1030 = vrot.lane.b32.xlu0 %v661, 56
      %v1031 = vpop.permute.xlu0 %1030
      %1032 = vrot.lane.b32.xlu0 %v662, 56
      %v1033 = vpop.permute.xlu0 %1032
      %1034 = vrot.lane.b32.xlu0 %v663, 56
      %v1035 = vpop.permute.xlu0 %1034
      %1036 = vrot.lane.b32.xlu0 %v664, 56
      %v1037 = vpop.permute.xlu0 %1036
      %1038 = vrot.lane.b32.xlu0 %v665, 56
      %v1039 = vpop.permute.xlu0 %1038
      %1040 = vrot.lane.b32.xlu0 %v666, 56
      %v1041 = vpop.permute.xlu0 %1040
      %1042 = vrot.lane.b32.xlu0 %v667, 56
      %v1043 = vpop.permute.xlu0 %1042
      %1044 = vrot.lane.b32.xlu0 %v668, 56
      %v1045 = vpop.permute.xlu0 %1044
      %1046 = vrot.lane.b32.xlu0 %v669, 56
      %v1047 = vpop.permute.xlu0 %1046
      %1048 = vrot.lane.b32.xlu0 %v670, 56
      %v1049 = vpop.permute.xlu0 %1048
      %1050 = vrot.lane.b32.xlu0 %v671, 56
      %v1051 = vpop.permute.xlu0 %1050
      %1052 = vrot.lane.b32.xlu0 %v672, 56
      %v1053 = vpop.permute.xlu0 %1052
      %1054 = vrot.lane.b32.xlu0 %v673, 56
      %v1055 = vpop.permute.xlu0 %1054
      %1056 = vrot.lane.b32.xlu0 %v674, 56
      %v1057 = vpop.permute.xlu0 %1056
      %1058 = vrot.lane.b32.xlu0 %v675, 56
      %v1059 = vpop.permute.xlu0 %1058
      %1076 = vrot.lane.b32.xlu0 %v708, 64
      %v1077 = vpop.permute.xlu0 %1076
      %1078 = vrot.lane.b32.xlu0 %v709, 64
      %v1079 = vpop.permute.xlu0 %1078
      %1080 = vrot.lane.b32.xlu0 %v710, 64
      %v1081 = vpop.permute.xlu0 %1080
      %1082 = vrot.lane.b32.xlu0 %v711, 64
      %v1083 = vpop.permute.xlu0 %1082
      %1084 = vrot.lane.b32.xlu0 %v712, 64
      %v1085 = vpop.permute.xlu0 %1084
      %1086 = vrot.lane.b32.xlu0 %v713, 64
      %v1087 = vpop.permute.xlu0 %1086
      %1088 = vrot.lane.b32.xlu0 %v714, 64
      %v1089 = vpop.permute.xlu0 %1088
      %1090 = vrot.lane.b32.xlu0 %v715, 64
      %v1091 = vpop.permute.xlu0 %1090
      %1092 = vrot.lane.b32.xlu0 %v716, 64
      %v1093 = vpop.permute.xlu0 %1092
      %1094 = vrot.lane.b32.xlu0 %v717, 64
      %v1095 = vpop.permute.xlu0 %1094
      %1096 = vrot.lane.b32.xlu0 %v718, 64
      %v1097 = vpop.permute.xlu0 %1096
      %1098 = vrot.lane.b32.xlu0 %v719, 64
      %v1099 = vpop.permute.xlu0 %1098
      %1100 = vrot.lane.b32.xlu0 %v720, 64
      %v1101 = vpop.permute.xlu0 %1100
      %1102 = vrot.lane.b32.xlu0 %v721, 64
      %v1103 = vpop.permute.xlu0 %1102
      %1104 = vrot.lane.b32.xlu0 %v722, 64
      %v1105 = vpop.permute.xlu0 %1104
      %1106 = vrot.lane.b32.xlu0 %v723, 64
      %v1107 = vpop.permute.xlu0 %1106
      %v1110 = vsel %vm216, %v323, %v741
      %v1113 = vsel %vm216, %v324, %v743
      %v1116 = vsel %vm216, %v325, %v745
      %v1119 = vsel %vm216, %v326, %v747
      %v1122 = vsel %vm216, %v327, %v749
      %v1125 = vsel %vm216, %v328, %v751
      %v1128 = vsel %vm216, %v329, %v753
      %v1131 = vsel %vm216, %v330, %v755
      %v1134 = vsel %vm216, %v331, %v757
      %v1137 = vsel %vm216, %v332, %v759
      %v1140 = vsel %vm216, %v333, %v761
      %v1143 = vsel %vm216, %v334, %v763
      %v1146 = vsel %vm216, %v335, %v765
      %v1149 = vsel %vm216, %v336, %v767
      %v1152 = vsel %vm216, %v337, %v769
      %v1155 = vsel %vm216, %v338, %v771
      %vm1156 = vcmask 130048
      %v1158 = vsel %vm1156, %v1110, %v789
      %v1160 = vsel %vm1156, %v1113, %v791
      %v1162 = vsel %vm1156, %v1116, %v793
      %v1164 = vsel %vm1156, %v1119, %v795
      %v1166 = vsel %vm1156, %v1122, %v797
      %v1168 = vsel %vm1156, %v1125, %v799
      %v1170 = vsel %vm1156, %v1128, %v801
      %v1172 = vsel %vm1156, %v1131, %v803
      %v1174 = vsel %vm1156, %v1134, %v805
      %v1176 = vsel %vm1156, %v1137, %v807
      %v1178 = vsel %vm1156, %v1140, %v809
      %v1180 = vsel %vm1156, %v1143, %v811
      %v1182 = vsel %vm1156, %v1146, %v813
      %v1184 = vsel %vm1156, %v1149, %v815
      %v1186 = vsel %vm1156, %v1152, %v817
      %v1188 = vsel %vm1156, %v1155, %v819
      %vm1189 = vcmask 195584
      %v1191 = vsel %vm1189, %v1158, %v837
      %v1193 = vsel %vm1189, %v1160, %v839
      %v1195 = vsel %vm1189, %v1162, %v841
      %v1197 = vsel %vm1189, %v1164, %v843
      %v1199 = vsel %vm1189, %v1166, %v845
      %v1201 = vsel %vm1189, %v1168, %v847
      %v1203 = vsel %vm1189, %v1170, %v849
      %v1205 = vsel %vm1189, %v1172, %v851
      %v1207 = vsel %vm1189, %v1174, %v853
      %v1209 = vsel %vm1189, %v1176, %v855
      %v1211 = vsel %vm1189, %v1178, %v857
      %v1213 = vsel %vm1189, %v1180, %v859
      %v1215 = vsel %vm1189, %v1182, %v861
      %v1217 = vsel %vm1189, %v1184, %v863
      %v1219 = vsel %vm1189, %v1186, %v865
      %v1221 = vsel %vm1189, %v1188, %v867
      %vm1222 = vcmask 261120
      %v1224 = vsel %vm1222, %v1191, %v885
      %v1226 = vsel %vm1222, %v1193, %v887
      %v1228 = vsel %vm1222, %v1195, %v889
      %v1230 = vsel %vm1222, %v1197, %v891
      %v1232 = vsel %vm1222, %v1199, %v893
      %v1234 = vsel %vm1222, %v1201, %v895
      %v1236 = vsel %vm1222, %v1203, %v897
      %v1238 = vsel %vm1222, %v1205, %v899
      %v1240 = vsel %vm1222, %v1207, %v901
      %v1242 = vsel %vm1222, %v1209, %v903
      %v1244 = vsel %vm1222, %v1211, %v905
      %v1246 = vsel %vm1222, %v1213, %v907
      %v1248 = vsel %vm1222, %v1215, %v909
      %v1250 = vsel %vm1222, %v1217, %v911
      %v1252 = vsel %vm1222, %v1219, %v913
      %v1254 = vsel %vm1222, %v1221, %v915
      %vm1255 = vcmask 326656
      %v1257 = vsel %vm1255, %v1224, %v933
      %v1259 = vsel %vm1255, %v1226, %v935
      %v1261 = vsel %vm1255, %v1228, %v937
      %v1263 = vsel %vm1255, %v1230, %v939
      %v1265 = vsel %vm1255, %v1232, %v941
      %v1267 = vsel %vm1255, %v1234, %v943
      %v1269 = vsel %vm1255, %v1236, %v945
      %v1271 = vsel %vm1255, %v1238, %v947
      %v1273 = vsel %vm1255, %v1240, %v949
      %v1275 = vsel %vm1255, %v1242, %v951
      %v1277 = vsel %vm1255, %v1244, %v953
      %v1279 = vsel %vm1255, %v1246, %v955
      %v1281 = vsel %vm1255, %v1248, %v957
      %v1283 = vsel %vm1255, %v1250, %v959
      %v1285 = vsel %vm1255, %v1252, %v961
      %v1287 = vsel %vm1255, %v1254, %v963
      %vm1288 = vcmask 392192
      %v1290 = vsel %vm1288, %v1257, %v981
      %v1292 = vsel %vm1288, %v1259, %v983
      %v1294 = vsel %vm1288, %v1261, %v985
      %v1296 = vsel %vm1288, %v1263, %v987
      %v1298 = vsel %vm1288, %v1265, %v989
      %v1300 = vsel %vm1288, %v1267, %v991
      %v1302 = vsel %vm1288, %v1269, %v993
      %v1304 = vsel %vm1288, %v1271, %v995
      %v1306 = vsel %vm1288, %v1273, %v997
      %v1308 = vsel %vm1288, %v1275, %v999
      %v1310 = vsel %vm1288, %v1277, %v1001
      %v1312 = vsel %vm1288, %v1279, %v1003
      %v1314 = vsel %vm1288, %v1281, %v1005
      %v1316 = vsel %vm1288, %v1283, %v1007
      %v1318 = vsel %vm1288, %v1285, %v1009
      %v1320 = vsel %vm1288, %v1287, %v1011
      %vm1321 = vcmask 457728
      %v1323 = vsel %vm1321, %v1290, %v1029
      %v1325 = vsel %vm1321, %v1292, %v1031
      %v1327 = vsel %vm1321, %v1294, %v1033
      %v1329 = vsel %vm1321, %v1296, %v1035
      %v1331 = vsel %vm1321, %v1298, %v1037
      %v1333 = vsel %vm1321, %v1300, %v1039
      %v1335 = vsel %vm1321, %v1302, %v1041
      %v1337 = vsel %vm1321, %v1304, %v1043
      %v1339 = vsel %vm1321, %v1306, %v1045
      %v1341 = vsel %vm1321, %v1308, %v1047
      %v1343 = vsel %vm1321, %v1310, %v1049
      %v1345 = vsel %vm1321, %v1312, %v1051
      %v1347 = vsel %vm1321, %v1314, %v1053
      %v1349 = vsel %vm1321, %v1316, %v1055
      %v1351 = vsel %vm1321, %v1318, %v1057
      %v1353 = vsel %vm1321, %v1320, %v1059
      %vm1354 = vcmask 523264
      %v1356 = vsel %vm1354, %v1323, %v1077
      %v1358 = vsel %vm1354, %v1325, %v1079
      %v1360 = vsel %vm1354, %v1327, %v1081
      %v1362 = vsel %vm1354, %v1329, %v1083
      %v1364 = vsel %vm1354, %v1331, %v1085
      %v1366 = vsel %vm1354, %v1333, %v1087
      %v1368 = vsel %vm1354, %v1335, %v1089
      %v1370 = vsel %vm1354, %v1337, %v1091
      %v1372 = vsel %vm1354, %v1339, %v1093
      %v1374 = vsel %vm1354, %v1341, %v1095
      %v1376 = vsel %vm1354, %v1343, %v1097
      %v1378 = vsel %vm1354, %v1345, %v1099
      %v1380 = vsel %vm1354, %v1347, %v1101
      %v1382 = vsel %vm1354, %v1349, %v1103
      %v1384 = vsel %vm1354, %v1351, %v1105
      %v1386 = vsel %vm1354, %v1353, %v1107
      %v1387 = vld [vmem:[%s1] sm:$0xf]
      %v1388 = vld [vmem:[%s1 + $0x4] sm:$0xf]
      %v1389 = vld [vmem:[%s1 + $0x8] sm:$0xf]
      %v1390 = vld [vmem:[%s1 + $0xc] sm:$0xf]
      %v1391 = vld [vmem:[%s1 + $0x10] sm:$0xf]
      %v1392 = vld [vmem:[%s1 + $0x14] sm:$0xf]
      %v1393 = vld [vmem:[%s1 + $0x18] sm:$0xf]
      %v1394 = vld [vmem:[%s1 + $0x1c] sm:$0xf]
      %v1395 = vld [vmem:[%s1 + $0x20] sm:$0xf]
      %v1405 = vunpack.c.l.b16 %v1387
      %v1406 = vunpack.c.l.b16 %v1388
      %v1407 = vunpack.c.l.b16 %v1389
      %v1408 = vunpack.c.l.b16 %v1390
      %v1409 = vunpack.c.l.b16 %v1391
      %v1410 = vunpack.c.l.b16 %v1392
      %v1411 = vunpack.c.l.b16 %v1393
      %v1412 = vunpack.c.l.b16 %v1394
      %v1413 = vunpack.c.l.b16 %v1395
      %v1414 = vpack.c.b16 %v1406, %v1405
      %v1415 = vpack.c.b16 %v1408, %v1407
      %v1416 = vpack.c.b16 %v1410, %v1409
      %v1417 = vpack.c.b16 %v1412, %v1411
      %v1418 = vpack.c.b16 %v1413, %v1413
      %vm1423 = vcmask 588800
      %v1424 = vsel %vm1423, %v1356, 0
      %v1426 = vsel %vm1423, %v1358, 0
      %v1428 = vsel %vm1423, %v1360, 0
      %v1430 = vsel %vm1423, %v1362, 0
      %v1432 = vsel %vm1423, %v1364, 0
      %v1434 = vsel %vm1423, %v1366, 0
      %v1436 = vsel %vm1423, %v1368, 0
      %v1438 = vsel %vm1423, %v1370, 0
      %v1440 = vsel %vm1423, %v1372, 0
      %v1442 = vsel %vm1423, %v1374, 0
      %v1444 = vsel %vm1423, %v1376, 0
      %v1446 = vsel %vm1423, %v1378, 0
      %v1448 = vsel %vm1423, %v1380, 0
      %v1450 = vsel %vm1423, %v1382, 0
      %v1452 = vsel %vm1423, %v1384, 0
      %v1454 = vsel %vm1423, %v1386, 0
      %vm1456 = vcmask 1043456
      %v1458 = vsel %vm1456, %v1418, 0
      %1460 = vmatprep.subr.bf16.mxu0 0
      %1461 = vmatpush1.bf16.msra.mxu0 0
      %1462 = vmatprep.subr.bf16.mxu0 0
      %1463 = vmatpush1.bf16.msra.mxu0 0
      %1464 = vmatprep.subr.bf16.mxu0 0
      %1465 = vmatpush1.bf16.msra.mxu0 0
      %1466 = vmatprep.subr.bf16.mxu0 0
      %1467 = vmatpush1.bf16.msra.mxu0 %v1458
      %1468 = vmatprep.subr.bf16.mxu0 0
      %1469 = vmatpush1.bf16.msra.mxu0 %v1417
      %1470 = vmatprep.subr.bf16.mxu0 0
      %1471 = vmatpush1.bf16.msra.mxu0 %v1416
      %1472 = vmatprep.subr.bf16.mxu0 0
      %1473 = vmatpush1.bf16.msra.mxu0 %v1415
      %1474 = vmatprep.subr.bf16.mxu0 0
      %1475 = vmatpush1.bf16.msra.mxu0 %v1414
      %1476 = vmatprep.subr.bf16.mxu0 0
      %1477 = vmatpush2.bf16.msra.mxu0 0
      %1478 = vmatprep.subr.bf16.mxu0 0
      %1479 = vmatpush2.bf16.msra.mxu0 0
      %1480 = vmatprep.subr.bf16.mxu0 0
      %1481 = vmatpush2.bf16.msra.mxu0 0
      %1482 = vmatprep.subr.bf16.mxu0 0
      %1483 = vmatpush2.bf16.msra.mxu0 0
      %1484 = vmatprep.subr.bf16.mxu0 0
      %1485 = vmatpush2.bf16.msra.mxu0 0
      %1486 = vmatprep.subr.bf16.mxu0 0
      %1487 = vmatpush2.bf16.msra.mxu0 0
      %1488 = vmatprep.subr.bf16.mxu0 0
      %1489 = vmatpush2.bf16.msra.mxu0 0
      %1490 = vmatprep.subr.bf16.mxu0 0
      %1491 = vmatpush2.bf16.msra.mxu0 0
      %1492 = vmatprep.mubr.bf16.mxu0 0
      %1493 = vmatmul.mubr.bf16.gmra.mxu0 %v1424
      %v1494 = vpop.f32.mrf.mxu0
      %v1495 = vadd.f32 0.0, %v1494
      %v1496 = vpop.f32.mrf.mxu0
      %v1497 = vpop.f32.mrf.mxu0
      %v1498 = vadd.f32 0.0, %v1497
      %v1499 = vpop.f32.mrf.mxu0
      %1500 = vmatprep.mubr.bf16.mxu0 0
      %1501 = vmatmul.mubr.bf16.gmra.mxu0 %v1426
      %v1502 = vpop.f32.mrf.mxu0
      %v1503 = vadd.f32 0.0, %v1502
      %v1504 = vpop.f32.mrf.mxu0
      %v1505 = vpop.f32.mrf.mxu0
      %v1506 = vadd.f32 0.0, %v1505
      %v1507 = vpop.f32.mrf.mxu0
      %1508 = vmatprep.mubr.bf16.mxu0 0
      %1509 = vmatmul.mubr.bf16.gmra.mxu0 %v1428
      %v1510 = vpop.f32.mrf.mxu0
      %v1511 = vadd.f32 0.0, %v1510
      %v1512 = vpop.f32.mrf.mxu0
      %v1513 = vpop.f32.mrf.mxu0
      %v1514 = vadd.f32 0.0, %v1513
      %v1515 = vpop.f32.mrf.mxu0
      %1516 = vmatprep.mubr.bf16.mxu0 0
      %1517 = vmatmul.mubr.bf16.gmra.mxu0 %v1430
      %v1518 = vpop.f32.mrf.mxu0
      %v1519 = vadd.f32 0.0, %v1518
      %v1520 = vpop.f32.mrf.mxu0
      %v1521 = vpop.f32.mrf.mxu0
      %v1522 = vadd.f32 0.0, %v1521
      %v1523 = vpop.f32.mrf.mxu0
      %1524 = vmatprep.mubr.bf16.mxu0 0
      %1525 = vmatmul.mubr.bf16.gmra.mxu0 %v1432
      %v1526 = vpop.f32.mrf.mxu0
      %v1527 = vadd.f32 0.0, %v1526
      %v1528 = vpop.f32.mrf.mxu0
      %v1529 = vpop.f32.mrf.mxu0
      %v1530 = vadd.f32 0.0, %v1529
      %v1531 = vpop.f32.mrf.mxu0
      %1532 = vmatprep.mubr.bf16.mxu0 0
      %1533 = vmatmul.mubr.bf16.gmra.mxu0 %v1434
      %v1534 = vpop.f32.mrf.mxu0
      %v1535 = vadd.f32 0.0, %v1534
      %v1536 = vpop.f32.mrf.mxu0
      %v1537 = vpop.f32.mrf.mxu0
      %v1538 = vadd.f32 0.0, %v1537
      %v1539 = vpop.f32.mrf.mxu0
      %1540 = vmatprep.mubr.bf16.mxu0 0
      %1541 = vmatmul.mubr.bf16.gmra.mxu0 %v1436
      %v1542 = vpop.f32.mrf.mxu0
      %v1543 = vadd.f32 0.0, %v1542
      %v1544 = vpop.f32.mrf.mxu0
      %v1545 = vpop.f32.mrf.mxu0
      %v1546 = vadd.f32 0.0, %v1545
      %v1547 = vpop.f32.mrf.mxu0
      %1548 = vmatprep.mubr.bf16.mxu0 0
      %1549 = vmatmul.mubr.bf16.gmra.mxu0 %v1438
      %v1550 = vpop.f32.mrf.mxu0
      %v1551 = vadd.f32 0.0, %v1550
      %v1552 = vpop.f32.mrf.mxu0
      %v1553 = vpop.f32.mrf.mxu0
      %v1554 = vadd.f32 0.0, %v1553
      %v1555 = vpop.f32.mrf.mxu0
      %1556 = vmatprep.mubr.bf16.mxu0 0
      %1557 = vmatmul.mubr.bf16.gmra.mxu0 %v1440
      %v1558 = vpop.f32.mrf.mxu0
      %v1559 = vadd.f32 0.0, %v1558
      %v1560 = vpop.f32.mrf.mxu0
      %v1561 = vpop.f32.mrf.mxu0
      %v1562 = vadd.f32 0.0, %v1561
      %v1563 = vpop.f32.mrf.mxu0
      %1564 = vmatprep.mubr.bf16.mxu0 0
      %1565 = vmatmul.mubr.bf16.gmra.mxu0 %v1442
      %v1566 = vpop.f32.mrf.mxu0
      %v1567 = vadd.f32 0.0, %v1566
      %v1568 = vpop.f32.mrf.mxu0
      %v1569 = vpop.f32.mrf.mxu0
      %v1570 = vadd.f32 0.0, %v1569
      %v1571 = vpop.f32.mrf.mxu0
      %1572 = vmatprep.mubr.bf16.mxu0 0
      %1573 = vmatmul.mubr.bf16.gmra.mxu0 %v1444
      %v1574 = vpop.f32.mrf.mxu0
      %v1575 = vadd.f32 0.0, %v1574
      %v1576 = vpop.f32.mrf.mxu0
      %v1577 = vpop.f32.mrf.mxu0
      %v1578 = vadd.f32 0.0, %v1577
      %v1579 = vpop.f32.mrf.mxu0
      %1580 = vmatprep.mubr.bf16.mxu0 0
      %1581 = vmatmul.mubr.bf16.gmra.mxu0 %v1446
      %v1582 = vpop.f32.mrf.mxu0
      %v1583 = vadd.f32 0.0, %v1582
      %v1584 = vpop.f32.mrf.mxu0
      %v1585 = vpop.f32.mrf.mxu0
      %v1586 = vadd.f32 0.0, %v1585
      %v1587 = vpop.f32.mrf.mxu0
      %1588 = vmatprep.mubr.bf16.mxu0 0
      %1589 = vmatmul.mubr.bf16.gmra.mxu0 %v1448
      %v1590 = vpop.f32.mrf.mxu0
      %v1591 = vadd.f32 0.0, %v1590
      %v1592 = vpop.f32.mrf.mxu0
      %v1593 = vpop.f32.mrf.mxu0
      %v1594 = vadd.f32 0.0, %v1593
      %v1595 = vpop.f32.mrf.mxu0
      %1596 = vmatprep.mubr.bf16.mxu0 0
      %1597 = vmatmul.mubr.bf16.gmra.mxu0 %v1450
      %v1598 = vpop.f32.mrf.mxu0
      %v1599 = vadd.f32 0.0, %v1598
      %v1600 = vpop.f32.mrf.mxu0
      %v1601 = vpop.f32.mrf.mxu0
      %v1602 = vadd.f32 0.0, %v1601
      %v1603 = vpop.f32.mrf.mxu0
      %1604 = vmatprep.mubr.bf16.mxu0 0
      %1605 = vmatmul.mubr.bf16.gmra.mxu0 %v1452
      %v1606 = vpop.f32.mrf.mxu0
      %v1607 = vadd.f32 0.0, %v1606
      %v1608 = vpop.f32.mrf.mxu0
      %v1609 = vpop.f32.mrf.mxu0
      %v1610 = vadd.f32 0.0, %v1609
      %v1611 = vpop.f32.mrf.mxu0
      %1612 = vmatprep.mubr.bf16.mxu0 0
      %1613 = vmatmul.mubr.bf16.gmra.mxu0 %v1454
      %v1614 = vpop.f32.mrf.mxu0
      %v1615 = vadd.f32 0.0, %v1614
      %v1616 = vpop.f32.mrf.mxu0
      %v1617 = vpop.f32.mrf.mxu0
      %v1618 = vadd.f32 0.0, %v1617
      %v1619 = vpop.f32.mrf.mxu0
      %1620 = vdwg.mxu0
      %v1621 = vpack.c.bf16 %v1498, %v1495
      %v1622 = vpack.c.bf16 %v1506, %v1503
      %v1623 = vpack.c.bf16 %v1514, %v1511
      %v1624 = vpack.c.bf16 %v1522, %v1519
      %v1625 = vpack.c.bf16 %v1530, %v1527
      %v1626 = vpack.c.bf16 %v1538, %v1535
      %v1627 = vpack.c.bf16 %v1546, %v1543
      %v1628 = vpack.c.bf16 %v1554, %v1551
      %v1629 = vpack.c.bf16 %v1562, %v1559
      %v1630 = vpack.c.bf16 %v1570, %v1567
      %v1631 = vpack.c.bf16 %v1578, %v1575
      %v1632 = vpack.c.bf16 %v1586, %v1583
      %v1633 = vpack.c.bf16 %v1594, %v1591
      %v1634 = vpack.c.bf16 %v1602, %v1599
      %v1635 = vpack.c.bf16 %v1610, %v1607
      %v1636 = vpack.c.bf16 %v1618, %v1615
      %v1653 = vunpack.c.l.b16 %v1621
      %v1654 = vunpack.c.h.b16 %v1621
      %v1655 = vunpack.c.l.b16 %v1622
      %v1656 = vunpack.c.h.b16 %v1622
      %v1657 = vunpack.c.l.b16 %v1623
      %v1658 = vunpack.c.h.b16 %v1623
      %v1659 = vunpack.c.l.b16 %v1624
      %v1660 = vunpack.c.h.b16 %v1624
      %v1661 = vunpack.c.l.b16 %v1625
      %v1662 = vunpack.c.h.b16 %v1625
      %v1663 = vunpack.c.l.b16 %v1626
      %v1664 = vunpack.c.h.b16 %v1626
      %v1665 = vunpack.c.l.b16 %v1627
      %v1666 = vunpack.c.h.b16 %v1627
      %v1667 = vunpack.c.l.b16 %v1628
      %v1668 = vunpack.c.h.b16 %v1628
      %v1669 = vunpack.c.l.b16 %v1629
      %v1670 = vunpack.c.h.b16 %v1629
      %v1671 = vunpack.c.l.b16 %v1630
      %v1672 = vunpack.c.h.b16 %v1630
      %v1673 = vunpack.c.l.b16 %v1631
      %v1674 = vunpack.c.h.b16 %v1631
      %v1675 = vunpack.c.l.b16 %v1632
      %v1676 = vunpack.c.h.b16 %v1632
      %v1677 = vunpack.c.l.b16 %v1633
      %v1678 = vunpack.c.h.b16 %v1633
      %v1679 = vunpack.c.l.b16 %v1634
      %v1680 = vunpack.c.h.b16 %v1634
      %v1681 = vunpack.c.l.b16 %v1635
      %v1682 = vunpack.c.h.b16 %v1635
      %v1683 = vunpack.c.l.b16 %v1636
      %v1684 = vunpack.c.h.b16 %v1636
      %v1685 = vpack.c.b16 %v1653, %v1653
      %v1686 = vpack.c.b16 %v1654, %v1654
      %v1687 = vpack.c.b16 %v1655, %v1655
      %v1688 = vpack.c.b16 %v1656, %v1656
      %v1689 = vpack.c.b16 %v1657, %v1657
      %v1690 = vpack.c.b16 %v1658, %v1658
      %v1691 = vpack.c.b16 %v1659, %v1659
      %v1692 = vpack.c.b16 %v1660, %v1660
      %v1693 = vpack.c.b16 %v1661, %v1661
      %v1694 = vpack.c.b16 %v1662, %v1662
      %v1695 = vpack.c.b16 %v1663, %v1663
      %v1696 = vpack.c.b16 %v1664, %v1664
      %v1697 = vpack.c.b16 %v1665, %v1665
      %v1698 = vpack.c.b16 %v1666, %v1666
      %v1699 = vpack.c.b16 %v1667, %v1667
      %v1700 = vpack.c.b16 %v1668, %v1668
      %v1701 = vpack.c.b16 %v1669, %v1669
      %v1702 = vpack.c.b16 %v1670, %v1670
      %v1703 = vpack.c.b16 %v1671, %v1671
      %v1704 = vpack.c.b16 %v1672, %v1672
      %v1705 = vpack.c.b16 %v1673, %v1673
      %v1706 = vpack.c.b16 %v1674, %v1674
      %v1707 = vpack.c.b16 %v1675, %v1675
      %v1708 = vpack.c.b16 %v1676, %v1676
      %v1709 = vpack.c.b16 %v1677, %v1677
      %v1710 = vpack.c.b16 %v1678, %v1678
      %v1711 = vpack.c.b16 %v1679, %v1679
      %v1712 = vpack.c.b16 %v1680, %v1680
      %v1713 = vpack.c.b16 %v1681, %v1681
      %v1714 = vpack.c.b16 %v1682, %v1682
      %v1715 = vpack.c.b16 %v1683, %v1683
      %v1716 = vpack.c.b16 %v1684, %v1684
      %vm1749 = vcmask 60416
      %1750 = vst.msk [vmem:[%s177] sm:$0xf] %vm1749, %v1685
      %1751 = vst.msk [vmem:[%s177 + $0x4] sm:$0xf] %vm1749, %v1686
      %1752 = vst.msk [vmem:[%s177 + $0x8] sm:$0xf] %vm1749, %v1687
      %1753 = vst.msk [vmem:[%s177 + $0xc] sm:$0xf] %vm1749, %v1688
      %1754 = vst.msk [vmem:[%s177 + $0x10] sm:$0xf] %vm1749, %v1689
      %1755 = vst.msk [vmem:[%s177 + $0x14] sm:$0xf] %vm1749, %v1690
      %1756 = vst.msk [vmem:[%s177 + $0x18] sm:$0xf] %vm1749, %v1691
      %1757 = vst.msk [vmem:[%s177 + $0x1c] sm:$0xf] %vm1749, %v1692
      %1758 = vst.msk [vmem:[%s177 + $0x20] sm:$0xf] %vm1749, %v1693
      %1759 = vst.msk [vmem:[%s177 + $0x24] sm:$0xf] %vm1749, %v1694
      %1760 = vst.msk [vmem:[%s177 + $0x28] sm:$0xf] %vm1749, %v1695
      %1761 = vst.msk [vmem:[%s177 + $0x2c] sm:$0xf] %vm1749, %v1696
      %1762 = vst.msk [vmem:[%s177 + $0x30] sm:$0xf] %vm1749, %v1697
      %1763 = vst.msk [vmem:[%s177 + $0x34] sm:$0xf] %vm1749, %v1698
      %1764 = vst.msk [vmem:[%s177 + $0x38] sm:$0xf] %vm1749, %v1699
      %1765 = vst.msk [vmem:[%s177 + $0x3c] sm:$0xf] %vm1749, %v1700
      %1766 = vst.msk [vmem:[%s177 + $0x40] sm:$0xf] %vm1749, %v1701
      %1767 = vst.msk [vmem:[%s177 + $0x44] sm:$0xf] %vm1749, %v1702
      %1768 = vst.msk [vmem:[%s177 + $0x48] sm:$0xf] %vm1749, %v1703
      %1769 = vst.msk [vmem:[%s177 + $0x4c] sm:$0xf] %vm1749, %v1704
      %1770 = vst.msk [vmem:[%s177 + $0x50] sm:$0xf] %vm1749, %v1705
      %1771 = vst.msk [vmem:[%s177 + $0x54] sm:$0xf] %vm1749, %v1706
      %1772 = vst.msk [vmem:[%s177 + $0x58] sm:$0xf] %vm1749, %v1707
      %1773 = vst.msk [vmem:[%s177 + $0x5c] sm:$0xf] %vm1749, %v1708
      %1774 = vst.msk [vmem:[%s177 + $0x60] sm:$0xf] %vm1749, %v1709
      %1775 = vst.msk [vmem:[%s177 + $0x64] sm:$0xf] %vm1749, %v1710
      %1776 = vst.msk [vmem:[%s177 + $0x68] sm:$0xf] %vm1749, %v1711
      %1777 = vst.msk [vmem:[%s177 + $0x6c] sm:$0xf] %vm1749, %v1712
      %1778 = vst.msk [vmem:[%s177 + $0x70] sm:$0xf] %vm1749, %v1713
      %1779 = vst.msk [vmem:[%s177 + $0x74] sm:$0xf] %vm1749, %v1714
      %1780 = vst.msk [vmem:[%s177 + $0x78] sm:$0xf] %vm1749, %v1715
      %1781 = vst.msk [vmem:[%s177 + $0x7c] sm:$0xf] %vm1749, %v1716
      %v1782 = vsel %vm216, %v1495, 0.0
      %v1783 = vsel %vm216, %v1498, 0.0
      %v1784 = vadd.f32 %v1782, %v1783
      %v1785 = vsel %vm216, %v1503, 0.0
      %v1786 = vadd.f32 %v1784, %v1785
      %v1787 = vsel %vm216, %v1506, 0.0
      %v1788 = vadd.f32 %v1786, %v1787
      %v1789 = vsel %vm216, %v1511, 0.0
      %v1790 = vadd.f32 %v1788, %v1789
      %v1791 = vsel %vm216, %v1514, 0.0
      %v1792 = vadd.f32 %v1790, %v1791
      %v1793 = vsel %vm216, %v1519, 0.0
      %v1794 = vadd.f32 %v1792, %v1793
      %v1795 = vsel %vm216, %v1522, 0.0
      %v1796 = vadd.f32 %v1794, %v1795
      %v1797 = vsel %vm216, %v1527, 0.0
      %v1798 = vadd.f32 %v1796, %v1797
      %v1799 = vsel %vm216, %v1530, 0.0
      %v1800 = vadd.f32 %v1798, %v1799
      %v1801 = vsel %vm216, %v1535, 0.0
      %v1802 = vadd.f32 %v1800, %v1801
      %v1803 = vsel %vm216, %v1538, 0.0
      %v1804 = vadd.f32 %v1802, %v1803
      %v1805 = vsel %vm216, %v1543, 0.0
      %v1806 = vadd.f32 %v1804, %v1805
      %v1807 = vsel %vm216, %v1546, 0.0
      %v1808 = vadd.f32 %v1806, %v1807
      %v1809 = vsel %vm216, %v1551, 0.0
      %v1810 = vadd.f32 %v1808, %v1809
      %v1811 = vsel %vm216, %v1554, 0.0
      %v1812 = vadd.f32 %v1810, %v1811
      %v1813 = vsel %vm216, %v1559, 0.0
      %v1814 = vadd.f32 %v1812, %v1813
      %v1815 = vsel %vm216, %v1562, 0.0
      %v1816 = vadd.f32 %v1814, %v1815
      %v1817 = vsel %vm216, %v1567, 0.0
      %v1818 = vadd.f32 %v1816, %v1817
      %v1819 = vsel %vm216, %v1570, 0.0
      %v1820 = vadd.f32 %v1818, %v1819
      %v1821 = vsel %vm216, %v1575, 0.0
      %v1822 = vadd.f32 %v1820, %v1821
      %v1823 = vsel %vm216, %v1578, 0.0
      %v1824 = vadd.f32 %v1822, %v1823
      %v1825 = vsel %vm216, %v1583, 0.0
      %v1826 = vadd.f32 %v1824, %v1825
      %v1827 = vsel %vm216, %v1586, 0.0
      %v1828 = vadd.f32 %v1826, %v1827
      %v1829 = vsel %vm216, %v1591, 0.0
      %v1830 = vadd.f32 %v1828, %v1829
      %v1831 = vsel %vm216, %v1594, 0.0
      %v1832 = vadd.f32 %v1830, %v1831
      %v1833 = vsel %vm216, %v1599, 0.0
      %v1834 = vadd.f32 %v1832, %v1833
      %v1835 = vsel %vm216, %v1602, 0.0
      %v1836 = vadd.f32 %v1834, %v1835
      %v1837 = vsel %vm216, %v1607, 0.0
      %v1838 = vadd.f32 %v1836, %v1837
      %v1839 = vsel %vm216, %v1610, 0.0
      %v1840 = vadd.f32 %v1838, %v1839
      %v1841 = vsel %vm216, %v1615, 0.0
      %v1842 = vadd.f32 %v1840, %v1841
      %v1843 = vsel %vm216, %v1618, 0.0
      %v1844 = vadd.f32 %v1842, %v1843
      %v1845 = vrot.slane %v1844, 4
      %v1846 = vadd.f32 %v1844, %v1845
      %v1847 = vrot.slane %v1846, 2
      %v1848 = vadd.f32 %v1846, %v1847
      %v1849 = vrot.slane %v1848, 1
      %v1850 = vadd.f32 %v1848, %v1849
      %v1851 = vmul.f32 %v1850, 0.00390625
      %v1852 = vsub.f32 %v1495, %v1851
      %v1853 = vsub.f32 %v1498, %v1851
      %v1854 = vsub.f32 %v1503, %v1851
      %v1855 = vsub.f32 %v1506, %v1851
      %v1856 = vsub.f32 %v1511, %v1851
      %v1857 = vsub.f32 %v1514, %v1851
      %v1858 = vsub.f32 %v1519, %v1851
      %v1859 = vsub.f32 %v1522, %v1851
      %v1860 = vsub.f32 %v1527, %v1851
      %v1861 = vsub.f32 %v1530, %v1851
      %v1862 = vsub.f32 %v1535, %v1851
      %v1863 = vsub.f32 %v1538, %v1851
      %v1864 = vsub.f32 %v1543, %v1851
      %v1865 = vsub.f32 %v1546, %v1851
      %v1866 = vsub.f32 %v1551, %v1851
      %v1867 = vsub.f32 %v1554, %v1851
      %v1868 = vsub.f32 %v1559, %v1851
      %v1869 = vsub.f32 %v1562, %v1851
      %v1870 = vsub.f32 %v1567, %v1851
      %v1871 = vsub.f32 %v1570, %v1851
      %v1872 = vsub.f32 %v1575, %v1851
      %v1873 = vsub.f32 %v1578, %v1851
      %v1874 = vsub.f32 %v1583, %v1851
      %v1875 = vsub.f32 %v1586, %v1851
      %v1876 = vsub.f32 %v1591, %v1851
      %v1877 = vsub.f32 %v1594, %v1851
      %v1878 = vsub.f32 %v1599, %v1851
      %v1879 = vsub.f32 %v1602, %v1851
      %v1880 = vsub.f32 %v1607, %v1851
      %v1881 = vsub.f32 %v1610, %v1851
      %v1882 = vsub.f32 %v1615, %v1851
      %v1883 = vsub.f32 %v1618, %v1851
      %v1884 = vmul.f32 %v1852, %v1852
      %v1885 = vmul.f32 %v1853, %v1853
      %v1886 = vmul.f32 %v1854, %v1854
      %v1887 = vmul.f32 %v1855, %v1855
      %v1888 = vmul.f32 %v1856, %v1856
      %v1889 = vmul.f32 %v1857, %v1857
      %v1890 = vmul.f32 %v1858, %v1858
      %v1891 = vmul.f32 %v1859, %v1859
      %v1892 = vmul.f32 %v1860, %v1860
      %v1893 = vmul.f32 %v1861, %v1861
      %v1894 = vmul.f32 %v1862, %v1862
      %v1895 = vmul.f32 %v1863, %v1863
      %v1896 = vmul.f32 %v1864, %v1864
      %v1897 = vmul.f32 %v1865, %v1865
      %v1898 = vmul.f32 %v1866, %v1866
      %v1899 = vmul.f32 %v1867, %v1867
      %v1900 = vmul.f32 %v1868, %v1868
      %v1901 = vmul.f32 %v1869, %v1869
      %v1902 = vmul.f32 %v1870, %v1870
      %v1903 = vmul.f32 %v1871, %v1871
      %v1904 = vmul.f32 %v1872, %v1872
      %v1905 = vmul.f32 %v1873, %v1873
      %v1906 = vmul.f32 %v1874, %v1874
      %v1907 = vmul.f32 %v1875, %v1875
      %v1908 = vmul.f32 %v1876, %v1876
      %v1909 = vmul.f32 %v1877, %v1877
      %v1910 = vmul.f32 %v1878, %v1878
      %v1911 = vmul.f32 %v1879, %v1879
      %v1912 = vmul.f32 %v1880, %v1880
      %v1913 = vmul.f32 %v1881, %v1881
      %v1914 = vmul.f32 %v1882, %v1882
      %v1915 = vmul.f32 %v1883, %v1883
      %v1916 = vsel %vm216, %v1884, 0.0
      %v1917 = vsel %vm216, %v1885, 0.0
      %v1918 = vadd.f32 %v1916, %v1917
      %v1919 = vsel %vm216, %v1886, 0.0
      %v1920 = vadd.f32 %v1918, %v1919
      %v1921 = vsel %vm216, %v1887, 0.0
      %v1922 = vadd.f32 %v1920, %v1921
      %v1923 = vsel %vm216, %v1888, 0.0
      %v1924 = vadd.f32 %v1922, %v1923
      %v1925 = vsel %vm216, %v1889, 0.0
      %v1926 = vadd.f32 %v1924, %v1925
      %v1927 = vsel %vm216, %v1890, 0.0
      %v1928 = vadd.f32 %v1926, %v1927
      %v1929 = vsel %vm216, %v1891, 0.0
      %v1930 = vadd.f32 %v1928, %v1929
      %v1931 = vsel %vm216, %v1892, 0.0
      %v1932 = vadd.f32 %v1930, %v1931
      %v1933 = vsel %vm216, %v1893, 0.0
      %v1934 = vadd.f32 %v1932, %v1933
      %v1935 = vsel %vm216, %v1894, 0.0
      %v1936 = vadd.f32 %v1934, %v1935
      %v1937 = vsel %vm216, %v1895, 0.0
      %v1938 = vadd.f32 %v1936, %v1937
      %v1939 = vsel %vm216, %v1896, 0.0
      %v1940 = vadd.f32 %v1938, %v1939
      %v1941 = vsel %vm216, %v1897, 0.0
      %v1942 = vadd.f32 %v1940, %v1941
      %v1943 = vsel %vm216, %v1898, 0.0
      %v1944 = vadd.f32 %v1942, %v1943
      %v1945 = vsel %vm216, %v1899, 0.0
      %v1946 = vadd.f32 %v1944, %v1945
      %v1947 = vsel %vm216, %v1900, 0.0
      %v1948 = vadd.f32 %v1946, %v1947
      %v1949 = vsel %vm216, %v1901, 0.0
      %v1950 = vadd.f32 %v1948, %v1949
      %v1951 = vsel %vm216, %v1902, 0.0
      %v1952 = vadd.f32 %v1950, %v1951
      %v1953 = vsel %vm216, %v1903, 0.0
      %v1954 = vadd.f32 %v1952, %v1953
      %v1955 = vsel %vm216, %v1904, 0.0
      %v1956 = vadd.f32 %v1954, %v1955
      %v1957 = vsel %vm216, %v1905, 0.0
      %v1958 = vadd.f32 %v1956, %v1957
      %v1959 = vsel %vm216, %v1906, 0.0
      %v1960 = vadd.f32 %v1958, %v1959
      %v1961 = vsel %vm216, %v1907, 0.0
      %v1962 = vadd.f32 %v1960, %v1961
      %v1963 = vsel %vm216, %v1908, 0.0
      %v1964 = vadd.f32 %v1962, %v1963
      %v1965 = vsel %vm216, %v1909, 0.0
      %v1966 = vadd.f32 %v1964, %v1965
      %v1967 = vsel %vm216, %v1910, 0.0
      %v1968 = vadd.f32 %v1966, %v1967
      %v1969 = vsel %vm216, %v1911, 0.0
      %v1970 = vadd.f32 %v1968, %v1969
      %v1971 = vsel %vm216, %v1912, 0.0
      %v1972 = vadd.f32 %v1970, %v1971
      %v1973 = vsel %vm216, %v1913, 0.0
      %v1974 = vadd.f32 %v1972, %v1973
      %v1975 = vsel %vm216, %v1914, 0.0
      %v1976 = vadd.f32 %v1974, %v1975
      %v1977 = vsel %vm216, %v1915, 0.0
      %v1978 = vadd.f32 %v1976, %v1977
      %v1979 = vrot.slane %v1978, 4
      %v1980 = vadd.f32 %v1978, %v1979
      %v1981 = vrot.slane %v1980, 2
      %v1982 = vadd.f32 %v1980, %v1981
      %v1983 = vrot.slane %v1982, 1
      %v1984 = vadd.f32 %v1982, %v1983
      %vm1985 = vcmask 1040384
      %v1986 = vsel %vm1985, %v1850, %v1984
      %1987 = vst.msk [vmem:[%s182] sm:$0x3] %vm219, %v1986
      %s1988 = smul.u32 32, %s15
      %p1989 = scmp.lt.s32.totalorder %s1988, 63
      %s1990 = scalar_select %p1989, %s1988, 63
      %s1991 = smul.addr %s1990, 4
      %s1992 = scalar_lea.vmem %s2, %s1991
      %p1993 = scmp.lt.s32.totalorder %s15, 1
      %s1994 = scalar_select %p1993, %s15, 1
      %s1995 = smul.addr %s1994, 2
      %s1996 = scalar_lea.vmem %s3, %s1995
      // Predicated region
      $region29: #{basic_block_forward.3} parent=27 // pred_check
        %p1997 = pneg %p80
      $region30: #{basic_block_forward.3} parent=27 // pred_check_branch
        %1999 = sbr.rel (%p1997) target = $region32
      $region31: #{basic_block_forward.3} parent=27 // pred_region
        %s2000 = smul.u32 32, %s15
      $region32: #{basic_block_forward.3} parent=27 // pred_fallthru
        _
      // Predicated region
      $region33: #{basic_block_forward.3} parent=27 // pred_check
        %p2001 = pneg %p106
      $region34: #{basic_block_forward.3} parent=27 // pred_check_branch
        %2003 = sbr.rel (%p2001) target = $region36
      $region35: #{basic_block_forward.3} parent=27 // pred_region
        _
      $region36: #{basic_block_forward.3} parent=27 // pred_fallthru
        _
    $region28: #{basic_block_forward.3} parent=5 // pred_fallthru
      _
    %p2004 = scmp.le.s32.totalorder 2, %s10
    // Predicated region
    $region37: #{basic_block_forward.3} parent=5 // pred_check
      %p2005 = pneg %p2004
    $region38: #{basic_block_forward.3} parent=5 // pred_check_branch
      %2007 = sbr.rel (%p2005) target = $region40
    $region39: #{basic_block_forward.3} parent=5 // pred_region
      %s2008 = ssub.s32 %s10, 2
      // Predicated region
      $region41: #{basic_block_forward.3} parent=39 // pred_check
        %p2009 = pneg %p86
      $region42: #{basic_block_forward.3} parent=39 // pred_check_branch
        %2011 = sbr.rel (%p2009) target = $region44
      $region43: #{basic_block_forward.3} parent=39 // pred_region
        %s2012 = smul.u32 32, %s16
        %p2013 = scmp.lt.s32.totalorder %s2012, 63
        %s2014 = scalar_select %p2013, %s2012, 63
        %s2015 = smul.addr %s2014, 4
        %s2016 = scalar_lea.vmem %s2, %s2015
      $region44: #{basic_block_forward.3} parent=39 // pred_fallthru
        _
      // Predicated region
      $region45: #{basic_block_forward.3} parent=39 // pred_check
        %p2017 = pneg %p112
      $region46: #{basic_block_forward.3} parent=39 // pred_check_branch
        %2019 = sbr.rel (%p2017) target = $region48
      $region47: #{basic_block_forward.3} parent=39 // pred_region
        %p2020 = scmp.lt.s32.totalorder %s16, 1
        %s2021 = scalar_select %p2020, %s16, 1
        %s2022 = smul.addr %s2021, 2
        %s2023 = scalar_lea.vmem %s3, %s2022
      $region48: #{basic_block_forward.3} parent=39 // pred_fallthru
        _
    $region40: #{basic_block_forward.3} parent=5 // pred_fallthru
      _
  $region6: #{basic_block_forward.3} parent=0 // loop_footer
    %s14 = sadd.s32 1, %s10
  $region7: #{basic_block_forward.3} parent=0 // loop_footer_branch
    %9 = sbr.rel target = $region3
  $region8: #{basic_block_forward.3} parent=0 // loop_exit
    _

// kernel: basic_block_forward.5
$region0: #{basic_block_forward.5}
  #allocation0 [shape = 'u32[]', space=smem, size = 0x4, offset = 0x4, fixed_abs, tag = 'smem constant byte address 0x4 - core index']
  #allocation1 [shape = 'u32[144,128]{1,0:T(1,128)}', space=vmem, size = 0x12000, scoped, tag = 'internal scratch']
  %s0 = inlined_call_operand.vmem [shape: bf16[32,128], index: 0, kind: input, shape index: {}]
  %s1 = inlined_call_operand.vmem [shape: f32[32,128], index: 1, kind: input, shape index: {}]
  %s2 = inlined_call_operand.vmem [shape: f32[1,128], index: 2, kind: input, shape index: {}]
  %s3 = inlined_call_operand.vmem [shape: f32[1,128], index: 3, kind: input, shape index: {}]
  %s4 = inlined_call_operand.vmem [shape: f32[32,128], index: 4, kind: output, shape index: {}]
  %s5 = sld [smem:[#allocation0]]
  $region49: #{basic_block_forward.5} parent=0
    _
  %s7 = ssub.s32 1, %s5
  %s8 = scalar_select 0, %s7, %s5
  loop: start=0, step=1, limit=4
  $region2: #{basic_block_forward.5} parent=0 // loop_pre_header
    _
  $region3: #{basic_block_forward.5} parent=0 // loop_header
    %s10 = sphi 0, %s14
    %p11 = scmp.ge.s32.totalorder %s10, 4
    %s20 = sphi 0, %s22
    %s23 = sphi 0, %s20
    %s24 = sphi 0, %s23
    %s40 = sphi 0, %s24
    %s46 = sphi 0, %s48
    %s49 = sphi 0, %s46
    %s50 = sphi 0, %s49
    %s66 = sphi 0, %s50
    %s70 = sphi 0, %s70
    %s72 = sphi 0, %s70
    %s73 = sphi 0, %s72
    %s87 = sphi 0, %s73
    %s91 = sphi 0, %s91
    %s93 = sphi 0, %s91
    %s94 = sphi 0, %s93
    %s108 = sphi 0, %s94
    %s114 = sphi 0, %s116
    %s117 = sphi 0, %s114
    %s118 = sphi 0, %s117
    %s134 = sphi 0, %s118
  $region4: #{basic_block_forward.5} parent=0 // loop_header_branch
    %13 = sbr.rel (%p11) target = $region8
  $region5: #{basic_block_forward.5} parent=0 // loop_body
    %s15 = ssub.s32 %s10, 1
    %s16 = ssub.s32 %s10, 2
    %s17 = sadd.s32 %s10, 1
    %s18 = ssub.s32 %s10, %s17
    %p19 = scmp.eq.s32.totalorder %s18, 0
    %s21 = sadd.s32 %s20, 1
    %s22 = scalar_select %p19, %s20, %s21
    %p25 = pneg %p19
    %p26 = scmp.eq.s32.totalorder %s10, 1
    %p27 = por %p25, %p26
    %p28 = scmp.ne.s32.totalorder %s20, %s23
    %p29 = scmp.eq.s32.totalorder %s10, 0
    %p30 = por %p28, %p29
    %p31 = scmp.ne.s32.totalorder %s20, %s23
    %p32 = scmp.eq.s32.totalorder %s15, 1
    %p33 = por %p31, %p32
    %p34 = scmp.ne.s32.totalorder %s23, %s24
    %p35 = scmp.eq.s32.totalorder %s15, 0
    %p36 = por %p34, %p35
    %p37 = scmp.ne.s32.totalorder %s23, %s24
    %p38 = scmp.eq.s32.totalorder %s16, 1
    %p39 = por %p37, %p38
    %p41 = scmp.ne.s32.totalorder %s24, %s40
    %p42 = scmp.eq.s32.totalorder %s16, 0
    %p43 = por %p41, %p42
    %s44 = ssub.s32 %s10, %s17
    %p45 = scmp.eq.s32.totalorder %s44, 0
    %s47 = sadd.s32 %s46, 1
    %s48 = scalar_select %p45, %s46, %s47
    %p51 = pneg %p45
    %p52 = scmp.eq.s32.totalorder %s10, 1
    %p53 = por %p51, %p52
    %p54 = scmp.ne.s32.totalorder %s46, %s49
    %p55 = scmp.eq.s32.totalorder %s10, 0
    %p56 = por %p54, %p55
    %p57 = scmp.ne.s32.totalorder %s46, %s49
    %p58 = scmp.eq.s32.totalorder %s15, 1
    %p59 = por %p57, %p58
    %p60 = scmp.ne.s32.totalorder %s49, %s50
    %p61 = scmp.eq.s32.totalorder %s15, 0
    %p62 = por %p60, %p61
    %p63 = scmp.ne.s32.totalorder %s49, %s50
    %p64 = scmp.eq.s32.totalorder %s16, 1
    %p65 = por %p63, %p64
    %p67 = scmp.ne.s32.totalorder %s50, %s66
    %p68 = scmp.eq.s32.totalorder %s16, 0
    %p69 = por %p67, %p68
    %s71 = sadd.s32 %s70, 1
    %p74 = scmp.eq.s32.totalorder %s10, 1
    %p75 = scmp.ne.s32.totalorder %s70, %s72
    %p76 = scmp.eq.s32.totalorder %s10, 0
    %p77 = por %p75, %p76
    %p78 = scmp.ne.s32.totalorder %s70, %s72
    %p79 = scmp.eq.s32.totalorder %s15, 1
    %p80 = por %p78, %p79
    %p81 = scmp.ne.s32.totalorder %s72, %s73
    %p82 = scmp.eq.s32.totalorder %s15, 0
    %p83 = por %p81, %p82
    %p84 = scmp.ne.s32.totalorder %s72, %s73
    %p85 = scmp.eq.s32.totalorder %s16, 1
    %p86 = por %p84, %p85
    %p88 = scmp.ne.s32.totalorder %s73, %s87
    %p89 = scmp.eq.s32.totalorder %s16, 0
    %p90 = por %p88, %p89
    %s92 = sadd.s32 %s91, 1
    %p95 = scmp.eq.s32.totalorder %s10, 1
    %p96 = scmp.ne.s32.totalorder %s91, %s93
    %p97 = scmp.eq.s32.totalorder %s10, 0
    %p98 = por %p96, %p97
    %p99 = scmp.ne.s32.totalorder %s91, %s93
    %p100 = scmp.eq.s32.totalorder %s15, 1
    %p101 = por %p99, %p100
    %p102 = scmp.ne.s32.totalorder %s93, %s94
    %p103 = scmp.eq.s32.totalorder %s15, 0
    %p104 = por %p102, %p103
    %p105 = scmp.ne.s32.totalorder %s93, %s94
    %p106 = scmp.eq.s32.totalorder %s16, 1
    %p107 = por %p105, %p106
    %p109 = scmp.ne.s32.totalorder %s94, %s108
    %p110 = scmp.eq.s32.totalorder %s16, 0
    %p111 = por %p109, %p110
    %s112 = ssub.s32 %s10, %s17
    %p113 = scmp.eq.s32.totalorder %s112, 0
    %s115 = sadd.s32 %s114, 1
    %s116 = scalar_select %p113, %s114, %s115
    %p119 = pneg %p113
    %p120 = scmp.eq.s32.totalorder %s10, 1
    %p121 = por %p119, %p120
    %p122 = scmp.ne.s32.totalorder %s114, %s117
    %p123 = scmp.eq.s32.totalorder %s10, 0
    %p124 = por %p122, %p123
    %p125 = scmp.ne.s32.totalorder %s114, %s117
    %p126 = scmp.eq.s32.totalorder %s15, 1
    %p127 = por %p125, %p126
    %p128 = scmp.ne.s32.totalorder %s117, %s118
    %p129 = scmp.eq.s32.totalorder %s15, 0
    %p130 = por %p128, %p129
    %p131 = scmp.ne.s32.totalorder %s117, %s118
    %p132 = scmp.eq.s32.totalorder %s16, 1
    %p133 = por %p131, %p132
    %p135 = scmp.ne.s32.totalorder %s118, %s134
    %p136 = scmp.eq.s32.totalorder %s16, 0
    %p137 = por %p135, %p136
    %p138 = scmp.le.s32.totalorder 1, %s10
    %p139 = scmp.lt.s32.totalorder %s10, 3
    %p140 = pnand %p138, %p139
    %p141 = pneg %p140
    // Predicated region
    $region9: #{basic_block_forward.5} parent=5 // pred_check
      _
    $region10: #{basic_block_forward.5} parent=5 // pred_check_branch
      %143 = sbr.rel (%p140) target = $region12
    $region11: #{basic_block_forward.5} parent=5 // pred_region
      %s144 = ssub.s32 %s10, 1
      // Predicated region
      $region13: #{basic_block_forward.5} parent=11 // pred_check
        %p145 = pneg %p83
      $region14: #{basic_block_forward.5} parent=11 // pred_check_branch
        %147 = sbr.rel (%p145) target = $region16
      $region15: #{basic_block_forward.5} parent=11 // pred_region
        _
      $region16: #{basic_block_forward.5} parent=11 // pred_fallthru
        _
      // Predicated region
      $region17: #{basic_block_forward.5} parent=11 // pred_check
        %p148 = pneg %p104
      $region18: #{basic_block_forward.5} parent=11 // pred_check_branch
        %150 = sbr.rel (%p148) target = $region20
      $region19: #{basic_block_forward.5} parent=11 // pred_region
        _
      $region20: #{basic_block_forward.5} parent=11 // pred_fallthru
        _
    $region12: #{basic_block_forward.5} parent=5 // pred_fallthru
      _
    %p151 = scmp.lt.s32.totalorder %s10, 2
    // Predicated region
    $region21: #{basic_block_forward.5} parent=5 // pred_check
      %p152 = pneg %p151
    $region22: #{basic_block_forward.5} parent=5 // pred_check_branch
      %154 = sbr.rel (%p152) target = $region24
    $region23: #{basic_block_forward.5} parent=5 // pred_region
      // Predicated region
      $region25: #{basic_block_forward.5} parent=23 // pred_check
        %p155 = pneg %p30
      $region26: #{basic_block_forward.5} parent=23 // pred_check_branch
        %157 = sbr.rel (%p155) target = $region28
      $region27: #{basic_block_forward.5} parent=23 // pred_region
        %s158 = smul.u32 2, %s10
        %p159 = scmp.lt.s32.totalorder %s158, 3
        %s160 = scalar_select %p159, %s158, 3
        %s161 = smul.addr %s160, 4
        %s162 = scalar_lea.vmem %s0, %s161
        %s163 = smul.u32 2, %s10
      $region28: #{basic_block_forward.5} parent=23 // pred_fallthru
        _
      // Predicated region
      $region29: #{basic_block_forward.5} parent=23 // pred_check
        %p164 = pneg %p56
      $region30: #{basic_block_forward.5} parent=23 // pred_check_branch
        %166 = sbr.rel (%p164) target = $region32
      $region31: #{basic_block_forward.5} parent=23 // pred_region
        %s167 = smul.u32 2, %s10
        %p168 = scmp.lt.s32.totalorder %s167, 3
        %s169 = scalar_select %p168, %s167, 3
        %s170 = smul.addr %s169, 8
        %s171 = scalar_lea.vmem %s1, %s170
        %s172 = smul.u32 2, %s10
      $region32: #{basic_block_forward.5} parent=23 // pred_fallthru
        _
    $region24: #{basic_block_forward.5} parent=5 // pred_fallthru
      _
    %p173 = scmp.le.s32.totalorder 1, %s10
    %p174 = scmp.lt.s32.totalorder %s10, 3
    %p175 = pnand %p173, %p174
    %p176 = pneg %p175
    // Predicated region
    $region33: #{basic_block_forward.5} parent=5 // pred_check
      _
    $region34: #{basic_block_forward.5} parent=5 // pred_check_branch
      %178 = sbr.rel (%p175) target = $region36
    $region35: #{basic_block_forward.5} parent=5 // pred_region
      %s179 = ssub.s32 %s10, 1
      %s180 = smul.u32 2, %s15
      %p181 = scmp.lt.s32.totalorder %s180, 3
      %s182 = scalar_select %p181, %s180, 3
      %s183 = smul.addr %s182, 4
      %s184 = scalar_lea.vmem %s0, %s183
      %p185 = pneg %p36
      %p186 = pneg %p33
      %s187 = smul.u32 2, %s15
      %p188 = scmp.lt.s32.totalorder %s187, 3
      %s189 = scalar_select %p188, %s187, 3
      %s190 = smul.addr %s189, 8
      %s191 = scalar_lea.vmem %s1, %s190
      %p192 = pneg %p62
      %p193 = pneg %p59
      %p194 = pneg %p83
      %p195 = pneg %p80
      %p196 = pneg %p104
      %p197 = pneg %p101
      %p198 = pneg %p130
      %p199 = pneg %p127
      %s200 = smul.u32 2, %s15
      %p201 = scmp.lt.s32.totalorder %s200, 3
      %s202 = scalar_select %p201, %s200, 3
      %s203 = smul.addr %s202, 8
      %s204 = scalar_lea.vmem %s4, %s203
      %s205 = smul.u32 2, %s15
      %p206 = scmp.lt.s32.totalorder %s205, 3
      %s207 = scalar_select %p206, %s205, 3
      %s208 = smul.addr %s207, 4
      %s209 = scalar_lea.vmem %s0, %s208
      %s210 = smul.u32 2, %s15
      %s211 = smul.u32 2, %s15
      %p212 = scmp.lt.s32.totalorder %s211, 3
      %s213 = scalar_select %p212, %s211, 3
      %s214 = smul.addr %s213, 8
      %s215 = scalar_lea.vmem %s1, %s214
      %s216 = smul.u32 2, %s15
      %s217 = smul.u32 2, %s15
      %p218 = scmp.lt.s32.totalorder %s217, 3
      %s219 = scalar_select %p218, %s217, 3
      %s220 = smul.addr %s219, 8
      %s221 = scalar_lea.vmem %s4, %s220
      %s222 = smul.u32 2, %s15
      %v223 = vld [vmem:[%s209] sm:$0xf]
      %v224 = vld [vmem:[%s209 + $0x4] sm:$0xf]
      %v225 = vunpack.c.l.bf16 %v223
      %v226 = vunpack.c.l.bf16 %v224
      %v227 = vld [vmem:[%s2] sm:$0x1]
      %v229 = vlaneseq
      %v230 = vshrl.u32 %v229, 7
      %v231 = vsub.s32 0, %v230
      %v232 = vrot.slane %v227, %v231
      %v234 = vmul.f32 %v225, %v232
      %v235 = vmul.f32 %v226, %v232
      %v236 = vld [vmem:[%s3] sm:$0x1]
      %v238 = vlaneseq
      %v239 = vshrl.u32 %v238, 7
      %v240 = vsub.s32 0, %v239
      %v241 = vrot.slane %v236, %v240
      %v243 = vadd.f32 %v234, %v241
      %v244 = vadd.f32 %v235, %v241
      %v245 = vld [vmem:[%s215] sm:$0xff]
      %v246 = vld [vmem:[%s215 + $0x8] sm:$0xff]
      %v247 = vadd.f32 %v243, %v245
      %v248 = vadd.f32 %v244, %v246
      %v249 = vmax.f32 %v247, 0.0
      %v250 = vmax.f32 %v248, 0.0
      %251 = vst [vmem:[%s221] sm:$0xff] %v249
      %252 = vst [vmem:[%s221 + $0x8] sm:$0xff] %v250
      %s253 = smul.u32 2, %s15
      %p254 = scmp.lt.s32.totalorder %s253, 3
      %s255 = scalar_select %p254, %s253, 3
      %s256 = smul.addr %s255, 8
      %s257 = scalar_lea.vmem %s4, %s256
      // Predicated region
      $region37: #{basic_block_forward.5} parent=35 // pred_check
        %p258 = pneg %p127
      $region38: #{basic_block_forward.5} parent=35 // pred_check_branch
        %260 = sbr.rel (%p258) target = $region40
      $region39: #{basic_block_forward.5} parent=35 // pred_region
        %s261 = smul.u32 2, %s15
      $region40: #{basic_block_forward.5} parent=35 // pred_fallthru
        _
    $region36: #{basic_block_forward.5} parent=5 // pred_fallthru
      _
    %p262 = scmp.le.s32.totalorder 2, %s10
    // Predicated region
    $region41: #{basic_block_forward.5} parent=5 // pred_check
      %p263 = pneg %p262
    $region42: #{basic_block_forward.5} parent=5 // pred_check_branch
      %265 = sbr.rel (%p263) target = $region44
    $region43: #{basic_block_forward.5} parent=5 // pred_region
      %s266 = ssub.s32 %s10, 2
      // Predicated region
      $region45: #{basic_block_forward.5} parent=43 // pred_check
        %p267 = pneg %p133
      $region46: #{basic_block_forward.5} parent=43 // pred_check_branch
        %269 = sbr.rel (%p267) target = $region48
      $region47: #{basic_block_forward.5} parent=43 // pred_region
        %s270 = smul.u32 2, %s16
        %p271 = scmp.lt.s32.totalorder %s270, 3
        %s272 = scalar_select %p271, %s270, 3
        %s273 = smul.addr %s272, 8
        %s274 = scalar_lea.vmem %s4, %s273
      $region48: #{basic_block_forward.5} parent=43 // pred_fallthru
        _
    $region44: #{basic_block_forward.5} parent=5 // pred_fallthru
      _
  $region6: #{basic_block_forward.5} parent=0 // loop_footer
    %s14 = sadd.s32 1, %s10
  $region7: #{basic_block_forward.5} parent=0 // loop_footer_branch
    %9 = sbr.rel target = $region3
  $region8: #{basic_block_forward.5} parent=0 // loop_exit
    _

// kernel: basic_block_forward.4
$region0: #{basic_block_forward.4}
  #allocation0 [shape = 'u32[]', space=smem, size = 0x4, offset = 0x4, fixed_abs, tag = 'smem constant byte address 0x4 - core index']
  #allocation1 [shape = 'u32[144,128]{1,0:T(1,128)}', space=vmem, size = 0x12000, scoped, tag = 'internal scratch']
  #allocation2 [shape = 'f32[1,18,18,8]{3,2,1,0:T(8,128)}', space=vmem, size = 0x36000, scoped, tag = 'scratch operand']
  %s0 = inlined_call_operand.vmem [shape: bf16[512,8], index: 0, kind: input, shape index: {}]
  %s1 = inlined_call_operand.vmem [shape: f32[1,8], index: 1, kind: input, shape index: {}]
  %s2 = inlined_call_operand.vmem [shape: f32[1,8], index: 2, kind: input, shape index: {}]
  %s3 = inlined_call_operand.vmem [shape: bf16[72,8], index: 3, kind: input, shape index: {}]
  %s4 = inlined_call_operand.vmem [shape: bf16[512,8], index: 4, kind: output, shape index: {0}]
  %s5 = inlined_call_operand.vmem [shape: f32[2,2,8], index: 5, kind: output, shape index: {1}]
  %6 = xla_tuple %s4, %s5
  %s7 = sld [smem:[#allocation0]]
  $region57: #{basic_block_forward.4} parent=0
    _
  %s9 = ssub.s32 1, %s7
  %s10 = scalar_select 0, %s9, %s7
  loop: start=0, step=1, limit=4
  $region2: #{basic_block_forward.4} parent=0 // loop_pre_header
    _
  $region3: #{basic_block_forward.4} parent=0 // loop_header
    %s12 = sphi 0, %s16
    %p13 = scmp.ge.s32.totalorder %s12, 4
    %s22 = sphi 0, %s24
    %s25 = sphi 0, %s22
    %s26 = sphi 0, %s25
    %s42 = sphi 0, %s26
    %s46 = sphi 0, %s46
    %s48 = sphi 0, %s46
    %s49 = sphi 0, %s48
    %s63 = sphi 0, %s49
    %s67 = sphi 0, %s67
    %s69 = sphi 0, %s67
    %s70 = sphi 0, %s69
    %s84 = sphi 0, %s70
    %s88 = sphi 0, %s88
    %s90 = sphi 0, %s88
    %s91 = sphi 0, %s90
    %s105 = sphi 0, %s91
    %s111 = sphi 0, %s113
    %s114 = sphi 0, %s111
    %s115 = sphi 0, %s114
    %s131 = sphi 0, %s115
    %s137 = sphi 0, %s139
    %s140 = sphi 0, %s137
    %s141 = sphi 0, %s140
    %s157 = sphi 0, %s141
  $region4: #{basic_block_forward.4} parent=0 // loop_header_branch
    %15 = sbr.rel (%p13) target = $region8
  $region5: #{basic_block_forward.4} parent=0 // loop_body
    %s17 = ssub.s32 %s12, 1
    %s18 = ssub.s32 %s12, 2
    %s19 = sadd.s32 %s12, 1
    %s20 = ssub.s32 %s12, %s19
    %p21 = scmp.eq.s32.totalorder %s20, 0
    %s23 = sadd.s32 %s22, 1
    %s24 = scalar_select %p21, %s22, %s23
    %p27 = pneg %p21
    %p28 = scmp.eq.s32.totalorder %s12, 1
    %p29 = por %p27, %p28
    %p30 = scmp.ne.s32.totalorder %s22, %s25
    %p31 = scmp.eq.s32.totalorder %s12, 0
    %p32 = por %p30, %p31
    %p33 = scmp.ne.s32.totalorder %s22, %s25
    %p34 = scmp.eq.s32.totalorder %s17, 1
    %p35 = por %p33, %p34
    %p36 = scmp.ne.s32.totalorder %s25, %s26
    %p37 = scmp.eq.s32.totalorder %s17, 0
    %p38 = por %p36, %p37
    %p39 = scmp.ne.s32.totalorder %s25, %s26
    %p40 = scmp.eq.s32.totalorder %s18, 1
    %p41 = por %p39, %p40
    %p43 = scmp.ne.s32.totalorder %s26, %s42
    %p44 = scmp.eq.s32.totalorder %s18, 0
    %p45 = por %p43, %p44
    %s47 = sadd.s32 %s46, 1
    %p50 = scmp.eq.s32.totalorder %s12, 1
    %p51 = scmp.ne.s32.totalorder %s46, %s48
    %p52 = scmp.eq.s32.totalorder %s12, 0
    %p53 = por %p51, %p52
    %p54 = scmp.ne.s32.totalorder %s46, %s48
    %p55 = scmp.eq.s32.totalorder %s17, 1
    %p56 = por %p54, %p55
    %p57 = scmp.ne.s32.totalorder %s48, %s49
    %p58 = scmp.eq.s32.totalorder %s17, 0
    %p59 = por %p57, %p58
    %p60 = scmp.ne.s32.totalorder %s48, %s49
    %p61 = scmp.eq.s32.totalorder %s18, 1
    %p62 = por %p60, %p61
    %p64 = scmp.ne.s32.totalorder %s49, %s63
    %p65 = scmp.eq.s32.totalorder %s18, 0
    %p66 = por %p64, %p65
    %s68 = sadd.s32 %s67, 1
    %p71 = scmp.eq.s32.totalorder %s12, 1
    %p72 = scmp.ne.s32.totalorder %s67, %s69
    %p73 = scmp.eq.s32.totalorder %s12, 0
    %p74 = por %p72, %p73
    %p75 = scmp.ne.s32.totalorder %s67, %s69
    %p76 = scmp.eq.s32.totalorder %s17, 1
    %p77 = por %p75, %p76
    %p78 = scmp.ne.s32.totalorder %s69, %s70
    %p79 = scmp.eq.s32.totalorder %s17, 0
    %p80 = por %p78, %p79
    %p81 = scmp.ne.s32.totalorder %s69, %s70
    %p82 = scmp.eq.s32.totalorder %s18, 1
    %p83 = por %p81, %p82
    %p85 = scmp.ne.s32.totalorder %s70, %s84
    %p86 = scmp.eq.s32.totalorder %s18, 0
    %p87 = por %p85, %p86
    %s89 = sadd.s32 %s88, 1
    %p92 = scmp.eq.s32.totalorder %s12, 1
    %p93 = scmp.ne.s32.totalorder %s88, %s90
    %p94 = scmp.eq.s32.totalorder %s12, 0
    %p95 = por %p93, %p94
    %p96 = scmp.ne.s32.totalorder %s88, %s90
    %p97 = scmp.eq.s32.totalorder %s17, 1
    %p98 = por %p96, %p97
    %p99 = scmp.ne.s32.totalorder %s90, %s91
    %p100 = scmp.eq.s32.totalorder %s17, 0
    %p101 = por %p99, %p100
    %p102 = scmp.ne.s32.totalorder %s90, %s91
    %p103 = scmp.eq.s32.totalorder %s18, 1
    %p104 = por %p102, %p103
    %p106 = scmp.ne.s32.totalorder %s91, %s105
    %p107 = scmp.eq.s32.totalorder %s18, 0
    %p108 = por %p106, %p107
    %s109 = ssub.s32 %s12, %s19
    %p110 = scmp.eq.s32.totalorder %s109, 0
    %s112 = sadd.s32 %s111, 1
    %s113 = scalar_select %p110, %s111, %s112
    %p116 = pneg %p110
    %p117 = scmp.eq.s32.totalorder %s12, 1
    %p118 = por %p116, %p117
    %p119 = scmp.ne.s32.totalorder %s111, %s114
    %p120 = scmp.eq.s32.totalorder %s12, 0
    %p121 = por %p119, %p120
    %p122 = scmp.ne.s32.totalorder %s111, %s114
    %p123 = scmp.eq.s32.totalorder %s17, 1
    %p124 = por %p122, %p123
    %p125 = scmp.ne.s32.totalorder %s114, %s115
    %p126 = scmp.eq.s32.totalorder %s17, 0
    %p127 = por %p125, %p126
    %p128 = scmp.ne.s32.totalorder %s114, %s115
    %p129 = scmp.eq.s32.totalorder %s18, 1
    %p130 = por %p128, %p129
    %p132 = scmp.ne.s32.totalorder %s115, %s131
    %p133 = scmp.eq.s32.totalorder %s18, 0
    %p134 = por %p132, %p133
    %s135 = ssub.s32 %s12, %s19
    %p136 = scmp.eq.s32.totalorder %s135, 0
    %s138 = sadd.s32 %s137, 1
    %s139 = scalar_select %p136, %s137, %s138
    %p142 = pneg %p136
    %p143 = scmp.eq.s32.totalorder %s12, 1
    %p144 = por %p142, %p143
    %p145 = scmp.ne.s32.totalorder %s137, %s140
    %p146 = scmp.eq.s32.totalorder %s12, 0
    %p147 = por %p145, %p146
    %p148 = scmp.ne.s32.totalorder %s137, %s140
    %p149 = scmp.eq.s32.totalorder %s17, 1
    %p150 = por %p148, %p149
    %p151 = scmp.ne.s32.totalorder %s140, %s141
    %p152 = scmp.eq.s32.totalorder %s17, 0
    %p153 = por %p151, %p152
    %p154 = scmp.ne.s32.totalorder %s140, %s141
    %p155 = scmp.eq.s32.totalorder %s18, 1
    %p156 = por %p154, %p155
    %p158 = scmp.ne.s32.totalorder %s141, %s157
    %p159 = scmp.eq.s32.totalorder %s18, 0
    %p160 = por %p158, %p159
    %p161 = scmp.le.s32.totalorder 1, %s12
    %p162 = scmp.lt.s32.totalorder %s12, 3
    %p163 = pnand %p161, %p162
    %p164 = pneg %p163
    // Predicated region
    $region9: #{basic_block_forward.4} parent=5 // pred_check
      _
    $region10: #{basic_block_forward.4} parent=5 // pred_check_branch
      %166 = sbr.rel (%p163) target = $region12
    $region11: #{basic_block_forward.4} parent=5 // pred_region
      %s167 = ssub.s32 %s12, 1
      // Predicated region
      $region13: #{basic_block_forward.4} parent=11 // pred_check
        %p168 = pneg %p59
      $region14: #{basic_block_forward.4} parent=11 // pred_check_branch
        %170 = sbr.rel (%p168) target = $region16
      $region15: #{basic_block_forward.4} parent=11 // pred_region
        _
      $region16: #{basic_block_forward.4} parent=11 // pred_fallthru
        _
      // Predicated region
      $region17: #{basic_block_forward.4} parent=11 // pred_check
        %p171 = pneg %p80
      $region18: #{basic_block_forward.4} parent=11 // pred_check_branch
        %173 = sbr.rel (%p171) target = $region20
      $region19: #{basic_block_forward.4} parent=11 // pred_region
        _
      $region20: #{basic_block_forward.4} parent=11 // pred_fallthru
        _
      // Predicated region
      $region21: #{basic_block_forward.4} parent=11 // pred_check
        %p174 = pneg %p101
      $region22: #{basic_block_forward.4} parent=11 // pred_check_branch
        %176 = sbr.rel (%p174) target = $region24
      $region23: #{basic_block_forward.4} parent=11 // pred_region
        _
      $region24: #{basic_block_forward.4} parent=11 // pred_fallthru
        _
    $region12: #{basic_block_forward.4} parent=5 // pred_fallthru
      _
    %p177 = scmp.lt.s32.totalorder %s12, 2
    // Predicated region
    $region25: #{basic_block_forward.4} parent=5 // pred_check
      %p178 = pneg %p177
    $region26: #{basic_block_forward.4} parent=5 // pred_check_branch
      %180 = sbr.rel (%p178) target = $region28
    $region27: #{basic_block_forward.4} parent=5 // pred_region
      // Predicated region
      $region29: #{basic_block_forward.4} parent=27 // pred_check
        %p181 = pneg %p32
      $region30: #{basic_block_forward.4} parent=27 // pred_check_branch
        %183 = sbr.rel (%p181) target = $region32
      $region31: #{basic_block_forward.4} parent=27 // pred_region
        %s184 = smul.u32 32, %s12
        %p185 = scmp.lt.s32.totalorder %s184, 63
        %s186 = scalar_select %p185, %s184, 63
        %s187 = smul.addr %s186, 4
        %s188 = scalar_lea.vmem %s0, %s187
        %s189 = smul.u32 32, %s12
      $region32: #{basic_block_forward.4} parent=27 // pred_fallthru
        _
    $region28: #{basic_block_forward.4} parent=5 // pred_fallthru
      _
    %p190 = scmp.le.s32.totalorder 1, %s12
    %p191 = scmp.lt.s32.totalorder %s12, 3
    %p192 = pnand %p190, %p191
    %p193 = pneg %p192
    // Predicated region
    $region33: #{basic_block_forward.4} parent=5 // pred_check
      _
    $region34: #{basic_block_forward.4} parent=5 // pred_check_branch
      %195 = sbr.rel (%p192) target = $region36
    $region35: #{basic_block_forward.4} parent=5 // pred_region
      %s196 = ssub.s32 %s12, 1
      %s197 = smul.u32 32, %s17
      %p198 = scmp.lt.s32.totalorder %s197, 63
      %s199 = scalar_select %p198, %s197, 63
      %s200 = smul.addr %s199, 4
      %s201 = scalar_lea.vmem %s0, %s200
      %p202 = pneg %p38
      %p203 = pneg %p35
      %p204 = pneg %p59
      %p205 = pneg %p56
      %p206 = pneg %p80
      %p207 = pneg %p77
      %p208 = pneg %p101
      %p209 = pneg %p98
      %p210 = pneg %p127
      %p211 = pneg %p124
      %s212 = smul.u32 32, %s17
      %p213 = scmp.lt.s32.totalorder %s212, 63
      %s214 = scalar_select %p213, %s212, 63
      %s215 = smul.addr %s214, 4
      %s216 = scalar_lea.vmem %s4, %s215
      %p217 = pneg %p153
      %p218 = pneg %p150
      %p219 = scmp.lt.s32.totalorder %s17, 1
      %s220 = scalar_select %p219, %s17, 1
      %s221 = smul.addr %s220, 2
      %s222 = scalar_lea.vmem %s5, %s221
      %s223 = smul.u32 32, %s17
      %p224 = scmp.lt.s32.totalorder %s223, 63
      %s225 = scalar_select %p224, %s223, 63
      %s226 = smul.addr %s225, 4
      %s227 = scalar_lea.vmem %s0, %s226
      %s228 = smul.u32 32, %s17
      %s229 = smul.u32 32, %s17
      %p230 = scmp.lt.s32.totalorder %s229, 63
      %s231 = scalar_select %p230, %s229, 63
      %s232 = smul.addr %s231, 4
      %s233 = scalar_lea.vmem %s4, %s232
      %s234 = smul.u32 32, %s17
      %p235 = scmp.lt.s32.totalorder %s17, 1
      %s236 = scalar_select %p235, %s17, 1
      %s237 = smul.addr %s236, 2
      %s238 = scalar_lea.vmem %s5, %s237
      %v240 = vld [vmem:[%s227] sm:$0xf]
      %v241 = vld [vmem:[%s227 + $0x4] sm:$0xf]
      %v242 = vld [vmem:[%s227 + $0x8] sm:$0xf]
      %v243 = vld [vmem:[%s227 + $0xc] sm:$0xf]
      %v244 = vld [vmem:[%s227 + $0x10] sm:$0xf]
      %v245 = vld [vmem:[%s227 + $0x14] sm:$0xf]
      %v246 = vld [vmem:[%s227 + $0x18] sm:$0xf]
      %v247 = vld [vmem:[%s227 + $0x1c] sm:$0xf]
      %v248 = vld [vmem:[%s227 + $0x20] sm:$0xf]
      %v249 = vld [vmem:[%s227 + $0x24] sm:$0xf]
      %v250 = vld [vmem:[%s227 + $0x28] sm:$0xf]
      %v251 = vld [vmem:[%s227 + $0x2c] sm:$0xf]
      %v252 = vld [vmem:[%s227 + $0x30] sm:$0xf]
      %v253 = vld [vmem:[%s227 + $0x34] sm:$0xf]
      %v254 = vld [vmem:[%s227 + $0x38] sm:$0xf]
      %v255 = vld [vmem:[%s227 + $0x3c] sm:$0xf]
      %v256 = vld [vmem:[%s227 + $0x40] sm:$0xf]
      %v257 = vld [vmem:[%s227 + $0x44] sm:$0xf]
      %v258 = vld [vmem:[%s227 + $0x48] sm:$0xf]
      %v259 = vld [vmem:[%s227 + $0x4c] sm:$0xf]
      %v260 = vld [vmem:[%s227 + $0x50] sm:$0xf]
      %v261 = vld [vmem:[%s227 + $0x54] sm:$0xf]
      %v262 = vld [vmem:[%s227 + $0x58] sm:$0xf]
      %v263 = vld [vmem:[%s227 + $0x5c] sm:$0xf]
      %v264 = vld [vmem:[%s227 + $0x60] sm:$0xf]
      %v265 = vld [vmem:[%s227 + $0x64] sm:$0xf]
      %v266 = vld [vmem:[%s227 + $0x68] sm:$0xf]
      %v267 = vld [vmem:[%s227 + $0x6c] sm:$0xf]
      %v268 = vld [vmem:[%s227 + $0x70] sm:$0xf]
      %v269 = vld [vmem:[%s227 + $0x74] sm:$0xf]
      %v270 = vld [vmem:[%s227 + $0x78] sm:$0xf]
      %v271 = vld [vmem:[%s227 + $0x7c] sm:$0xf]
      %v272 = vunpack.c.l.bf16 %v240
      %v273 = vunpack.c.l.bf16 %v241
      %v274 = vunpack.c.l.bf16 %v242
      %v275 = vunpack.c.l.bf16 %v243
      %v276 = vunpack.c.l.bf16 %v244
      %v277 = vunpack.c.l.bf16 %v245
      %v278 = vunpack.c.l.bf16 %v246
      %v279 = vunpack.c.l.bf16 %v247
      %v280 = vunpack.c.l.bf16 %v248
      %v281 = vunpack.c.l.bf16 %v249
      %v282 = vunpack.c.l.bf16 %v250
      %v283 = vunpack.c.l.bf16 %v251
      %v284 = vunpack.c.l.bf16 %v252
      %v285 = vunpack.c.l.bf16 %v253
      %v286 = vunpack.c.l.bf16 %v254
      %v287 = vunpack.c.l.bf16 %v255
      %v288 = vunpack.c.l.bf16 %v256
      %v289 = vunpack.c.l.bf16 %v257
      %v290 = vunpack.c.l.bf16 %v258
      %v291 = vunpack.c.l.bf16 %v259
      %v292 = vunpack.c.l.bf16 %v260
      %v293 = vunpack.c.l.bf16 %v261
      %v294 = vunpack.c.l.bf16 %v262
      %v295 = vunpack.c.l.bf16 %v263
      %v296 = vunpack.c.l.bf16 %v264
      %v297 = vunpack.c.l.bf16 %v265
      %v298 = vunpack.c.l.bf16 %v266
      %v299 = vunpack.c.l.bf16 %v267
      %v300 = vunpack.c.l.bf16 %v268
      %v301 = vunpack.c.l.bf16 %v269
      %v302 = vunpack.c.l.bf16 %v270
      %v303 = vunpack.c.l.bf16 %v271
      %v304 = vld [vmem:[%s1] sm:$0x1]
      %v306 = vlaneseq
      %v307 = vshrl.u32 %v306, 7
      %v308 = vsub.s32 0, %v307
      %v309 = vrot.slane %v304, %v308
      %v311 = vmul.f32 %v272, %v309
      %v312 = vmul.f32 %v273, %v309
      %v313 = vmul.f32 %v274, %v309
      %v314 = vmul.f32 %v275, %v309
      %v315 = vmul.f32 %v276, %v309
      %v316 = vmul.f32 %v277, %v309
      %v317 = vmul.f32 %v278, %v309
      %v318 = vmul.f32 %v279, %v309
      %v319 = vmul.f32 %v280, %v309
      %v320 = vmul.f32 %v281, %v309
      %v321 = vmul.f32 %v282, %v309
      %v322 = vmul.f32 %v283, %v309
      %v323 = vmul.f32 %v284, %v309
      %v324 = vmul.f32 %v285, %v309
      %v325 = vmul.f32 %v286, %v309
      %v326 = vmul.f32 %v287, %v309
      %v327 = vmul.f32 %v288, %v309
      %v328 = vmul.f32 %v289, %v309
      %v329 = vmul.f32 %v290, %v309
      %v330 = vmul.f32 %v291, %v309
      %v331 = vmul.f32 %v292, %v309
      %v332 = vmul.f32 %v293, %v309
      %v333 = vmul.f32 %v294, %v309
      %v334 = vmul.f32 %v295, %v309
      %v335 = vmul.f32 %v296, %v309
      %v336 = vmul.f32 %v297, %v309
      %v337 = vmul.f32 %v298, %v309
      %v338 = vmul.f32 %v299, %v309
      %v339 = vmul.f32 %v300, %v309
      %v340 = vmul.f32 %v301, %v309
      %v341 = vmul.f32 %v302, %v309
      %v342 = vmul.f32 %v303, %v309
      %v343 = vld [vmem:[%s2] sm:$0x1]
      %v345 = vlaneseq
      %v346 = vshrl.u32 %v345, 7
      %v347 = vsub.s32 0, %v346
      %v348 = vrot.slane %v343, %v347
      %v350 = vadd.f32 %v311, %v348
      %v351 = vadd.f32 %v312, %v348
      %v352 = vadd.f32 %v313, %v348
      %v353 = vadd.f32 %v314, %v348
      %v354 = vadd.f32 %v315, %v348
      %v355 = vadd.f32 %v316, %v348
      %v356 = vadd.f32 %v317, %v348
      %v357 = vadd.f32 %v318, %v348
      %v358 = vadd.f32 %v319, %v348
      %v359 = vadd.f32 %v320, %v348
      %v360 = vadd.f32 %v321, %v348
      %v361 = vadd.f32 %v322, %v348
      %v362 = vadd.f32 %v323, %v348
      %v363 = vadd.f32 %v324, %v348
      %v364 = vadd.f32 %v325, %v348
      %v365 = vadd.f32 %v326, %v348
      %v366 = vadd.f32 %v327, %v348
      %v367 = vadd.f32 %v328, %v348
      %v368 = vadd.f32 %v329, %v348
      %v369 = vadd.f32 %v330, %v348
      %v370 = vadd.f32 %v331, %v348
      %v371 = vadd.f32 %v332, %v348
      %v372 = vadd.f32 %v333, %v348
      %v373 = vadd.f32 %v334, %v348
      %v374 = vadd.f32 %v335, %v348
      %v375 = vadd.f32 %v336, %v348
      %v376 = vadd.f32 %v337, %v348
      %v377 = vadd.f32 %v338, %v348
      %v378 = vadd.f32 %v339, %v348
      %v379 = vadd.f32 %v340, %v348
      %v380 = vadd.f32 %v341, %v348
      %v381 = vadd.f32 %v342, %v348
      %v382 = vmax.f32 %v350, 0.0
      %v383 = vmax.f32 %v351, 0.0
      %v384 = vmax.f32 %v352, 0.0
      %v385 = vmax.f32 %v353, 0.0
      %v386 = vmax.f32 %v354, 0.0
      %v387 = vmax.f32 %v355, 0.0
      %v388 = vmax.f32 %v356, 0.0
      %v389 = vmax.f32 %v357, 0.0
      %v390 = vmax.f32 %v358, 0.0
      %v391 = vmax.f32 %v359, 0.0
      %v392 = vmax.f32 %v360, 0.0
      %v393 = vmax.f32 %v361, 0.0
      %v394 = vmax.f32 %v362, 0.0
      %v395 = vmax.f32 %v363, 0.0
      %v396 = vmax.f32 %v364, 0.0
      %v397 = vmax.f32 %v365, 0.0
      %v398 = vmax.f32 %v366, 0.0
      %v399 = vmax.f32 %v367, 0.0
      %v400 = vmax.f32 %v368, 0.0
      %v401 = vmax.f32 %v369, 0.0
      %v402 = vmax.f32 %v370, 0.0
      %v403 = vmax.f32 %v371, 0.0
      %v404 = vmax.f32 %v372, 0.0
      %v405 = vmax.f32 %v373, 0.0
      %v406 = vmax.f32 %v374, 0.0
      %v407 = vmax.f32 %v375, 0.0
      %v408 = vmax.f32 %v376, 0.0
      %v409 = vmax.f32 %v377, 0.0
      %v410 = vmax.f32 %v378, 0.0
      %v411 = vmax.f32 %v379, 0.0
      %v412 = vmax.f32 %v380, 0.0
      %v413 = vmax.f32 %v381, 0.0
      %vm414 = vcmask 64512
      %415 = vst.msk [vmem:[#allocation2] sm:$0xff] %vm414, 0.0
      %416 = vst.msk [vmem:[#allocation2 + $0x8] sm:$0xff] %vm414, 0.0
      %vm417 = vcmask 58368
      %418 = vst.msk [vmem:[#allocation2 + $0x10] sm:$0x3] %vm417, 0.0
      %s419 = scalar_lea.vmem [#allocation2], 408
      %420 = vst.msk [vmem:[%s419] sm:$0xff] %vm414, 0.0
      %421 = vst.msk [vmem:[%s419 + $0x8] sm:$0xff] %vm414, 0.0
      %422 = vst.msk [vmem:[%s419 + $0x10] sm:$0x3] %vm417, 0.0
      %s423 = scalar_lea.vmem [#allocation2], 24
      %vm424 = vcmask 57344
      %425 = vst.msk [vmem:[%s423] sm:$0x1] %vm424, 0.0
      %426 = vst.msk [vmem:[%s423 + $0x18] sm:$0x1] %vm424, 0.0
      %427 = vst.msk [vmem:[%s423 + $0x30] sm:$0x1] %vm424, 0.0
      %428 = vst.msk [vmem:[%s423 + $0x48] sm:$0x1] %vm424, 0.0
      %429 = vst.msk [vmem:[%s423 + $0x60] sm:$0x1] %vm424, 0.0
      %430 = vst.msk [vmem:[%s423 + $0x78] sm:$0x1] %vm424, 0.0
      %431 = vst.msk [vmem:[%s423 + $0x90] sm:$0x1] %vm424, 0.0
      %432 = vst.msk [vmem:[%s423 + $0xa8] sm:$0x1] %vm424, 0.0
      %433 = vst.msk [vmem:[%s423 + $0xc0] sm:$0x1] %vm424, 0.0
      %434 = vst.msk [vmem:[%s423 + $0xd8] sm:$0x1] %vm424, 0.0
      %435 = vst.msk [vmem:[%s423 + $0xf0] sm:$0x1] %vm424, 0.0
      %436 = vst.msk [vmem:[%s423 + $0x108] sm:$0x1] %vm424, 0.0
      %437 = vst.msk [vmem:[%s423 + $0x120] sm:$0x1] %vm424, 0.0
      %438 = vst.msk [vmem:[%s423 + $0x138] sm:$0x1] %vm424, 0.0
      %439 = vst.msk [vmem:[%s423 + $0x150] sm:$0x1] %vm424, 0.0
      %440 = vst.msk [vmem:[%s423 + $0x168] sm:$0x1] %vm424, 0.0
      %441 = vst.msk [vmem:[%s423 + $0x11] sm:$0x1] %vm424, 0.0
      %442 = vst.msk [vmem:[%s423 + $0x29] sm:$0x1] %vm424, 0.0
      %443 = vst.msk [vmem:[%s423 + $0x41] sm:$0x1] %vm424, 0.0
      %444 = vst.msk [vmem:[%s423 + $0x59] sm:$0x1] %vm424, 0.0
      %445 = vst.msk [vmem:[%s423 + $0x71] sm:$0x1] %vm424, 0.0
      %446 = vst.msk [vmem:[%s423 + $0x89] sm:$0x1] %vm424, 0.0
      %447 = vst.msk [vmem:[%s423 + $0xa1] sm:$0x1] %vm424, 0.0
      %448 = vst.msk [vmem:[%s423 + $0xb9] sm:$0x1] %vm424, 0.0
      %449 = vst.msk [vmem:[%s423 + $0xd1] sm:$0x1] %vm424, 0.0
      %450 = vst.msk [vmem:[%s423 + $0xe9] sm:$0x1] %vm424, 0.0
      %451 = vst.msk [vmem:[%s423 + $0x101] sm:$0x1] %vm424, 0.0
      %452 = vst.msk [vmem:[%s423 + $0x119] sm:$0x1] %vm424, 0.0
      %453 = vst.msk [vmem:[%s423 + $0x131] sm:$0x1] %vm424, 0.0
      %454 = vst.msk [vmem:[%s423 + $0x149] sm:$0x1] %vm424, 0.0
      %455 = vst.msk [vmem:[%s423 + $0x161] sm:$0x1] %vm424, 0.0
      %456 = vst.msk [vmem:[%s423 + $0x179] sm:$0x1] %vm424, 0.0
      %457 = vst.msk [vmem:[%s423 + $0x1] sm:$0xff] %vm414, %v382
      %458 = vst.msk [vmem:[%s423 + $0x9] sm:$0xff] %vm414, %v383
      %459 = vst.msk [vmem:[%s423 + $0x19] sm:$0xff] %vm414, %v384
      %460 = vst.msk [vmem:[%s423 + $0x21] sm:$0xff] %vm414, %v385
      %461 = vst.msk [vmem:[%s423 + $0x31] sm:$0xff] %vm414, %v386
      %462 = vst.msk [vmem:[%s423 + $0x39] sm:$0xff] %vm414, %v387
      %463 = vst.msk [vmem:[%s423 + $0x49] sm:$0xff] %vm414, %v388
      %464 = vst.msk [vmem:[%s423 + $0x51] sm:$0xff] %vm414, %v389
      %465 = vst.msk [vmem:[%s423 + $0x61] sm:$0xff] %vm414, %v390
      %466 = vst.msk [vmem:[%s423 + $0x69] sm:$0xff] %vm414, %v391
      %467 = vst.msk [vmem:[%s423 + $0x79] sm:$0xff] %vm414, %v392
      %468 = vst.msk [vmem:[%s423 + $0x81] sm:$0xff] %vm414, %v393
      %469 = vst.msk [vmem:[%s423 + $0x91] sm:$0xff] %vm414, %v394
      %470 = vst.msk [vmem:[%s423 + $0x99] sm:$0xff] %vm414, %v395
      %471 = vst.msk [vmem:[%s423 + $0xa9] sm:$0xff] %vm414, %v396
      %472 = vst.msk [vmem:[%s423 + $0xb1] sm:$0xff] %vm414, %v397
      %473 = vst.msk [vmem:[%s423 + $0xc1] sm:$0xff] %vm414, %v398
      %474 = vst.msk [vmem:[%s423 + $0xc9] sm:$0xff] %vm414, %v399
      %475 = vst.msk [vmem:[%s423 + $0xd9] sm:$0xff] %vm414, %v400
      %476 = vst.msk [vmem:[%s423 + $0xe1] sm:$0xff] %vm414, %v401
      %477 = vst.msk [vmem:[%s423 + $0xf1] sm:$0xff] %vm414, %v402
      %478 = vst.msk [vmem:[%s423 + $0xf9] sm:$0xff] %vm414, %v403
      %479 = vst.msk [vmem:[%s423 + $0x109] sm:$0xff] %vm414, %v404
      %480 = vst.msk [vmem:[%s423 + $0x111] sm:$0xff] %vm414, %v405
      %481 = vst.msk [vmem:[%s423 + $0x121] sm:$0xff] %vm414, %v406
      %482 = vst.msk [vmem:[%s423 + $0x129] sm:$0xff] %vm414, %v407
      %483 = vst.msk [vmem:[%s423 + $0x139] sm:$0xff] %vm414, %v408
      %484 = vst.msk [vmem:[%s423 + $0x141] sm:$0xff] %vm414, %v409
      %485 = vst.msk [vmem:[%s423 + $0x151] sm:$0xff] %vm414, %v410
      %486 = vst.msk [vmem:[%s423 + $0x159] sm:$0xff] %vm414, %v411
      %487 = vst.msk [vmem:[%s423 + $0x169] sm:$0xff] %vm414, %v412
      %488 = vst.msk [vmem:[%s423 + $0x171] sm:$0xff] %vm414, %v413
      %v489 = vld [vmem:[#allocation2] sm:$0xff]
      %v490 = vld [vmem:[#allocation2 + $0x8] sm:$0xff]
      %v491 = vld [vmem:[#allocation2 + $0x18] sm:$0xff]
      %v492 = vld [vmem:[#allocation2 + $0x20] sm:$0xff]
      %v493 = vld [vmem:[#allocation2 + $0x30] sm:$0xff]
      %v494 = vld [vmem:[#allocation2 + $0x38] sm:$0xff]
      %v495 = vld [vmem:[#allocation2 + $0x48] sm:$0xff]
      %v496 = vld [vmem:[#allocation2 + $0x50] sm:$0xff]
      %v497 = vld [vmem:[#allocation2 + $0x60] sm:$0xff]
      %v498 = vld [vmem:[#allocation2 + $0x68] sm:$0xff]
      %v499 = vld [vmem:[#allocation2 + $0x78] sm:$0xff]
      %v500 = vld [vmem:[#allocation2 + $0x80] sm:$0xff]
      %v501 = vld [vmem:[#allocation2 + $0x90] sm:$0xff]
      %v502 = vld [vmem:[#allocation2 + $0x98] sm:$0xff]
      %v503 = vld [vmem:[#allocation2 + $0xa8] sm:$0xff]
      %v504 = vld [vmem:[#allocation2 + $0xb0] sm:$0xff]
      %v505 = vld [vmem:[#allocation2 + $0xc0] sm:$0xff]
      %v506 = vld [vmem:[#allocation2 + $0xc8] sm:$0xff]
      %v507 = vld [vmem:[#allocation2 + $0xd8] sm:$0xff]
      %v508 = vld [vmem:[#allocation2 + $0xe0] sm:$0xff]
      %v509 = vld [vmem:[#allocation2 + $0xf0] sm:$0xff]
      %v510 = vld [vmem:[#allocation2 + $0xf8] sm:$0xff]
      %v511 = vld [vmem:[#allocation2 + $0x108] sm:$0xff]
      %v512 = vld [vmem:[#allocation2 + $0x110] sm:$0xff]
      %v513 = vld [vmem:[#allocation2 + $0x120] sm:$0xff]
      %v514 = vld [vmem:[#allocation2 + $0x128] sm:$0xff]
      %v515 = vld [vmem:[#allocation2 + $0x138] sm:$0xff]
      %v516 = vld [vmem:[#allocation2 + $0x140] sm:$0xff]
      %v517 = vld [vmem:[#allocation2 + $0x150] sm:$0xff]
      %v518 = vld [vmem:[#allocation2 + $0x158] sm:$0xff]
      %v519 = vld [vmem:[#allocation2 + $0x168] sm:$0xff]
      %v520 = vld [vmem:[#allocation2 + $0x170] sm:$0xff]
      %v521 = vpack.c.bf16 %v490, %v489
      %v522 = vpack.c.bf16 %v492, %v491
      %v523 = vpack.c.bf16 %v494, %v493
      %v524 = vpack.c.bf16 %v496, %v495
      %v525 = vpack.c.bf16 %v498, %v497
      %v526 = vpack.c.bf16 %v500, %v499
      %v527 = vpack.c.bf16 %v502, %v501
      %v528 = vpack.c.bf16 %v504, %v503
      %v529 = vpack.c.bf16 %v506, %v505
      %v530 = vpack.c.bf16 %v508, %v507
      %v531 = vpack.c.bf16 %v510, %v509
      %v532 = vpack.c.bf16 %v512, %v511
      %v533 = vpack.c.bf16 %v514, %v513
      %v534 = vpack.c.bf16 %v516, %v515
      %v535 = vpack.c.bf16 %v518, %v517
      %v536 = vpack.c.bf16 %v520, %v519
      %v537 = vld [vmem:[#allocation2 + $0x1] sm:$0xff]
      %v538 = vld [vmem:[#allocation2 + $0x9] sm:$0xff]
      %v539 = vld [vmem:[#allocation2 + $0x19] sm:$0xff]
      %v540 = vld [vmem:[#allocation2 + $0x21] sm:$0xff]
      %v541 = vld [vmem:[#allocation2 + $0x31] sm:$0xff]
      %v542 = vld [vmem:[#allocation2 + $0x39] sm:$0xff]
      %v543 = vld [vmem:[#allocation2 + $0x49] sm:$0xff]
      %v544 = vld [vmem:[#allocation2 + $0x51] sm:$0xff]
      %v545 = vld [vmem:[#allocation2 + $0x61] sm:$0xff]
      %v546 = vld [vmem:[#allocation2 + $0x69] sm:$0xff]
      %v547 = vld [vmem:[#allocation2 + $0x79] sm:$0xff]
      %v548 = vld [vmem:[#allocation2 + $0x81] sm:$0xff]
      %v549 = vld [vmem:[#allocation2 + $0x91] sm:$0xff]
      %v550 = vld [vmem:[#allocation2 + $0x99] sm:$0xff]
      %v551 = vld [vmem:[#allocation2 + $0xa9] sm:$0xff]
      %v552 = vld [vmem:[#allocation2 + $0xb1] sm:$0xff]
      %v553 = vld [vmem:[#allocation2 + $0xc1] sm:$0xff]
      %v554 = vld [vmem:[#allocation2 + $0xc9] sm:$0xff]
      %v555 = vld [vmem:[#allocation2 + $0xd9] sm:$0xff]
      %v556 = vld [vmem:[#allocation2 + $0xe1] sm:$0xff]
      %v557 = vld [vmem:[#allocation2 + $0xf1] sm:$0xff]
      %v558 = vld [vmem:[#allocation2 + $0xf9] sm:$0xff]
      %v559 = vld [vmem:[#allocation2 + $0x109] sm:$0xff]
      %v560 = vld [vmem:[#allocation2 + $0x111] sm:$0xff]
      %v561 = vld [vmem:[#allocation2 + $0x121] sm:$0xff]
      %v562 = vld [vmem:[#allocation2 + $0x129] sm:$0xff]
      %v563 = vld [vmem:[#allocation2 + $0x139] sm:$0xff]
      %v564 = vld [vmem:[#allocation2 + $0x141] sm:$0xff]
      %v565 = vld [vmem:[#allocation2 + $0x151] sm:$0xff]
      %v566 = vld [vmem:[#allocation2 + $0x159] sm:$0xff]
      %v567 = vld [vmem:[#allocation2 + $0x169] sm:$0xff]
      %v568 = vld [vmem:[#allocation2 + $0x171] sm:$0xff]
      %v569 = vpack.c.bf16 %v538, %v537
      %v570 = vpack.c.bf16 %v540, %v539
      %v571 = vpack.c.bf16 %v542, %v541
      %v572 = vpack.c.bf16 %v544, %v543
      %v573 = vpack.c.bf16 %v546, %v545
      %v574 = vpack.c.bf16 %v548, %v547
      %v575 = vpack.c.bf16 %v550, %v549
      %v576 = vpack.c.bf16 %v552, %v551
      %v577 = vpack.c.bf16 %v554, %v553
      %v578 = vpack.c.bf16 %v556, %v555
      %v579 = vpack.c.bf16 %v558, %v557
      %v580 = vpack.c.bf16 %v560, %v559
      %v581 = vpack.c.bf16 %v562, %v561
      %v582 = vpack.c.bf16 %v564, %v563
      %v583 = vpack.c.bf16 %v566, %v565
      %v584 = vpack.c.bf16 %v568, %v567
      %v585 = vld [vmem:[#allocation2 + $0x2] sm:$0xff]
      %v586 = vld [vmem:[#allocation2 + $0xa] sm:$0xff]
      %v587 = vld [vmem:[#allocation2 + $0x1a] sm:$0xff]
      %v588 = vld [vmem:[#allocation2 + $0x22] sm:$0xff]
      %v589 = vld [vmem:[#allocation2 + $0x32] sm:$0xff]
      %v590 = vld [vmem:[#allocation2 + $0x3a] sm:$0xff]
      %v591 = vld [vmem:[#allocation2 + $0x4a] sm:$0xff]
      %v592 = vld [vmem:[#allocation2 + $0x52] sm:$0xff]
      %v593 = vld [vmem:[#allocation2 + $0x62] sm:$0xff]
      %v594 = vld [vmem:[#allocation2 + $0x6a] sm:$0xff]
      %v595 = vld [vmem:[#allocation2 + $0x7a] sm:$0xff]
      %v596 = vld [vmem:[#allocation2 + $0x82] sm:$0xff]
      %v597 = vld [vmem:[#allocation2 + $0x92] sm:$0xff]
      %v598 = vld [vmem:[#allocation2 + $0x9a] sm:$0xff]
      %v599 = vld [vmem:[#allocation2 + $0xaa] sm:$0xff]
      %v600 = vld [vmem:[#allocation2 + $0xb2] sm:$0xff]
      %v601 = vld [vmem:[#allocation2 + $0xc2] sm:$0xff]
      %v602 = vld [vmem:[#allocation2 + $0xca] sm:$0xff]
      %v603 = vld [vmem:[#allocation2 + $0xda] sm:$0xff]
      %v604 = vld [vmem:[#allocation2 + $0xe2] sm:$0xff]
      %v605 = vld [vmem:[#allocation2 + $0xf2] sm:$0xff]
      %v606 = vld [vmem:[#allocation2 + $0xfa] sm:$0xff]
      %v607 = vld [vmem:[#allocation2 + $0x10a] sm:$0xff]
      %v608 = vld [vmem:[#allocation2 + $0x112] sm:$0xff]
      %v609 = vld [vmem:[#allocation2 + $0x122] sm:$0xff]
      %v610 = vld [vmem:[#allocation2 + $0x12a] sm:$0xff]
      %v611 = vld [vmem:[#allocation2 + $0x13a] sm:$0xff]
      %v612 = vld [vmem:[#allocation2 + $0x142] sm:$0xff]
      %v613 = vld [vmem:[#allocation2 + $0x152] sm:$0xff]
      %v614 = vld [vmem:[#allocation2 + $0x15a] sm:$0xff]
      %v615 = vld [vmem:[#allocation2 + $0x16a] sm:$0xff]
      %v616 = vld [vmem:[#allocation2 + $0x172] sm:$0xff]
      %v617 = vpack.c.bf16 %v586, %v585
      %v618 = vpack.c.bf16 %v588, %v587
      %v619 = vpack.c.bf16 %v590, %v589
      %v620 = vpack.c.bf16 %v592, %v591
      %v621 = vpack.c.bf16 %v594, %v593
      %v622 = vpack.c.bf16 %v596, %v595
      %v623 = vpack.c.bf16 %v598, %v597
      %v624 = vpack.c.bf16 %v600, %v599
      %v625 = vpack.c.bf16 %v602, %v601
      %v626 = vpack.c.bf16 %v604, %v603
      %v627 = vpack.c.bf16 %v606, %v605
      %v628 = vpack.c.bf16 %v608, %v607
      %v629 = vpack.c.bf16 %v610, %v609
      %v630 = vpack.c.bf16 %v612, %v611
      %v631 = vpack.c.bf16 %v614, %v613
      %v632 = vpack.c.bf16 %v616, %v615
      %v633 = vld [vmem:[%s423] sm:$0xff]
      %v634 = vld [vmem:[%s423 + $0x8] sm:$0xff]
      %v635 = vld [vmem:[%s423 + $0x18] sm:$0xff]
      %v636 = vld [vmem:[%s423 + $0x20] sm:$0xff]
      %v637 = vld [vmem:[%s423 + $0x30] sm:$0xff]
      %v638 = vld [vmem:[%s423 + $0x38] sm:$0xff]
      %v639 = vld [vmem:[%s423 + $0x48] sm:$0xff]
      %v640 = vld [vmem:[%s423 + $0x50] sm:$0xff]
      %v641 = vld [vmem:[%s423 + $0x60] sm:$0xff]
      %v642 = vld [vmem:[%s423 + $0x68] sm:$0xff]
      %v643 = vld [vmem:[%s423 + $0x78] sm:$0xff]
      %v644 = vld [vmem:[%s423 + $0x80] sm:$0xff]
      %v645 = vld [vmem:[%s423 + $0x90] sm:$0xff]
      %v646 = vld [vmem:[%s423 + $0x98] sm:$0xff]
      %v647 = vld [vmem:[%s423 + $0xa8] sm:$0xff]
      %v648 = vld [vmem:[%s423 + $0xb0] sm:$0xff]
      %v649 = vld [vmem:[%s423 + $0xc0] sm:$0xff]
      %v650 = vld [vmem:[%s423 + $0xc8] sm:$0xff]
      %v651 = vld [vmem:[%s423 + $0xd8] sm:$0xff]
      %v652 = vld [vmem:[%s423 + $0xe0] sm:$0xff]
      %v653 = vld [vmem:[%s423 + $0xf0] sm:$0xff]
      %v654 = vld [vmem:[%s423 + $0xf8] sm:$0xff]
      %v655 = vld [vmem:[%s423 + $0x108] sm:$0xff]
      %v656 = vld [vmem:[%s423 + $0x110] sm:$0xff]
      %v657 = vld [vmem:[%s423 + $0x120] sm:$0xff]
      %v658 = vld [vmem:[%s423 + $0x128] sm:$0xff]
      %v659 = vld [vmem:[%s423 + $0x138] sm:$0xff]
      %v660 = vld [vmem:[%s423 + $0x140] sm:$0xff]
      %v661 = vld [vmem:[%s423 + $0x150] sm:$0xff]
      %v662 = vld [vmem:[%s423 + $0x158] sm:$0xff]
      %v663 = vld [vmem:[%s423 + $0x168] sm:$0xff]
      %v664 = vld [vmem:[%s423 + $0x170] sm:$0xff]
      %v665 = vpack.c.bf16 %v634, %v633
      %v666 = vpack.c.bf16 %v636, %v635
      %v667 = vpack.c.bf16 %v638, %v637
      %v668 = vpack.c.bf16 %v640, %v639
      %v669 = vpack.c.bf16 %v642, %v641
      %v670 = vpack.c.bf16 %v644, %v643
      %v671 = vpack.c.bf16 %v646, %v645
      %v672 = vpack.c.bf16 %v648, %v647
      %v673 = vpack.c.bf16 %v650, %v649
      %v674 = vpack.c.bf16 %v652, %v651
      %v675 = vpack.c.bf16 %v654, %v653
      %v676 = vpack.c.bf16 %v656, %v655
      %v677 = vpack.c.bf16 %v658, %v657
      %v678 = vpack.c.bf16 %v660, %v659
      %v679 = vpack.c.bf16 %v662, %v661
      %v680 = vpack.c.bf16 %v664, %v663
      %v681 = vld [vmem:[%s423 + $0x1] sm:$0xff]
      %v682 = vld [vmem:[%s423 + $0x9] sm:$0xff]
      %v683 = vld [vmem:[%s423 + $0x19] sm:$0xff]
      %v684 = vld [vmem:[%s423 + $0x21] sm:$0xff]
      %v685 = vld [vmem:[%s423 + $0x31] sm:$0xff]
      %v686 = vld [vmem:[%s423 + $0x39] sm:$0xff]
      %v687 = vld [vmem:[%s423 + $0x49] sm:$0xff]
      %v688 = vld [vmem:[%s423 + $0x51] sm:$0xff]
      %v689 = vld [vmem:[%s423 + $0x61] sm:$0xff]
      %v690 = vld [vmem:[%s423 + $0x69] sm:$0xff]
      %v691 = vld [vmem:[%s423 + $0x79] sm:$0xff]
      %v692 = vld [vmem:[%s423 + $0x81] sm:$0xff]
      %v693 = vld [vmem:[%s423 + $0x91] sm:$0xff]
      %v694 = vld [vmem:[%s423 + $0x99] sm:$0xff]
      %v695 = vld [vmem:[%s423 + $0xa9] sm:$0xff]
      %v696 = vld [vmem:[%s423 + $0xb1] sm:$0xff]
      %v697 = vld [vmem:[%s423 + $0xc1] sm:$0xff]
      %v698 = vld [vmem:[%s423 + $0xc9] sm:$0xff]
      %v699 = vld [vmem:[%s423 + $0xd9] sm:$0xff]
      %v700 = vld [vmem:[%s423 + $0xe1] sm:$0xff]
      %v701 = vld [vmem:[%s423 + $0xf1] sm:$0xff]
      %v702 = vld [vmem:[%s423 + $0xf9] sm:$0xff]
      %v703 = vld [vmem:[%s423 + $0x109] sm:$0xff]
      %v704 = vld [vmem:[%s423 + $0x111] sm:$0xff]
      %v705 = vld [vmem:[%s423 + $0x121] sm:$0xff]
      %v706 = vld [vmem:[%s423 + $0x129] sm:$0xff]
      %v707 = vld [vmem:[%s423 + $0x139] sm:$0xff]
      %v708 = vld [vmem:[%s423 + $0x141] sm:$0xff]
      %v709 = vld [vmem:[%s423 + $0x151] sm:$0xff]
      %v710 = vld [vmem:[%s423 + $0x159] sm:$0xff]
      %v711 = vld [vmem:[%s423 + $0x169] sm:$0xff]
      %v712 = vld [vmem:[%s423 + $0x171] sm:$0xff]
      %v713 = vpack.c.bf16 %v682, %v681
      %v714 = vpack.c.bf16 %v684, %v683
      %v715 = vpack.c.bf16 %v686, %v685
      %v716 = vpack.c.bf16 %v688, %v687
      %v717 = vpack.c.bf16 %v690, %v689
      %v718 = vpack.c.bf16 %v692, %v691
      %v719 = vpack.c.bf16 %v694, %v693
      %v720 = vpack.c.bf16 %v696, %v695
      %v721 = vpack.c.bf16 %v698, %v697
      %v722 = vpack.c.bf16 %v700, %v699
      %v723 = vpack.c.bf16 %v702, %v701
      %v724 = vpack.c.bf16 %v704, %v703
      %v725 = vpack.c.bf16 %v706, %v705
      %v726 = vpack.c.bf16 %v708, %v707
      %v727 = vpack.c.bf16 %v710, %v709
      %v728 = vpack.c.bf16 %v712, %v711
      %v729 = vld [vmem:[%s423 + $0x2] sm:$0xff]
      %v730 = vld [vmem:[%s423 + $0xa] sm:$0xff]
      %v731 = vld [vmem:[%s423 + $0x1a] sm:$0xff]
      %v732 = vld [vmem:[%s423 + $0x22] sm:$0xff]
      %v733 = vld [vmem:[%s423 + $0x32] sm:$0xff]
      %v734 = vld [vmem:[%s423 + $0x3a] sm:$0xff]
      %v735 = vld [vmem:[%s423 + $0x4a] sm:$0xff]
      %v736 = vld [vmem:[%s423 + $0x52] sm:$0xff]
      %v737 = vld [vmem:[%s423 + $0x62] sm:$0xff]
      %v738 = vld [vmem:[%s423 + $0x6a] sm:$0xff]
      %v739 = vld [vmem:[%s423 + $0x7a] sm:$0xff]
      %v740 = vld [vmem:[%s423 + $0x82] sm:$0xff]
      %v741 = vld [vmem:[%s423 + $0x92] sm:$0xff]
      %v742 = vld [vmem:[%s423 + $0x9a] sm:$0xff]
      %v743 = vld [vmem:[%s423 + $0xaa] sm:$0xff]
      %v744 = vld [vmem:[%s423 + $0xb2] sm:$0xff]
      %v745 = vld [vmem:[%s423 + $0xc2] sm:$0xff]
      %v746 = vld [vmem:[%s423 + $0xca] sm:$0xff]
      %v747 = vld [vmem:[%s423 + $0xda] sm:$0xff]
      %v748 = vld [vmem:[%s423 + $0xe2] sm:$0xff]
      %v749 = vld [vmem:[%s423 + $0xf2] sm:$0xff]
      %v750 = vld [vmem:[%s423 + $0xfa] sm:$0xff]
      %v751 = vld [vmem:[%s423 + $0x10a] sm:$0xff]
      %v752 = vld [vmem:[%s423 + $0x112] sm:$0xff]
      %v753 = vld [vmem:[%s423 + $0x122] sm:$0xff]
      %v754 = vld [vmem:[%s423 + $0x12a] sm:$0xff]
      %v755 = vld [vmem:[%s423 + $0x13a] sm:$0xff]
      %v756 = vld [vmem:[%s423 + $0x142] sm:$0xff]
      %v757 = vld [vmem:[%s423 + $0x152] sm:$0xff]
      %v758 = vld [vmem:[%s423 + $0x15a] sm:$0xff]
      %v759 = vld [vmem:[%s423 + $0x16a] sm:$0xff]
      %v760 = vld [vmem:[%s423 + $0x172] sm:$0xff]
      %v761 = vpack.c.bf16 %v730, %v729
      %v762 = vpack.c.bf16 %v732, %v731
      %v763 = vpack.c.bf16 %v734, %v733
      %v764 = vpack.c.bf16 %v736, %v735
      %v765 = vpack.c.bf16 %v738, %v737
      %v766 = vpack.c.bf16 %v740, %v739
      %v767 = vpack.c.bf16 %v742, %v741
      %v768 = vpack.c.bf16 %v744, %v743
      %v769 = vpack.c.bf16 %v746, %v745
      %v770 = vpack.c.bf16 %v748, %v747
      %v771 = vpack.c.bf16 %v750, %v749
      %v772 = vpack.c.bf16 %v752, %v751
      %v773 = vpack.c.bf16 %v754, %v753
      %v774 = vpack.c.bf16 %v756, %v755
      %v775 = vpack.c.bf16 %v758, %v757
      %v776 = vpack.c.bf16 %v760, %v759
      %s777 = scalar_lea.vmem [#allocation2], 48
      %v778 = vld [vmem:[%s777] sm:$0xff]
      %v779 = vld [vmem:[%s777 + $0x8] sm:$0xff]
      %v780 = vld [vmem:[%s777 + $0x18] sm:$0xff]
      %v781 = vld [vmem:[%s777 + $0x20] sm:$0xff]
      %v782 = vld [vmem:[%s777 + $0x30] sm:$0xff]
      %v783 = vld [vmem:[%s777 + $0x38] sm:$0xff]
      %v784 = vld [vmem:[%s777 + $0x48] sm:$0xff]
      %v785 = vld [vmem:[%s777 + $0x50] sm:$0xff]
      %v786 = vld [vmem:[%s777 + $0x60] sm:$0xff]
      %v787 = vld [vmem:[%s777 + $0x68] sm:$0xff]
      %v788 = vld [vmem:[%s777 + $0x78] sm:$0xff]
      %v789 = vld [vmem:[%s777 + $0x80] sm:$0xff]
      %v790 = vld [vmem:[%s777 + $0x90] sm:$0xff]
      %v791 = vld [vmem:[%s777 + $0x98] sm:$0xff]
      %v792 = vld [vmem:[%s777 + $0xa8] sm:$0xff]
      %v793 = vld [vmem:[%s777 + $0xb0] sm:$0xff]
      %v794 = vld [vmem:[%s777 + $0xc0] sm:$0xff]
      %v795 = vld [vmem:[%s777 + $0xc8] sm:$0xff]
      %v796 = vld [vmem:[%s777 + $0xd8] sm:$0xff]
      %v797 = vld [vmem:[%s777 + $0xe0] sm:$0xff]
      %v798 = vld [vmem:[%s777 + $0xf0] sm:$0xff]
      %v799 = vld [vmem:[%s777 + $0xf8] sm:$0xff]
      %v800 = vld [vmem:[%s777 + $0x108] sm:$0xff]
      %v801 = vld [vmem:[%s777 + $0x110] sm:$0xff]
      %v802 = vld [vmem:[%s777 + $0x120] sm:$0xff]
      %v803 = vld [vmem:[%s777 + $0x128] sm:$0xff]
      %v804 = vld [vmem:[%s777 + $0x138] sm:$0xff]
      %v805 = vld [vmem:[%s777 + $0x140] sm:$0xff]
      %v806 = vld [vmem:[%s777 + $0x150] sm:$0xff]
      %v807 = vld [vmem:[%s777 + $0x158] sm:$0xff]
      %v808 = vld [vmem:[%s777 + $0x168] sm:$0xff]
      %v809 = vld [vmem:[%s777 + $0x170] sm:$0xff]
      %v810 = vpack.c.bf16 %v779, %v778
      %v811 = vpack.c.bf16 %v781, %v780
      %v812 = vpack.c.bf16 %v783, %v782
      %v813 = vpack.c.bf16 %v785, %v784
      %v814 = vpack.c.bf16 %v787, %v786
      %v815 = vpack.c.bf16 %v789, %v788
      %v816 = vpack.c.bf16 %v791, %v790
      %v817 = vpack.c.bf16 %v793, %v792
      %v818 = vpack.c.bf16 %v795, %v794
      %v819 = vpack.c.bf16 %v797, %v796
      %v820 = vpack.c.bf16 %v799, %v798
      %v821 = vpack.c.bf16 %v801, %v800
      %v822 = vpack.c.bf16 %v803, %v802
      %v823 = vpack.c.bf16 %v805, %v804
      %v824 = vpack.c.bf16 %v807, %v806
      %v825 = vpack.c.bf16 %v809, %v808
      %v826 = vld [vmem:[%s777 + $0x1] sm:$0xff]
      %v827 = vld [vmem:[%s777 + $0x9] sm:$0xff]
      %v828 = vld [vmem:[%s777 + $0x19] sm:$0xff]
      %v829 = vld [vmem:[%s777 + $0x21] sm:$0xff]
      %v830 = vld [vmem:[%s777 + $0x31] sm:$0xff]
      %v831 = vld [vmem:[%s777 + $0x39] sm:$0xff]
      %v832 = vld [vmem:[%s777 + $0x49] sm:$0xff]
      %v833 = vld [vmem:[%s777 + $0x51] sm:$0xff]
      %v834 = vld [vmem:[%s777 + $0x61] sm:$0xff]
      %v835 = vld [vmem:[%s777 + $0x69] sm:$0xff]
      %v836 = vld [vmem:[%s777 + $0x79] sm:$0xff]
      %v837 = vld [vmem:[%s777 + $0x81] sm:$0xff]
      %v838 = vld [vmem:[%s777 + $0x91] sm:$0xff]
      %v839 = vld [vmem:[%s777 + $0x99] sm:$0xff]
      %v840 = vld [vmem:[%s777 + $0xa9] sm:$0xff]
      %v841 = vld [vmem:[%s777 + $0xb1] sm:$0xff]
      %v842 = vld [vmem:[%s777 + $0xc1] sm:$0xff]
      %v843 = vld [vmem:[%s777 + $0xc9] sm:$0xff]
      %v844 = vld [vmem:[%s777 + $0xd9] sm:$0xff]
      %v845 = vld [vmem:[%s777 + $0xe1] sm:$0xff]
      %v846 = vld [vmem:[%s777 + $0xf1] sm:$0xff]
      %v847 = vld [vmem:[%s777 + $0xf9] sm:$0xff]
      %v848 = vld [vmem:[%s777 + $0x109] sm:$0xff]
      %v849 = vld [vmem:[%s777 + $0x111] sm:$0xff]
      %v850 = vld [vmem:[%s777 + $0x121] sm:$0xff]
      %v851 = vld [vmem:[%s777 + $0x129] sm:$0xff]
      %v852 = vld [vmem:[%s777 + $0x139] sm:$0xff]
      %v853 = vld [vmem:[%s777 + $0x141] sm:$0xff]
      %v854 = vld [vmem:[%s777 + $0x151] sm:$0xff]
      %v855 = vld [vmem:[%s777 + $0x159] sm:$0xff]
      %v856 = vld [vmem:[%s777 + $0x169] sm:$0xff]
      %v857 = vld [vmem:[%s777 + $0x171] sm:$0xff]
      %v858 = vpack.c.bf16 %v827, %v826
      %v859 = vpack.c.bf16 %v829, %v828
      %v860 = vpack.c.bf16 %v831, %v830
      %v861 = vpack.c.bf16 %v833, %v832
      %v862 = vpack.c.bf16 %v835, %v834
      %v863 = vpack.c.bf16 %v837, %v836
      %v864 = vpack.c.bf16 %v839, %v838
      %v865 = vpack.c.bf16 %v841, %v840
      %v866 = vpack.c.bf16 %v843, %v842
      %v867 = vpack.c.bf16 %v845, %v844
      %v868 = vpack.c.bf16 %v847, %v846
      %v869 = vpack.c.bf16 %v849, %v848
      %v870 = vpack.c.bf16 %v851, %v850
      %v871 = vpack.c.bf16 %v853, %v852
      %v872 = vpack.c.bf16 %v855, %v854
      %v873 = vpack.c.bf16 %v857, %v856
      %v874 = vld [vmem:[%s777 + $0x2] sm:$0xff]
      %v875 = vld [vmem:[%s777 + $0xa] sm:$0xff]
      %v876 = vld [vmem:[%s777 + $0x1a] sm:$0xff]
      %v877 = vld [vmem:[%s777 + $0x22] sm:$0xff]
      %v878 = vld [vmem:[%s777 + $0x32] sm:$0xff]
      %v879 = vld [vmem:[%s777 + $0x3a] sm:$0xff]
      %v880 = vld [vmem:[%s777 + $0x4a] sm:$0xff]
      %v881 = vld [vmem:[%s777 + $0x52] sm:$0xff]
      %v882 = vld [vmem:[%s777 + $0x62] sm:$0xff]
      %v883 = vld [vmem:[%s777 + $0x6a] sm:$0xff]
      %v884 = vld [vmem:[%s777 + $0x7a] sm:$0xff]
      %v885 = vld [vmem:[%s777 + $0x82] sm:$0xff]
      %v886 = vld [vmem:[%s777 + $0x92] sm:$0xff]
      %v887 = vld [vmem:[%s777 + $0x9a] sm:$0xff]
      %v888 = vld [vmem:[%s777 + $0xaa] sm:$0xff]
      %v889 = vld [vmem:[%s777 + $0xb2] sm:$0xff]
      %v890 = vld [vmem:[%s777 + $0xc2] sm:$0xff]
      %v891 = vld [vmem:[%s777 + $0xca] sm:$0xff]
      %v892 = vld [vmem:[%s777 + $0xda] sm:$0xff]
      %v893 = vld [vmem:[%s777 + $0xe2] sm:$0xff]
      %v894 = vld [vmem:[%s777 + $0xf2] sm:$0xff]
      %v895 = vld [vmem:[%s777 + $0xfa] sm:$0xff]
      %v896 = vld [vmem:[%s777 + $0x10a] sm:$0xff]
      %v897 = vld [vmem:[%s777 + $0x112] sm:$0xff]
      %v898 = vld [vmem:[%s777 + $0x122] sm:$0xff]
      %v899 = vld [vmem:[%s777 + $0x12a] sm:$0xff]
      %v900 = vld [vmem:[%s777 + $0x13a] sm:$0xff]
      %v901 = vld [vmem:[%s777 + $0x142] sm:$0xff]
      %v902 = vld [vmem:[%s777 + $0x152] sm:$0xff]
      %v903 = vld [vmem:[%s777 + $0x15a] sm:$0xff]
      %v904 = vld [vmem:[%s777 + $0x16a] sm:$0xff]
      %v905 = vld [vmem:[%s777 + $0x172] sm:$0xff]
      %v906 = vpack.c.bf16 %v875, %v874
      %v907 = vpack.c.bf16 %v877, %v876
      %v908 = vpack.c.bf16 %v879, %v878
      %v909 = vpack.c.bf16 %v881, %v880
      %v910 = vpack.c.bf16 %v883, %v882
      %v911 = vpack.c.bf16 %v885, %v884
      %v912 = vpack.c.bf16 %v887, %v886
      %v913 = vpack.c.bf16 %v889, %v888
      %v914 = vpack.c.bf16 %v891, %v890
      %v915 = vpack.c.bf16 %v893, %v892
      %v916 = vpack.c.bf16 %v895, %v894
      %v917 = vpack.c.bf16 %v897, %v896
      %v918 = vpack.c.bf16 %v899, %v898
      %v919 = vpack.c.bf16 %v901, %v900
      %v920 = vpack.c.bf16 %v903, %v902
      %v921 = vpack.c.bf16 %v905, %v904
      %938 = vrot.lane.b32.xlu0 %v569, 8
      %v939 = vpop.permute.xlu0 %938
      %940 = vrot.lane.b32.xlu0 %v570, 8
      %v941 = vpop.permute.xlu0 %940
      %942 = vrot.lane.b32.xlu0 %v571, 8
      %v943 = vpop.permute.xlu0 %942
      %944 = vrot.lane.b32.xlu0 %v572, 8
      %v945 = vpop.permute.xlu0 %944
      %946 = vrot.lane.b32.xlu0 %v573, 8
      %v947 = vpop.permute.xlu0 %946
      %948 = vrot.lane.b32.xlu0 %v574, 8
      %v949 = vpop.permute.xlu0 %948
      %950 = vrot.lane.b32.xlu0 %v575, 8
      %v951 = vpop.permute.xlu0 %950
      %952 = vrot.lane.b32.xlu0 %v576, 8
      %v953 = vpop.permute.xlu0 %952
      %954 = vrot.lane.b32.xlu0 %v577, 8
      %v955 = vpop.permute.xlu0 %954
      %956 = vrot.lane.b32.xlu0 %v578, 8
      %v957 = vpop.permute.xlu0 %956
      %958 = vrot.lane.b32.xlu0 %v579, 8
      %v959 = vpop.permute.xlu0 %958
      %960 = vrot.lane.b32.xlu0 %v580, 8
      %v961 = vpop.permute.xlu0 %960
      %962 = vrot.lane.b32.xlu0 %v581, 8
      %v963 = vpop.permute.xlu0 %962
      %964 = vrot.lane.b32.xlu0 %v582, 8
      %v965 = vpop.permute.xlu0 %964
      %966 = vrot.lane.b32.xlu0 %v583, 8
      %v967 = vpop.permute.xlu0 %966
      %968 = vrot.lane.b32.xlu0 %v584, 8
      %v969 = vpop.permute.xlu0 %968
      %986 = vrot.lane.b32.xlu0 %v617, 16
      %v987 = vpop.permute.xlu0 %986
      %988 = vrot.lane.b32.xlu0 %v618, 16
      %v989 = vpop.permute.xlu0 %988
      %990 = vrot.lane.b32.xlu0 %v619, 16
      %v991 = vpop.permute.xlu0 %990
      %992 = vrot.lane.b32.xlu0 %v620, 16
      %v993 = vpop.permute.xlu0 %992
      %994 = vrot.lane.b32.xlu0 %v621, 16
      %v995 = vpop.permute.xlu0 %994
      %996 = vrot.lane.b32.xlu0 %v622, 16
      %v997 = vpop.permute.xlu0 %996
      %998 = vrot.lane.b32.xlu0 %v623, 16
      %v999 = vpop.permute.xlu0 %998
      %1000 = vrot.lane.b32.xlu0 %v624, 16
      %v1001 = vpop.permute.xlu0 %1000
      %1002 = vrot.lane.b32.xlu0 %v625, 16
      %v1003 = vpop.permute.xlu0 %1002
      %1004 = vrot.lane.b32.xlu0 %v626, 16
      %v1005 = vpop.permute.xlu0 %1004
      %1006 = vrot.lane.b32.xlu0 %v627, 16
      %v1007 = vpop.permute.xlu0 %1006
      %1008 = vrot.lane.b32.xlu0 %v628, 16
      %v1009 = vpop.permute.xlu0 %1008
      %1010 = vrot.lane.b32.xlu0 %v629, 16
      %v1011 = vpop.permute.xlu0 %1010
      %1012 = vrot.lane.b32.xlu0 %v630, 16
      %v1013 = vpop.permute.xlu0 %1012
      %1014 = vrot.lane.b32.xlu0 %v631, 16
      %v1015 = vpop.permute.xlu0 %1014
      %1016 = vrot.lane.b32.xlu0 %v632, 16
      %v1017 = vpop.permute.xlu0 %1016
      %1034 = vrot.lane.b32.xlu0 %v665, 24
      %v1035 = vpop.permute.xlu0 %1034
      %1036 = vrot.lane.b32.xlu0 %v666, 24
      %v1037 = vpop.permute.xlu0 %1036
      %1038 = vrot.lane.b32.xlu0 %v667, 24
      %v1039 = vpop.permute.xlu0 %1038
      %1040 = vrot.lane.b32.xlu0 %v668, 24
      %v1041 = vpop.permute.xlu0 %1040
      %1042 = vrot.lane.b32.xlu0 %v669, 24
      %v1043 = vpop.permute.xlu0 %1042
      %1044 = vrot.lane.b32.xlu0 %v670, 24
      %v1045 = vpop.permute.xlu0 %1044
      %1046 = vrot.lane.b32.xlu0 %v671, 24
      %v1047 = vpop.permute.xlu0 %1046
      %1048 = vrot.lane.b32.xlu0 %v672, 24
      %v1049 = vpop.permute.xlu0 %1048
      %1050 = vrot.lane.b32.xlu0 %v673, 24
      %v1051 = vpop.permute.xlu0 %1050
      %1052 = vrot.lane.b32.xlu0 %v674, 24
      %v1053 = vpop.permute.xlu0 %1052
      %1054 = vrot.lane.b32.xlu0 %v675, 24
      %v1055 = vpop.permute.xlu0 %1054
      %1056 = vrot.lane.b32.xlu0 %v676, 24
      %v1057 = vpop.permute.xlu0 %1056
      %1058 = vrot.lane.b32.xlu0 %v677, 24
      %v1059 = vpop.permute.xlu0 %1058
      %1060 = vrot.lane.b32.xlu0 %v678, 24
      %v1061 = vpop.permute.xlu0 %1060
      %1062 = vrot.lane.b32.xlu0 %v679, 24
      %v1063 = vpop.permute.xlu0 %1062
      %1064 = vrot.lane.b32.xlu0 %v680, 24
      %v1065 = vpop.permute.xlu0 %1064
      %1082 = vrot.lane.b32.xlu0 %v713, 32
      %v1083 = vpop.permute.xlu0 %1082
      %1084 = vrot.lane.b32.xlu0 %v714, 32
      %v1085 = vpop.permute.xlu0 %1084
      %1086 = vrot.lane.b32.xlu0 %v715, 32
      %v1087 = vpop.permute.xlu0 %1086
      %1088 = vrot.lane.b32.xlu0 %v716, 32
      %v1089 = vpop.permute.xlu0 %1088
      %1090 = vrot.lane.b32.xlu0 %v717, 32
      %v1091 = vpop.permute.xlu0 %1090
      %1092 = vrot.lane.b32.xlu0 %v718, 32
      %v1093 = vpop.permute.xlu0 %1092
      %1094 = vrot.lane.b32.xlu0 %v719, 32
      %v1095 = vpop.permute.xlu0 %1094
      %1096 = vrot.lane.b32.xlu0 %v720, 32
      %v1097 = vpop.permute.xlu0 %1096
      %1098 = vrot.lane.b32.xlu0 %v721, 32
      %v1099 = vpop.permute.xlu0 %1098
      %1100 = vrot.lane.b32.xlu0 %v722, 32
      %v1101 = vpop.permute.xlu0 %1100
      %1102 = vrot.lane.b32.xlu0 %v723, 32
      %v1103 = vpop.permute.xlu0 %1102
      %1104 = vrot.lane.b32.xlu0 %v724, 32
      %v1105 = vpop.permute.xlu0 %1104
      %1106 = vrot.lane.b32.xlu0 %v725, 32
      %v1107 = vpop.permute.xlu0 %1106
      %1108 = vrot.lane.b32.xlu0 %v726, 32
      %v1109 = vpop.permute.xlu0 %1108
      %1110 = vrot.lane.b32.xlu0 %v727, 32
      %v1111 = vpop.permute.xlu0 %1110
      %1112 = vrot.lane.b32.xlu0 %v728, 32
      %v1113 = vpop.permute.xlu0 %1112
      %1130 = vrot.lane.b32.xlu0 %v761, 40
      %v1131 = vpop.permute.xlu0 %1130
      %1132 = vrot.lane.b32.xlu0 %v762, 40
      %v1133 = vpop.permute.xlu0 %1132
      %1134 = vrot.lane.b32.xlu0 %v763, 40
      %v1135 = vpop.permute.xlu0 %1134
      %1136 = vrot.lane.b32.xlu0 %v764, 40
      %v1137 = vpop.permute.xlu0 %1136
      %1138 = vrot.lane.b32.xlu0 %v765, 40
      %v1139 = vpop.permute.xlu0 %1138
      %1140 = vrot.lane.b32.xlu0 %v766, 40
      %v1141 = vpop.permute.xlu0 %1140
      %1142 = vrot.lane.b32.xlu0 %v767, 40
      %v1143 = vpop.permute.xlu0 %1142
      %1144 = vrot.lane.b32.xlu0 %v768, 40
      %v1145 = vpop.permute.xlu0 %1144
      %1146 = vrot.lane.b32.xlu0 %v769, 40
      %v1147 = vpop.permute.xlu0 %1146
      %1148 = vrot.lane.b32.xlu0 %v770, 40
      %v1149 = vpop.permute.xlu0 %1148
      %1150 = vrot.lane.b32.xlu0 %v771, 40
      %v1151 = vpop.permute.xlu0 %1150
      %1152 = vrot.lane.b32.xlu0 %v772, 40
      %v1153 = vpop.permute.xlu0 %1152
      %1154 = vrot.lane.b32.xlu0 %v773, 40
      %v1155 = vpop.permute.xlu0 %1154
      %1156 = vrot.lane.b32.xlu0 %v774, 40
      %v1157 = vpop.permute.xlu0 %1156
      %1158 = vrot.lane.b32.xlu0 %v775, 40
      %v1159 = vpop.permute.xlu0 %1158
      %1160 = vrot.lane.b32.xlu0 %v776, 40
      %v1161 = vpop.permute.xlu0 %1160
      %1178 = vrot.lane.b32.xlu0 %v810, 48
      %v1179 = vpop.permute.xlu0 %1178
      %1180 = vrot.lane.b32.xlu0 %v811, 48
      %v1181 = vpop.permute.xlu0 %1180
      %1182 = vrot.lane.b32.xlu0 %v812, 48
      %v1183 = vpop.permute.xlu0 %1182
      %1184 = vrot.lane.b32.xlu0 %v813, 48
      %v1185 = vpop.permute.xlu0 %1184
      %1186 = vrot.lane.b32.xlu0 %v814, 48
      %v1187 = vpop.permute.xlu0 %1186
      %1188 = vrot.lane.b32.xlu0 %v815, 48
      %v1189 = vpop.permute.xlu0 %1188
      %1190 = vrot.lane.b32.xlu0 %v816, 48
      %v1191 = vpop.permute.xlu0 %1190
      %1192 = vrot.lane.b32.xlu0 %v817, 48
      %v1193 = vpop.permute.xlu0 %1192
      %1194 = vrot.lane.b32.xlu0 %v818, 48
      %v1195 = vpop.permute.xlu0 %1194
      %1196 = vrot.lane.b32.xlu0 %v819, 48
      %v1197 = vpop.permute.xlu0 %1196
      %1198 = vrot.lane.b32.xlu0 %v820, 48
      %v1199 = vpop.permute.xlu0 %1198
      %1200 = vrot.lane.b32.xlu0 %v821, 48
      %v1201 = vpop.permute.xlu0 %1200
      %1202 = vrot.lane.b32.xlu0 %v822, 48
      %v1203 = vpop.permute.xlu0 %1202
      %1204 = vrot.lane.b32.xlu0 %v823, 48
      %v1205 = vpop.permute.xlu0 %1204
      %1206 = vrot.lane.b32.xlu0 %v824, 48
      %v1207 = vpop.permute.xlu0 %1206
      %1208 = vrot.lane.b32.xlu0 %v825, 48
      %v1209 = vpop.permute.xlu0 %1208
      %1226 = vrot.lane.b32.xlu0 %v858, 56
      %v1227 = vpop.permute.xlu0 %1226
      %1228 = vrot.lane.b32.xlu0 %v859, 56
      %v1229 = vpop.permute.xlu0 %1228
      %1230 = vrot.lane.b32.xlu0 %v860, 56
      %v1231 = vpop.permute.xlu0 %1230
      %1232 = vrot.lane.b32.xlu0 %v861, 56
      %v1233 = vpop.permute.xlu0 %1232
      %1234 = vrot.lane.b32.xlu0 %v862, 56
      %v1235 = vpop.permute.xlu0 %1234
      %1236 = vrot.lane.b32.xlu0 %v863, 56
      %v1237 = vpop.permute.xlu0 %1236
      %1238 = vrot.lane.b32.xlu0 %v864, 56
      %v1239 = vpop.permute.xlu0 %1238
      %1240 = vrot.lane.b32.xlu0 %v865, 56
      %v1241 = vpop.permute.xlu0 %1240
      %1242 = vrot.lane.b32.xlu0 %v866, 56
      %v1243 = vpop.permute.xlu0 %1242
      %1244 = vrot.lane.b32.xlu0 %v867, 56
      %v1245 = vpop.permute.xlu0 %1244
      %1246 = vrot.lane.b32.xlu0 %v868, 56
      %v1247 = vpop.permute.xlu0 %1246
      %1248 = vrot.lane.b32.xlu0 %v869, 56
      %v1249 = vpop.permute.xlu0 %1248
      %1250 = vrot.lane.b32.xlu0 %v870, 56
      %v1251 = vpop.permute.xlu0 %1250
      %1252 = vrot.lane.b32.xlu0 %v871, 56
      %v1253 = vpop.permute.xlu0 %1252
      %1254 = vrot.lane.b32.xlu0 %v872, 56
      %v1255 = vpop.permute.xlu0 %1254
      %1256 = vrot.lane.b32.xlu0 %v873, 56
      %v1257 = vpop.permute.xlu0 %1256
      %1274 = vrot.lane.b32.xlu0 %v906, 64
      %v1275 = vpop.permute.xlu0 %1274
      %1276 = vrot.lane.b32.xlu0 %v907, 64
      %v1277 = vpop.permute.xlu0 %1276
      %1278 = vrot.lane.b32.xlu0 %v908, 64
      %v1279 = vpop.permute.xlu0 %1278
      %1280 = vrot.lane.b32.xlu0 %v909, 64
      %v1281 = vpop.permute.xlu0 %1280
      %1282 = vrot.lane.b32.xlu0 %v910, 64
      %v1283 = vpop.permute.xlu0 %1282
      %1284 = vrot.lane.b32.xlu0 %v911, 64
      %v1285 = vpop.permute.xlu0 %1284
      %1286 = vrot.lane.b32.xlu0 %v912, 64
      %v1287 = vpop.permute.xlu0 %1286
      %1288 = vrot.lane.b32.xlu0 %v913, 64
      %v1289 = vpop.permute.xlu0 %1288
      %1290 = vrot.lane.b32.xlu0 %v914, 64
      %v1291 = vpop.permute.xlu0 %1290
      %1292 = vrot.lane.b32.xlu0 %v915, 64
      %v1293 = vpop.permute.xlu0 %1292
      %1294 = vrot.lane.b32.xlu0 %v916, 64
      %v1295 = vpop.permute.xlu0 %1294
      %1296 = vrot.lane.b32.xlu0 %v917, 64
      %v1297 = vpop.permute.xlu0 %1296
      %1298 = vrot.lane.b32.xlu0 %v918, 64
      %v1299 = vpop.permute.xlu0 %1298
      %1300 = vrot.lane.b32.xlu0 %v919, 64
      %v1301 = vpop.permute.xlu0 %1300
      %1302 = vrot.lane.b32.xlu0 %v920, 64
      %v1303 = vpop.permute.xlu0 %1302
      %1304 = vrot.lane.b32.xlu0 %v921, 64
      %v1305 = vpop.permute.xlu0 %1304
      %v1308 = vsel %vm414, %v521, %v939
      %v1311 = vsel %vm414, %v522, %v941
      %v1314 = vsel %vm414, %v523, %v943
      %v1317 = vsel %vm414, %v524, %v945
      %v1320 = vsel %vm414, %v525, %v947
      %v1323 = vsel %vm414, %v526, %v949
      %v1326 = vsel %vm414, %v527, %v951
      %v1329 = vsel %vm414, %v528, %v953
      %v1332 = vsel %vm414, %v529, %v955
      %v1335 = vsel %vm414, %v530, %v957
      %v1338 = vsel %vm414, %v531, %v959
      %v1341 = vsel %vm414, %v532, %v961
      %v1344 = vsel %vm414, %v533, %v963
      %v1347 = vsel %vm414, %v534, %v965
      %v1350 = vsel %vm414, %v535, %v967
      %v1353 = vsel %vm414, %v536, %v969
      %vm1354 = vcmask 130048
      %v1356 = vsel %vm1354, %v1308, %v987
      %v1358 = vsel %vm1354, %v1311, %v989
      %v1360 = vsel %vm1354, %v1314, %v991
      %v1362 = vsel %vm1354, %v1317, %v993
      %v1364 = vsel %vm1354, %v1320, %v995
      %v1366 = vsel %vm1354, %v1323, %v997
      %v1368 = vsel %vm1354, %v1326, %v999
      %v1370 = vsel %vm1354, %v1329, %v1001
      %v1372 = vsel %vm1354, %v1332, %v1003
      %v1374 = vsel %vm1354, %v1335, %v1005
      %v1376 = vsel %vm1354, %v1338, %v1007
      %v1378 = vsel %vm1354, %v1341, %v1009
      %v1380 = vsel %vm1354, %v1344, %v1011
      %v1382 = vsel %vm1354, %v1347, %v1013
      %v1384 = vsel %vm1354, %v1350, %v1015
      %v1386 = vsel %vm1354, %v1353, %v1017
      %vm1387 = vcmask 195584
      %v1389 = vsel %vm1387, %v1356, %v1035
      %v1391 = vsel %vm1387, %v1358, %v1037
      %v1393 = vsel %vm1387, %v1360, %v1039
      %v1395 = vsel %vm1387, %v1362, %v1041
      %v1397 = vsel %vm1387, %v1364, %v1043
      %v1399 = vsel %vm1387, %v1366, %v1045
      %v1401 = vsel %vm1387, %v1368, %v1047
      %v1403 = vsel %vm1387, %v1370, %v1049
      %v1405 = vsel %vm1387, %v1372, %v1051
      %v1407 = vsel %vm1387, %v1374, %v1053
      %v1409 = vsel %vm1387, %v1376, %v1055
      %v1411 = vsel %vm1387, %v1378, %v1057
      %v1413 = vsel %vm1387, %v1380, %v1059
      %v1415 = vsel %vm1387, %v1382, %v1061
      %v1417 = vsel %vm1387, %v1384, %v1063
      %v1419 = vsel %vm1387, %v1386, %v1065
      %vm1420 = vcmask 261120
      %v1422 = vsel %vm1420, %v1389, %v1083
      %v1424 = vsel %vm1420, %v1391, %v1085
      %v1426 = vsel %vm1420, %v1393, %v1087
      %v1428 = vsel %vm1420, %v1395, %v1089
      %v1430 = vsel %vm1420, %v1397, %v1091
      %v1432 = vsel %vm1420, %v1399, %v1093
      %v1434 = vsel %vm1420, %v1401, %v1095
      %v1436 = vsel %vm1420, %v1403, %v1097
      %v1438 = vsel %vm1420, %v1405, %v1099
      %v1440 = vsel %vm1420, %v1407, %v1101
      %v1442 = vsel %vm1420, %v1409, %v1103
      %v1444 = vsel %vm1420, %v1411, %v1105
      %v1446 = vsel %vm1420, %v1413, %v1107
      %v1448 = vsel %vm1420, %v1415, %v1109
      %v1450 = vsel %vm1420, %v1417, %v1111
      %v1452 = vsel %vm1420, %v1419, %v1113
      %vm1453 = vcmask 326656
      %v1455 = vsel %vm1453, %v1422, %v1131
      %v1457 = vsel %vm1453, %v1424, %v1133
      %v1459 = vsel %vm1453, %v1426, %v1135
      %v1461 = vsel %vm1453, %v1428, %v1137
      %v1463 = vsel %vm1453, %v1430, %v1139
      %v1465 = vsel %vm1453, %v1432, %v1141
      %v1467 = vsel %vm1453, %v1434, %v1143
      %v1469 = vsel %vm1453, %v1436, %v1145
      %v1471 = vsel %vm1453, %v1438, %v1147
      %v1473 = vsel %vm1453, %v1440, %v1149
      %v1475 = vsel %vm1453, %v1442, %v1151
      %v1477 = vsel %vm1453, %v1444, %v1153
      %v1479 = vsel %vm1453, %v1446, %v1155
      %v1481 = vsel %vm1453, %v1448, %v1157
      %v1483 = vsel %vm1453, %v1450, %v1159
      %v1485 = vsel %vm1453, %v1452, %v1161
      %vm1486 = vcmask 392192
      %v1488 = vsel %vm1486, %v1455, %v1179
      %v1490 = vsel %vm1486, %v1457, %v1181
      %v1492 = vsel %vm1486, %v1459, %v1183
      %v1494 = vsel %vm1486, %v1461, %v1185
      %v1496 = vsel %vm1486, %v1463, %v1187
      %v1498 = vsel %vm1486, %v1465, %v1189
      %v1500 = vsel %vm1486, %v1467, %v1191
      %v1502 = vsel %vm1486, %v1469, %v1193
      %v1504 = vsel %vm1486, %v1471, %v1195
      %v1506 = vsel %vm1486, %v1473, %v1197
      %v1508 = vsel %vm1486, %v1475, %v1199
      %v1510 = vsel %vm1486, %v1477, %v1201
      %v1512 = vsel %vm1486, %v1479, %v1203
      %v1514 = vsel %vm1486, %v1481, %v1205
      %v1516 = vsel %vm1486, %v1483, %v1207
      %v1518 = vsel %vm1486, %v1485, %v1209
      %vm1519 = vcmask 457728
      %v1521 = vsel %vm1519, %v1488, %v1227
      %v1523 = vsel %vm1519, %v1490, %v1229
      %v1525 = vsel %vm1519, %v1492, %v1231
      %v1527 = vsel %vm1519, %v1494, %v1233
      %v1529 = vsel %vm1519, %v1496, %v1235
      %v1531 = vsel %vm1519, %v1498, %v1237
      %v1533 = vsel %vm1519, %v1500, %v1239
      %v1535 = vsel %vm1519, %v1502, %v1241
      %v1537 = vsel %vm1519, %v1504, %v1243
      %v1539 = vsel %vm1519, %v1506, %v1245
      %v1541 = vsel %vm1519, %v1508, %v1247
      %v1543 = vsel %vm1519, %v1510, %v1249
      %v1545 = vsel %vm1519, %v1512, %v1251
      %v1547 = vsel %vm1519, %v1514, %v1253
      %v1549 = vsel %vm1519, %v1516, %v1255
      %v1551 = vsel %vm1519, %v1518, %v1257
      %vm1552 = vcmask 523264
      %v1554 = vsel %vm1552, %v1521, %v1275
      %v1556 = vsel %vm1552, %v1523, %v1277
      %v1558 = vsel %vm1552, %v1525, %v1279
      %v1560 = vsel %vm1552, %v1527, %v1281
      %v1562 = vsel %vm1552, %v1529, %v1283
      %v1564 = vsel %vm1552, %v1531, %v1285
      %v1566 = vsel %vm1552, %v1533, %v1287
      %v1568 = vsel %vm1552, %v1535, %v1289
      %v1570 = vsel %vm1552, %v1537, %v1291
      %v1572 = vsel %vm1552, %v1539, %v1293
      %v1574 = vsel %vm1552, %v1541, %v1295
      %v1576 = vsel %vm1552, %v1543, %v1297
      %v1578 = vsel %vm1552, %v1545, %v1299
      %v1580 = vsel %vm1552, %v1547, %v1301
      %v1582 = vsel %vm1552, %v1549, %v1303
      %v1584 = vsel %vm1552, %v1551, %v1305
      %v1585 = vld [vmem:[%s3] sm:$0xf]
      %v1586 = vld [vmem:[%s3 + $0x4] sm:$0xf]
      %v1587 = vld [vmem:[%s3 + $0x8] sm:$0xf]
      %v1588 = vld [vmem:[%s3 + $0xc] sm:$0xf]
      %v1589 = vld [vmem:[%s3 + $0x10] sm:$0xf]
      %v1590 = vld [vmem:[%s3 + $0x14] sm:$0xf]
      %v1591 = vld [vmem:[%s3 + $0x18] sm:$0xf]
      %v1592 = vld [vmem:[%s3 + $0x1c] sm:$0xf]
      %v1593 = vld [vmem:[%s3 + $0x20] sm:$0xf]
      %v1603 = vunpack.c.l.b16 %v1585
      %v1604 = vunpack.c.l.b16 %v1586
      %v1605 = vunpack.c.l.b16 %v1587
      %v1606 = vunpack.c.l.b16 %v1588
      %v1607 = vunpack.c.l.b16 %v1589
      %v1608 = vunpack.c.l.b16 %v1590
      %v1609 = vunpack.c.l.b16 %v1591
      %v1610 = vunpack.c.l.b16 %v1592
      %v1611 = vunpack.c.l.b16 %v1593
      %v1612 = vpack.c.b16 %v1604, %v1603
      %v1613 = vpack.c.b16 %v1606, %v1605
      %v1614 = vpack.c.b16 %v1608, %v1607
      %v1615 = vpack.c.b16 %v1610, %v1609
      %v1616 = vpack.c.b16 %v1611, %v1611
      %vm1621 = vcmask 588800
      %v1622 = vsel %vm1621, %v1554, 0
      %v1624 = vsel %vm1621, %v1556, 0
      %v1626 = vsel %vm1621, %v1558, 0
      %v1628 = vsel %vm1621, %v1560, 0
      %v1630 = vsel %vm1621, %v1562, 0
      %v1632 = vsel %vm1621, %v1564, 0
      %v1634 = vsel %vm1621, %v1566, 0
      %v1636 = vsel %vm1621, %v1568, 0
      %v1638 = vsel %vm1621, %v1570, 0
      %v1640 = vsel %vm1621, %v1572, 0
      %v1642 = vsel %vm1621, %v1574, 0
      %v1644 = vsel %vm1621, %v1576, 0
      %v1646 = vsel %vm1621, %v1578, 0
      %v1648 = vsel %vm1621, %v1580, 0
      %v1650 = vsel %vm1621, %v1582, 0
      %v1652 = vsel %vm1621, %v1584, 0
      %vm1654 = vcmask 1043456
      %v1656 = vsel %vm1654, %v1616, 0
      %1658 = vmatprep.subr.bf16.mxu0 0
      %1659 = vmatpush1.bf16.msra.mxu0 0
      %1660 = vmatprep.subr.bf16.mxu0 0
      %1661 = vmatpush1.bf16.msra.mxu0 0
      %1662 = vmatprep.subr.bf16.mxu0 0
      %1663 = vmatpush1.bf16.msra.mxu0 0
      %1664 = vmatprep.subr.bf16.mxu0 0
      %1665 = vmatpush1.bf16.msra.mxu0 %v1656
      %1666 = vmatprep.subr.bf16.mxu0 0
      %1667 = vmatpush1.bf16.msra.mxu0 %v1615
      %1668 = vmatprep.subr.bf16.mxu0 0
      %1669 = vmatpush1.bf16.msra.mxu0 %v1614
      %1670 = vmatprep.subr.bf16.mxu0 0
      %1671 = vmatpush1.bf16.msra.mxu0 %v1613
      %1672 = vmatprep.subr.bf16.mxu0 0
      %1673 = vmatpush1.bf16.msra.mxu0 %v1612
      %1674 = vmatprep.subr.bf16.mxu0 0
      %1675 = vmatpush2.bf16.msra.mxu0 0
      %1676 = vmatprep.subr.bf16.mxu0 0
      %1677 = vmatpush2.bf16.msra.mxu0 0
      %1678 = vmatprep.subr.bf16.mxu0 0
      %1679 = vmatpush2.bf16.msra.mxu0 0
      %1680 = vmatprep.subr.bf16.mxu0 0
      %1681 = vmatpush2.bf16.msra.mxu0 0
      %1682 = vmatprep.subr.bf16.mxu0 0
      %1683 = vmatpush2.bf16.msra.mxu0 0
      %1684 = vmatprep.subr.bf16.mxu0 0
      %1685 = vmatpush2.bf16.msra.mxu0 0
      %1686 = vmatprep.subr.bf16.mxu0 0
      %1687 = vmatpush2.bf16.msra.mxu0 0
      %1688 = vmatprep.subr.bf16.mxu0 0
      %1689 = vmatpush2.bf16.msra.mxu0 0
      %1690 = vmatprep.mubr.bf16.mxu0 0
      %1691 = vmatmul.mubr.bf16.gmra.mxu0 %v1622
      %v1692 = vpop.f32.mrf.mxu0
      %v1693 = vadd.f32 0.0, %v1692
      %v1694 = vpop.f32.mrf.mxu0
      %v1695 = vpop.f32.mrf.mxu0
      %v1696 = vadd.f32 0.0, %v1695
      %v1697 = vpop.f32.mrf.mxu0
      %1698 = vmatprep.mubr.bf16.mxu0 0
      %1699 = vmatmul.mubr.bf16.gmra.mxu0 %v1624
      %v1700 = vpop.f32.mrf.mxu0
      %v1701 = vadd.f32 0.0, %v1700
      %v1702 = vpop.f32.mrf.mxu0
      %v1703 = vpop.f32.mrf.mxu0
      %v1704 = vadd.f32 0.0, %v1703
      %v1705 = vpop.f32.mrf.mxu0
      %1706 = vmatprep.mubr.bf16.mxu0 0
      %1707 = vmatmul.mubr.bf16.gmra.mxu0 %v1626
      %v1708 = vpop.f32.mrf.mxu0
      %v1709 = vadd.f32 0.0, %v1708
      %v1710 = vpop.f32.mrf.mxu0
      %v1711 = vpop.f32.mrf.mxu0
      %v1712 = vadd.f32 0.0, %v1711
      %v1713 = vpop.f32.mrf.mxu0
      %1714 = vmatprep.mubr.bf16.mxu0 0
      %1715 = vmatmul.mubr.bf16.gmra.mxu0 %v1628
      %v1716 = vpop.f32.mrf.mxu0
      %v1717 = vadd.f32 0.0, %v1716
      %v1718 = vpop.f32.mrf.mxu0
      %v1719 = vpop.f32.mrf.mxu0
      %v1720 = vadd.f32 0.0, %v1719
      %v1721 = vpop.f32.mrf.mxu0
      %1722 = vmatprep.mubr.bf16.mxu0 0
      %1723 = vmatmul.mubr.bf16.gmra.mxu0 %v1630
      %v1724 = vpop.f32.mrf.mxu0
      %v1725 = vadd.f32 0.0, %v1724
      %v1726 = vpop.f32.mrf.mxu0
      %v1727 = vpop.f32.mrf.mxu0
      %v1728 = vadd.f32 0.0, %v1727
      %v1729 = vpop.f32.mrf.mxu0
      %1730 = vmatprep.mubr.bf16.mxu0 0
      %1731 = vmatmul.mubr.bf16.gmra.mxu0 %v1632
      %v1732 = vpop.f32.mrf.mxu0
      %v1733 = vadd.f32 0.0, %v1732
      %v1734 = vpop.f32.mrf.mxu0
      %v1735 = vpop.f32.mrf.mxu0
      %v1736 = vadd.f32 0.0, %v1735
      %v1737 = vpop.f32.mrf.mxu0
      %1738 = vmatprep.mubr.bf16.mxu0 0
      %1739 = vmatmul.mubr.bf16.gmra.mxu0 %v1634
      %v1740 = vpop.f32.mrf.mxu0
      %v1741 = vadd.f32 0.0, %v1740
      %v1742 = vpop.f32.mrf.mxu0
      %v1743 = vpop.f32.mrf.mxu0
      %v1744 = vadd.f32 0.0, %v1743
      %v1745 = vpop.f32.mrf.mxu0
      %1746 = vmatprep.mubr.bf16.mxu0 0
      %1747 = vmatmul.mubr.bf16.gmra.mxu0 %v1636
      %v1748 = vpop.f32.mrf.mxu0
      %v1749 = vadd.f32 0.0, %v1748
      %v1750 = vpop.f32.mrf.mxu0
      %v1751 = vpop.f32.mrf.mxu0
      %v1752 = vadd.f32 0.0, %v1751
      %v1753 = vpop.f32.mrf.mxu0
      %1754 = vmatprep.mubr.bf16.mxu0 0
      %1755 = vmatmul.mubr.bf16.gmra.mxu0 %v1638
      %v1756 = vpop.f32.mrf.mxu0
      %v1757 = vadd.f32 0.0, %v1756
      %v1758 = vpop.f32.mrf.mxu0
      %v1759 = vpop.f32.mrf.mxu0
      %v1760 = vadd.f32 0.0, %v1759
      %v1761 = vpop.f32.mrf.mxu0
      %1762 = vmatprep.mubr.bf16.mxu0 0
      %1763 = vmatmul.mubr.bf16.gmra.mxu0 %v1640
      %v1764 = vpop.f32.mrf.mxu0
      %v1765 = vadd.f32 0.0, %v1764
      %v1766 = vpop.f32.mrf.mxu0
      %v1767 = vpop.f32.mrf.mxu0
      %v1768 = vadd.f32 0.0, %v1767
      %v1769 = vpop.f32.mrf.mxu0
      %1770 = vmatprep.mubr.bf16.mxu0 0
      %1771 = vmatmul.mubr.bf16.gmra.mxu0 %v1642
      %v1772 = vpop.f32.mrf.mxu0
      %v1773 = vadd.f32 0.0, %v1772
      %v1774 = vpop.f32.mrf.mxu0
      %v1775 = vpop.f32.mrf.mxu0
      %v1776 = vadd.f32 0.0, %v1775
      %v1777 = vpop.f32.mrf.mxu0
      %1778 = vmatprep.mubr.bf16.mxu0 0
      %1779 = vmatmul.mubr.bf16.gmra.mxu0 %v1644
      %v1780 = vpop.f32.mrf.mxu0
      %v1781 = vadd.f32 0.0, %v1780
      %v1782 = vpop.f32.mrf.mxu0
      %v1783 = vpop.f32.mrf.mxu0
      %v1784 = vadd.f32 0.0, %v1783
      %v1785 = vpop.f32.mrf.mxu0
      %1786 = vmatprep.mubr.bf16.mxu0 0
      %1787 = vmatmul.mubr.bf16.gmra.mxu0 %v1646
      %v1788 = vpop.f32.mrf.mxu0
      %v1789 = vadd.f32 0.0, %v1788
      %v1790 = vpop.f32.mrf.mxu0
      %v1791 = vpop.f32.mrf.mxu0
      %v1792 = vadd.f32 0.0, %v1791
      %v1793 = vpop.f32.mrf.mxu0
      %1794 = vmatprep.mubr.bf16.mxu0 0
      %1795 = vmatmul.mubr.bf16.gmra.mxu0 %v1648
      %v1796 = vpop.f32.mrf.mxu0
      %v1797 = vadd.f32 0.0, %v1796
      %v1798 = vpop.f32.mrf.mxu0
      %v1799 = vpop.f32.mrf.mxu0
      %v1800 = vadd.f32 0.0, %v1799
      %v1801 = vpop.f32.mrf.mxu0
      %1802 = vmatprep.mubr.bf16.mxu0 0
      %1803 = vmatmul.mubr.bf16.gmra.mxu0 %v1650
      %v1804 = vpop.f32.mrf.mxu0
      %v1805 = vadd.f32 0.0, %v1804
      %v1806 = vpop.f32.mrf.mxu0
      %v1807 = vpop.f32.mrf.mxu0
      %v1808 = vadd.f32 0.0, %v1807
      %v1809 = vpop.f32.mrf.mxu0
      %1810 = vmatprep.mubr.bf16.mxu0 0
      %1811 = vmatmul.mubr.bf16.gmra.mxu0 %v1652
      %v1812 = vpop.f32.mrf.mxu0
      %v1813 = vadd.f32 0.0, %v1812
      %v1814 = vpop.f32.mrf.mxu0
      %v1815 = vpop.f32.mrf.mxu0
      %v1816 = vadd.f32 0.0, %v1815
      %v1817 = vpop.f32.mrf.mxu0
      %1818 = vdwg.mxu0
      %v1819 = vpack.c.bf16 %v1696, %v1693
      %v1820 = vpack.c.bf16 %v1704, %v1701
      %v1821 = vpack.c.bf16 %v1712, %v1709
      %v1822 = vpack.c.bf16 %v1720, %v1717
      %v1823 = vpack.c.bf16 %v1728, %v1725
      %v1824 = vpack.c.bf16 %v1736, %v1733
      %v1825 = vpack.c.bf16 %v1744, %v1741
      %v1826 = vpack.c.bf16 %v1752, %v1749
      %v1827 = vpack.c.bf16 %v1760, %v1757
      %v1828 = vpack.c.bf16 %v1768, %v1765
      %v1829 = vpack.c.bf16 %v1776, %v1773
      %v1830 = vpack.c.bf16 %v1784, %v1781
      %v1831 = vpack.c.bf16 %v1792, %v1789
      %v1832 = vpack.c.bf16 %v1800, %v1797
      %v1833 = vpack.c.bf16 %v1808, %v1805
      %v1834 = vpack.c.bf16 %v1816, %v1813
      %v1851 = vunpack.c.l.b16 %v1819
      %v1852 = vunpack.c.h.b16 %v1819
      %v1853 = vunpack.c.l.b16 %v1820
      %v1854 = vunpack.c.h.b16 %v1820
      %v1855 = vunpack.c.l.b16 %v1821
      %v1856 = vunpack.c.h.b16 %v1821
      %v1857 = vunpack.c.l.b16 %v1822
      %v1858 = vunpack.c.h.b16 %v1822
      %v1859 = vunpack.c.l.b16 %v1823
      %v1860 = vunpack.c.h.b16 %v1823
      %v1861 = vunpack.c.l.b16 %v1824
      %v1862 = vunpack.c.h.b16 %v1824
      %v1863 = vunpack.c.l.b16 %v1825
      %v1864 = vunpack.c.h.b16 %v1825
      %v1865 = vunpack.c.l.b16 %v1826
      %v1866 = vunpack.c.h.b16 %v1826
      %v1867 = vunpack.c.l.b16 %v1827
      %v1868 = vunpack.c.h.b16 %v1827
      %v1869 = vunpack.c.l.b16 %v1828
      %v1870 = vunpack.c.h.b16 %v1828
      %v1871 = vunpack.c.l.b16 %v1829
      %v1872 = vunpack.c.h.b16 %v1829
      %v1873 = vunpack.c.l.b16 %v1830
      %v1874 = vunpack.c.h.b16 %v1830
      %v1875 = vunpack.c.l.b16 %v1831
      %v1876 = vunpack.c.h.b16 %v1831
      %v1877 = vunpack.c.l.b16 %v1832
      %v1878 = vunpack.c.h.b16 %v1832
      %v1879 = vunpack.c.l.b16 %v1833
      %v1880 = vunpack.c.h.b16 %v1833
      %v1881 = vunpack.c.l.b16 %v1834
      %v1882 = vunpack.c.h.b16 %v1834
      %v1883 = vpack.c.b16 %v1851, %v1851
      %v1884 = vpack.c.b16 %v1852, %v1852
      %v1885 = vpack.c.b16 %v1853, %v1853
      %v1886 = vpack.c.b16 %v1854, %v1854
      %v1887 = vpack.c.b16 %v1855, %v1855
      %v1888 = vpack.c.b16 %v1856, %v1856
      %v1889 = vpack.c.b16 %v1857, %v1857
      %v1890 = vpack.c.b16 %v1858, %v1858
      %v1891 = vpack.c.b16 %v1859, %v1859
      %v1892 = vpack.c.b16 %v1860, %v1860
      %v1893 = vpack.c.b16 %v1861, %v1861
      %v1894 = vpack.c.b16 %v1862, %v1862
      %v1895 = vpack.c.b16 %v1863, %v1863
      %v1896 = vpack.c.b16 %v1864, %v1864
      %v1897 = vpack.c.b16 %v1865, %v1865
      %v1898 = vpack.c.b16 %v1866, %v1866
      %v1899 = vpack.c.b16 %v1867, %v1867
      %v1900 = vpack.c.b16 %v1868, %v1868
      %v1901 = vpack.c.b16 %v1869, %v1869
      %v1902 = vpack.c.b16 %v1870, %v1870
      %v1903 = vpack.c.b16 %v1871, %v1871
      %v1904 = vpack.c.b16 %v1872, %v1872
      %v1905 = vpack.c.b16 %v1873, %v1873
      %v1906 = vpack.c.b16 %v1874, %v1874
      %v1907 = vpack.c.b16 %v1875, %v1875
      %v1908 = vpack.c.b16 %v1876, %v1876
      %v1909 = vpack.c.b16 %v1877, %v1877
      %v1910 = vpack.c.b16 %v1878, %v1878
      %v1911 = vpack.c.b16 %v1879, %v1879
      %v1912 = vpack.c.b16 %v1880, %v1880
      %v1913 = vpack.c.b16 %v1881, %v1881
      %v1914 = vpack.c.b16 %v1882, %v1882
      %vm1947 = vcmask 60416
      %1948 = vst.msk [vmem:[%s233] sm:$0xf] %vm1947, %v1883
      %1949 = vst.msk [vmem:[%s233 + $0x4] sm:$0xf] %vm1947, %v1884
      %1950 = vst.msk [vmem:[%s233 + $0x8] sm:$0xf] %vm1947, %v1885
      %1951 = vst.msk [vmem:[%s233 + $0xc] sm:$0xf] %vm1947, %v1886
      %1952 = vst.msk [vmem:[%s233 + $0x10] sm:$0xf] %vm1947, %v1887
      %1953 = vst.msk [vmem:[%s233 + $0x14] sm:$0xf] %vm1947, %v1888
      %1954 = vst.msk [vmem:[%s233 + $0x18] sm:$0xf] %vm1947, %v1889
      %1955 = vst.msk [vmem:[%s233 + $0x1c] sm:$0xf] %vm1947, %v1890
      %1956 = vst.msk [vmem:[%s233 + $0x20] sm:$0xf] %vm1947, %v1891
      %1957 = vst.msk [vmem:[%s233 + $0x24] sm:$0xf] %vm1947, %v1892
      %1958 = vst.msk [vmem:[%s233 + $0x28] sm:$0xf] %vm1947, %v1893
      %1959 = vst.msk [vmem:[%s233 + $0x2c] sm:$0xf] %vm1947, %v1894
      %1960 = vst.msk [vmem:[%s233 + $0x30] sm:$0xf] %vm1947, %v1895
      %1961 = vst.msk [vmem:[%s233 + $0x34] sm:$0xf] %vm1947, %v1896
      %1962 = vst.msk [vmem:[%s233 + $0x38] sm:$0xf] %vm1947, %v1897
      %1963 = vst.msk [vmem:[%s233 + $0x3c] sm:$0xf] %vm1947, %v1898
      %1964 = vst.msk [vmem:[%s233 + $0x40] sm:$0xf] %vm1947, %v1899
      %1965 = vst.msk [vmem:[%s233 + $0x44] sm:$0xf] %vm1947, %v1900
      %1966 = vst.msk [vmem:[%s233 + $0x48] sm:$0xf] %vm1947, %v1901
      %1967 = vst.msk [vmem:[%s233 + $0x4c] sm:$0xf] %vm1947, %v1902
      %1968 = vst.msk [vmem:[%s233 + $0x50] sm:$0xf] %vm1947, %v1903
      %1969 = vst.msk [vmem:[%s233 + $0x54] sm:$0xf] %vm1947, %v1904
      %1970 = vst.msk [vmem:[%s233 + $0x58] sm:$0xf] %vm1947, %v1905
      %1971 = vst.msk [vmem:[%s233 + $0x5c] sm:$0xf] %vm1947, %v1906
      %1972 = vst.msk [vmem:[%s233 + $0x60] sm:$0xf] %vm1947, %v1907
      %1973 = vst.msk [vmem:[%s233 + $0x64] sm:$0xf] %vm1947, %v1908
      %1974 = vst.msk [vmem:[%s233 + $0x68] sm:$0xf] %vm1947, %v1909
      %1975 = vst.msk [vmem:[%s233 + $0x6c] sm:$0xf] %vm1947, %v1910
      %1976 = vst.msk [vmem:[%s233 + $0x70] sm:$0xf] %vm1947, %v1911
      %1977 = vst.msk [vmem:[%s233 + $0x74] sm:$0xf] %vm1947, %v1912
      %1978 = vst.msk [vmem:[%s233 + $0x78] sm:$0xf] %vm1947, %v1913
      %1979 = vst.msk [vmem:[%s233 + $0x7c] sm:$0xf] %vm1947, %v1914
      %v1980 = vsel %vm414, %v1693, 0.0
      %v1981 = vsel %vm414, %v1696, 0.0
      %v1982 = vadd.f32 %v1980, %v1981
      %v1983 = vsel %vm414, %v1701, 0.0
      %v1984 = vadd.f32 %v1982, %v1983
      %v1985 = vsel %vm414, %v1704, 0.0
      %v1986 = vadd.f32 %v1984, %v1985
      %v1987 = vsel %vm414, %v1709, 0.0
      %v1988 = vadd.f32 %v1986, %v1987
      %v1989 = vsel %vm414, %v1712, 0.0
      %v1990 = vadd.f32 %v1988, %v1989
      %v1991 = vsel %vm414, %v1717, 0.0
      %v1992 = vadd.f32 %v1990, %v1991
      %v1993 = vsel %vm414, %v1720, 0.0
      %v1994 = vadd.f32 %v1992, %v1993
      %v1995 = vsel %vm414, %v1725, 0.0
      %v1996 = vadd.f32 %v1994, %v1995
      %v1997 = vsel %vm414, %v1728, 0.0
      %v1998 = vadd.f32 %v1996, %v1997
      %v1999 = vsel %vm414, %v1733, 0.0
      %v2000 = vadd.f32 %v1998, %v1999
      %v2001 = vsel %vm414, %v1736, 0.0
      %v2002 = vadd.f32 %v2000, %v2001
      %v2003 = vsel %vm414, %v1741, 0.0
      %v2004 = vadd.f32 %v2002, %v2003
      %v2005 = vsel %vm414, %v1744, 0.0
      %v2006 = vadd.f32 %v2004, %v2005
      %v2007 = vsel %vm414, %v1749, 0.0
      %v2008 = vadd.f32 %v2006, %v2007
      %v2009 = vsel %vm414, %v1752, 0.0
      %v2010 = vadd.f32 %v2008, %v2009
      %v2011 = vsel %vm414, %v1757, 0.0
      %v2012 = vadd.f32 %v2010, %v2011
      %v2013 = vsel %vm414, %v1760, 0.0
      %v2014 = vadd.f32 %v2012, %v2013
      %v2015 = vsel %vm414, %v1765, 0.0
      %v2016 = vadd.f32 %v2014, %v2015
      %v2017 = vsel %vm414, %v1768, 0.0
      %v2018 = vadd.f32 %v2016, %v2017
      %v2019 = vsel %vm414, %v1773, 0.0
      %v2020 = vadd.f32 %v2018, %v2019
      %v2021 = vsel %vm414, %v1776, 0.0
      %v2022 = vadd.f32 %v2020, %v2021
      %v2023 = vsel %vm414, %v1781, 0.0
      %v2024 = vadd.f32 %v2022, %v2023
      %v2025 = vsel %vm414, %v1784, 0.0
      %v2026 = vadd.f32 %v2024, %v2025
      %v2027 = vsel %vm414, %v1789, 0.0
      %v2028 = vadd.f32 %v2026, %v2027
      %v2029 = vsel %vm414, %v1792, 0.0
      %v2030 = vadd.f32 %v2028, %v2029
      %v2031 = vsel %vm414, %v1797, 0.0
      %v2032 = vadd.f32 %v2030, %v2031
      %v2033 = vsel %vm414, %v1800, 0.0
      %v2034 = vadd.f32 %v2032, %v2033
      %v2035 = vsel %vm414, %v1805, 0.0
      %v2036 = vadd.f32 %v2034, %v2035
      %v2037 = vsel %vm414, %v1808, 0.0
      %v2038 = vadd.f32 %v2036, %v2037
      %v2039 = vsel %vm414, %v1813, 0.0
      %v2040 = vadd.f32 %v2038, %v2039
      %v2041 = vsel %vm414, %v1816, 0.0
      %v2042 = vadd.f32 %v2040, %v2041
      %v2043 = vrot.slane %v2042, 4
      %v2044 = vadd.f32 %v2042, %v2043
      %v2045 = vrot.slane %v2044, 2
      %v2046 = vadd.f32 %v2044, %v2045
      %v2047 = vrot.slane %v2046, 1
      %v2048 = vadd.f32 %v2046, %v2047
      %v2049 = vmul.f32 %v2048, 0.00390625
      %v2050 = vsub.f32 %v1693, %v2049
      %v2051 = vsub.f32 %v1696, %v2049
      %v2052 = vsub.f32 %v1701, %v2049
      %v2053 = vsub.f32 %v1704, %v2049
      %v2054 = vsub.f32 %v1709, %v2049
      %v2055 = vsub.f32 %v1712, %v2049
      %v2056 = vsub.f32 %v1717, %v2049
      %v2057 = vsub.f32 %v1720, %v2049
      %v2058 = vsub.f32 %v1725, %v2049
      %v2059 = vsub.f32 %v1728, %v2049
      %v2060 = vsub.f32 %v1733, %v2049
      %v2061 = vsub.f32 %v1736, %v2049
      %v2062 = vsub.f32 %v1741, %v2049
      %v2063 = vsub.f32 %v1744, %v2049
      %v2064 = vsub.f32 %v1749, %v2049
      %v2065 = vsub.f32 %v1752, %v2049
      %v2066 = vsub.f32 %v1757, %v2049
      %v2067 = vsub.f32 %v1760, %v2049
      %v2068 = vsub.f32 %v1765, %v2049
      %v2069 = vsub.f32 %v1768, %v2049
      %v2070 = vsub.f32 %v1773, %v2049
      %v2071 = vsub.f32 %v1776, %v2049
      %v2072 = vsub.f32 %v1781, %v2049
      %v2073 = vsub.f32 %v1784, %v2049
      %v2074 = vsub.f32 %v1789, %v2049
      %v2075 = vsub.f32 %v1792, %v2049
      %v2076 = vsub.f32 %v1797, %v2049
      %v2077 = vsub.f32 %v1800, %v2049
      %v2078 = vsub.f32 %v1805, %v2049
      %v2079 = vsub.f32 %v1808, %v2049
      %v2080 = vsub.f32 %v1813, %v2049
      %v2081 = vsub.f32 %v1816, %v2049
      %v2082 = vmul.f32 %v2050, %v2050
      %v2083 = vmul.f32 %v2051, %v2051
      %v2084 = vmul.f32 %v2052, %v2052
      %v2085 = vmul.f32 %v2053, %v2053
      %v2086 = vmul.f32 %v2054, %v2054
      %v2087 = vmul.f32 %v2055, %v2055
      %v2088 = vmul.f32 %v2056, %v2056
      %v2089 = vmul.f32 %v2057, %v2057
      %v2090 = vmul.f32 %v2058, %v2058
      %v2091 = vmul.f32 %v2059, %v2059
      %v2092 = vmul.f32 %v2060, %v2060
      %v2093 = vmul.f32 %v2061, %v2061
      %v2094 = vmul.f32 %v2062, %v2062
      %v2095 = vmul.f32 %v2063, %v2063
      %v2096 = vmul.f32 %v2064, %v2064
      %v2097 = vmul.f32 %v2065, %v2065
      %v2098 = vmul.f32 %v2066, %v2066
      %v2099 = vmul.f32 %v2067, %v2067
      %v2100 = vmul.f32 %v2068, %v2068
      %v2101 = vmul.f32 %v2069, %v2069
      %v2102 = vmul.f32 %v2070, %v2070
      %v2103 = vmul.f32 %v2071, %v2071
      %v2104 = vmul.f32 %v2072, %v2072
      %v2105 = vmul.f32 %v2073, %v2073
      %v2106 = vmul.f32 %v2074, %v2074
      %v2107 = vmul.f32 %v2075, %v2075
      %v2108 = vmul.f32 %v2076, %v2076
      %v2109 = vmul.f32 %v2077, %v2077
      %v2110 = vmul.f32 %v2078, %v2078
      %v2111 = vmul.f32 %v2079, %v2079
      %v2112 = vmul.f32 %v2080, %v2080
      %v2113 = vmul.f32 %v2081, %v2081
      %v2114 = vsel %vm414, %v2082, 0.0
      %v2115 = vsel %vm414, %v2083, 0.0
      %v2116 = vadd.f32 %v2114, %v2115
      %v2117 = vsel %vm414, %v2084, 0.0
      %v2118 = vadd.f32 %v2116, %v2117
      %v2119 = vsel %vm414, %v2085, 0.0
      %v2120 = vadd.f32 %v2118, %v2119
      %v2121 = vsel %vm414, %v2086, 0.0
      %v2122 = vadd.f32 %v2120, %v2121
      %v2123 = vsel %vm414, %v2087, 0.0
      %v2124 = vadd.f32 %v2122, %v2123
      %v2125 = vsel %vm414, %v2088, 0.0
      %v2126 = vadd.f32 %v2124, %v2125
      %v2127 = vsel %vm414, %v2089, 0.0
      %v2128 = vadd.f32 %v2126, %v2127
      %v2129 = vsel %vm414, %v2090, 0.0
      %v2130 = vadd.f32 %v2128, %v2129
      %v2131 = vsel %vm414, %v2091, 0.0
      %v2132 = vadd.f32 %v2130, %v2131
      %v2133 = vsel %vm414, %v2092, 0.0
      %v2134 = vadd.f32 %v2132, %v2133
      %v2135 = vsel %vm414, %v2093, 0.0
      %v2136 = vadd.f32 %v2134, %v2135
      %v2137 = vsel %vm414, %v2094, 0.0
      %v2138 = vadd.f32 %v2136, %v2137
      %v2139 = vsel %vm414, %v2095, 0.0
      %v2140 = vadd.f32 %v2138, %v2139
      %v2141 = vsel %vm414, %v2096, 0.0
      %v2142 = vadd.f32 %v2140, %v2141
      %v2143 = vsel %vm414, %v2097, 0.0
      %v2144 = vadd.f32 %v2142, %v2143
      %v2145 = vsel %vm414, %v2098, 0.0
      %v2146 = vadd.f32 %v2144, %v2145
      %v2147 = vsel %vm414, %v2099, 0.0
      %v2148 = vadd.f32 %v2146, %v2147
      %v2149 = vsel %vm414, %v2100, 0.0
      %v2150 = vadd.f32 %v2148, %v2149
      %v2151 = vsel %vm414, %v2101, 0.0
      %v2152 = vadd.f32 %v2150, %v2151
      %v2153 = vsel %vm414, %v2102, 0.0
      %v2154 = vadd.f32 %v2152, %v2153
      %v2155 = vsel %vm414, %v2103, 0.0
      %v2156 = vadd.f32 %v2154, %v2155
      %v2157 = vsel %vm414, %v2104, 0.0
      %v2158 = vadd.f32 %v2156, %v2157
      %v2159 = vsel %vm414, %v2105, 0.0
      %v2160 = vadd.f32 %v2158, %v2159
      %v2161 = vsel %vm414, %v2106, 0.0
      %v2162 = vadd.f32 %v2160, %v2161
      %v2163 = vsel %vm414, %v2107, 0.0
      %v2164 = vadd.f32 %v2162, %v2163
      %v2165 = vsel %vm414, %v2108, 0.0
      %v2166 = vadd.f32 %v2164, %v2165
      %v2167 = vsel %vm414, %v2109, 0.0
      %v2168 = vadd.f32 %v2166, %v2167
      %v2169 = vsel %vm414, %v2110, 0.0
      %v2170 = vadd.f32 %v2168, %v2169
      %v2171 = vsel %vm414, %v2111, 0.0
      %v2172 = vadd.f32 %v2170, %v2171
      %v2173 = vsel %vm414, %v2112, 0.0
      %v2174 = vadd.f32 %v2172, %v2173
      %v2175 = vsel %vm414, %v2113, 0.0
      %v2176 = vadd.f32 %v2174, %v2175
      %v2177 = vrot.slane %v2176, 4
      %v2178 = vadd.f32 %v2176, %v2177
      %v2179 = vrot.slane %v2178, 2
      %v2180 = vadd.f32 %v2178, %v2179
      %v2181 = vrot.slane %v2180, 1
      %v2182 = vadd.f32 %v2180, %v2181
      %vm2183 = vcmask 1040384
      %v2184 = vsel %vm2183, %v2048, %v2182
      %2185 = vst.msk [vmem:[%s238] sm:$0x3] %vm417, %v2184
      %s2186 = smul.u32 32, %s17
      %p2187 = scmp.lt.s32.totalorder %s2186, 63
      %s2188 = scalar_select %p2187, %s2186, 63
      %s2189 = smul.addr %s2188, 4
      %s2190 = scalar_lea.vmem %s4, %s2189
      %p2191 = scmp.lt.s32.totalorder %s17, 1
      %s2192 = scalar_select %p2191, %s17, 1
      %s2193 = smul.addr %s2192, 2
      %s2194 = scalar_lea.vmem %s5, %s2193
      // Predicated region
      $region37: #{basic_block_forward.4} parent=35 // pred_check
        %p2195 = pneg %p124
      $region38: #{basic_block_forward.4} parent=35 // pred_check_branch
        %2197 = sbr.rel (%p2195) target = $region40
      $region39: #{basic_block_forward.4} parent=35 // pred_region
        %s2198 = smul.u32 32, %s17
      $region40: #{basic_block_forward.4} parent=35 // pred_fallthru
        _
      // Predicated region
      $region41: #{basic_block_forward.4} parent=35 // pred_check
        %p2199 = pneg %p150
      $region42: #{basic_block_forward.4} parent=35 // pred_check_branch
        %2201 = sbr.rel (%p2199) target = $region44
      $region43: #{basic_block_forward.4} parent=35 // pred_region
        _
      $region44: #{basic_block_forward.4} parent=35 // pred_fallthru
        _
    $region36: #{basic_block_forward.4} parent=5 // pred_fallthru
      _
    %p2202 = scmp.le.s32.totalorder 2, %s12
    // Predicated region
    $region45: #{basic_block_forward.4} parent=5 // pred_check
      %p2203 = pneg %p2202
    $region46: #{basic_block_forward.4} parent=5 // pred_check_branch
      %2205 = sbr.rel (%p2203) target = $region48
    $region47: #{basic_block_forward.4} parent=5 // pred_region
      %s2206 = ssub.s32 %s12, 2
      // Predicated region
      $region49: #{basic_block_forward.4} parent=47 // pred_check
        %p2207 = pneg %p130
      $region50: #{basic_block_forward.4} parent=47 // pred_check_branch
        %2209 = sbr.rel (%p2207) target = $region52
      $region51: #{basic_block_forward.4} parent=47 // pred_region
        %s2210 = smul.u32 32, %s18
        %p2211 = scmp.lt.s32.totalorder %s2210, 63
        %s2212 = scalar_select %p2211, %s2210, 63
        %s2213 = smul.addr %s2212, 4
        %s2214 = scalar_lea.vmem %s4, %s2213
      $region52: #{basic_block_forward.4} parent=47 // pred_fallthru
        _
      // Predicated region
      $region53: #{basic_block_forward.4} parent=47 // pred_check
        %p2215 = pneg %p156
      $region54: #{basic_block_forward.4} parent=47 // pred_check_branch
        %2217 = sbr.rel (%p2215) target = $region56
      $region55: #{basic_block_forward.4} parent=47 // pred_region
        %p2218 = scmp.lt.s32.totalorder %s18, 1
        %s2219 = scalar_select %p2218, %s18, 1
        %s2220 = smul.addr %s2219, 2
        %s2221 = scalar_lea.vmem %s5, %s2220
      $region56: #{basic_block_forward.4} parent=47 // pred_fallthru
        _
    $region48: #{basic_block_forward.4} parent=5 // pred_fallthru
      _
  $region6: #{basic_block_forward.4} parent=0 // loop_footer
    %s16 = sadd.s32 1, %s12
  $region7: #{basic_block_forward.4} parent=0 // loop_footer_branch
    %11 = sbr.rel target = $region3
  $region8: #{basic_block_forward.4} parent=0 // loop_exit
    _

</llo_original>
